<compile_context>
chip_gen: v7x
topology: tpu7x:2x2x1
jax: 0.10.0
libtpu: 0.0.40
codegen_flags: <defaults>
</compile_context>

<pallas_src>
import functools

import jax
import jax.numpy as jnp
from jax.experimental import pallas as pl


def _round_up(x, m):
    return ((x + m - 1) // m) * m


# ----------------------------------------------------------------------------
# Fused whole-network kernel (everything resident in VMEM)
# ----------------------------------------------------------------------------
def _vae_core_kernel(*refs, batch, z, bn_eps):
    """FL_CVAE_Medical core (encode -> reparameterize -> decode) in one block.

    refs = [x, eps, dropout_mask] + 36 parameter refs + [mu, logvar, hi, xi].
    """
    it = iter(refs)
    x_ref, eps_ref, dmask_ref = next(it), next(it), next(it)
    enc1 = [next(it) for _ in range(4)]    # w, b, gamma, beta
    enc2 = [next(it) for _ in range(4)]
    enc3 = [next(it) for _ in range(4)]
    enc4 = [next(it) for _ in range(4)]
    fc = [next(it) for _ in range(2)]      # fused [fc11 | fc12]: w, b
    fc21 = [next(it) for _ in range(2)]
    dec1 = [next(it) for _ in range(4)]
    dec2 = [next(it) for _ in range(4)]
    dec3 = [next(it) for _ in range(4)]
    last = [next(it) for _ in range(4)]    # decoder_last + xi_bn
    mu_ref, logvar_ref, hi_ref, xi_ref = next(it), next(it), next(it), next(it)

    inv_b = 1.0 / batch

    def layer(h, w_ref, b_ref, g_ref=None, be_ref=None, mode="none"):
        # Linear: bf16 MXU operands, f32 accumulation; bias fused in epilogue.
        y = jnp.dot(h.astype(jnp.bfloat16), w_ref[...],
                    preferred_element_type=jnp.float32) + b_ref[...]
        rows = jax.lax.broadcasted_iota(jnp.int32, y.shape, 0)
        rmask = rows < batch
        if g_ref is not None:
            # training-mode BatchNorm1d: masked batch stats, centered variance
            ym = jnp.where(rmask, y, 0.0)
            mean = jnp.sum(ym, axis=0, keepdims=True) * inv_b
            yc = jnp.where(rmask, y - mean, 0.0)
            var = jnp.sum(yc * yc, axis=0, keepdims=True) * inv_b
            scale = g_ref[...] * jax.lax.rsqrt(var + bn_eps)
            y = (y - mean) * scale + be_ref[...]
        if mode == "relu":
            y = jnp.maximum(y, 0.0)
        elif mode == "relu_tanh":              # decoder ReLU then decode() tanh
            y = jnp.tanh(jnp.maximum(y, 0.0))
        elif mode == "sigmoid":
            y = 1.0 / (1.0 + jnp.exp(-y))
        # keep padded batch rows identically zero throughout the network
        return jnp.where(rmask, y, 0.0)

    x = x_ref[...]

    # ------------------------------ encoder ------------------------------
    h = layer(x, *enc1, mode="relu")
    h = h * dmask_ref[...]                     # Dropout(0.2), training mode
    h = layer(h, *enc2, mode="relu")
    h = layer(h, *enc3, mode="relu")
    h = layer(h, *enc4, mode="none")           # encoder ends with BatchNorm1d

    # --------------------- mu / logvar (fc11 & fc12 fused) ---------------
    ml = layer(h, *fc, mode="none")
    mu = ml[:, :z]
    logvar = ml[:, z:2 * z]

    # ------------------------- reparameterize ----------------------------
    std = jnp.exp(0.5 * logvar)
    hi = eps_ref[...] * std + mu

    # ------------------------------ decoder ------------------------------
    t = layer(hi, *fc21, mode="none")          # fc21
    t = layer(t, *dec1, mode="relu")
    t = layer(t, *dec2, mode="relu")
    t = layer(t, *dec3, mode="relu_tanh")      # decode() = tanh(decoder(z))
    xi = layer(t, *last, mode="sigmoid")       # decoder_last -> xi_bn -> sigmoid

    mu_ref[...] = mu
    logvar_ref[...] = logvar
    hi_ref[...] = hi
    xi_ref[...] = xi


# ----------------------------------------------------------------------------
# Parameters: deterministic synthetic init, pre-transposed / pre-padded / bf16
# ----------------------------------------------------------------------------
def init_params(seed, input_dim, d, z, in_pad):
    keys = iter(jax.random.split(jax.random.PRNGKey(seed), 40))

    def linear(in_f, out_f, in_p, out_p):
        w = jax.random.normal(next(keys), (in_f, out_f), jnp.float32) / jnp.sqrt(in_f)
        b = 0.05 * jax.random.normal(next(keys), (out_f,), jnp.float32)
        wp = jnp.zeros((in_p, out_p), jnp.float32).at[:in_f, :out_f].set(w)
        bp = jnp.zeros((1, out_p), jnp.float32).at[0, :out_f].set(b)
        return [wp.astype(jnp.bfloat16), bp]

    def bn(n, n_p):
        g = 1.0 + 0.1 * jax.random.normal(next(keys), (n,), jnp.float32)
        be = 0.05 * jax.random.normal(next(keys), (n,), jnp.float32)
        gp = jnp.zeros((1, n_p), jnp.float32).at[0, :n].set(g)
        bep = jnp.zeros((1, n_p), jnp.float32).at[0, :n].set(be)
        return [gp, bep]

    z2p = _round_up(2 * z, 128)
    p = []
    # encoder: Linear(in,2d)+BN, Linear(2d,d)+BN, Linear(d,d)+BN, Linear(d,d)+BN
    p += linear(input_dim, 2 * d, in_pad, 2 * d) + bn(2 * d, 2 * d)
    p += linear(2 * d, d, 2 * d, d) + bn(d, d)
    p += linear(d, d, d, d) + bn(d, d)
    p += linear(d, d, d, d) + bn(d, d)
    # fc11 | fc12 fused along the output dim (one matmul -> [mu | logvar])
    p += linear(d, 2 * z, d, z2p)
    # fc21
    p += linear(z, d, z, d)
    # decoder: Linear(d,d)+BN, Linear(d,d)+BN, Linear(d,2d)+BN
    p += linear(d, d, d, d) + bn(d, d)
    p += linear(d, d, d, d) + bn(d, d)
    p += linear(d, 2 * d, d, 2 * d) + bn(2 * d, 2 * d)
    # decoder_last + xi_bn
    p += linear(2 * d, input_dim, 2 * d, in_pad) + bn(input_dim, in_pad)
    return tuple(p)


# ----------------------------------------------------------------------------
# Forward (FL_CVAE_Medical.forward, training-mode semantics)
# ----------------------------------------------------------------------------
def fl_cvae_medical_forward(params, x, rng_key, *, d, z, input_dim, batch_pad,
                            in_pad, noise_mean, noise_std1, noise_std2,
                            noise_type="Gaussian", dropout_p=0.2,
                            bn_eps=1e-5, training=True):
    B = x.shape[0]
    Bp = batch_pad
    x = x.astype(jnp.float32)
    x_pad = jnp.zeros((Bp, in_pad), jnp.float32).at[:B, :input_dim].set(x)

    k_eps, k_drop, k_n1, k_n2 = jax.random.split(rng_key, 4)
    if training:
        eps = jax.random.normal(k_eps, (B, z), jnp.float32)   # reparameterize
    else:
        eps = jnp.zeros((B, z), jnp.float32)                   # eval: hi = mu
    eps_pad = jnp.zeros((Bp, z), jnp.float32).at[:B].set(eps)

    if training and dropout_p > 0.0:
        keep = 1.0 - dropout_p
        dmask = jax.random.bernoulli(k_drop, keep, (Bp, 2 * d)).astype(jnp.float32) / keep
    else:
        dmask = jnp.ones((Bp, 2 * d), jnp.float32)

    kernel = functools.partial(_vae_core_kernel, batch=B, z=z, bn_eps=bn_eps)
    mu_p, logvar_p, hi_p, xi_p = pl.pallas_call(
        kernel,
        out_shape=(
            jax.ShapeDtypeStruct((Bp, z), jnp.float32),
            jax.ShapeDtypeStruct((Bp, z), jnp.float32),
            jax.ShapeDtypeStruct((Bp, z), jnp.float32),
            jax.ShapeDtypeStruct((Bp, in_pad), jnp.float32),
        ),
    )(x_pad, eps_pad, dmask, *params)

    mu, logvar, hi = mu_p[:B], logvar_p[:B], hi_p[:B]
    xi = xi_p[:B, :input_dim]

    # classifier-branch preprocessing (tiny elementwise glue, plain JAX)
    rx = x - xi
    if noise_type == "Gaussian":
        n1 = jax.random.normal(k_n1, rx.shape, jnp.float32)
        n2 = jax.random.normal(k_n2, rx.shape, jnp.float32)
    elif noise_type == "Laplace":
        n1 = jax.random.laplace(k_n1, rx.shape, jnp.float32)
        n2 = jax.random.laplace(k_n2, rx.shape, jnp.float32)
    else:
        raise ValueError(f"Unknown noise type: {noise_type}")
    rx_noise1 = rx + (noise_mean + noise_std1 * n1)
    rx_noise2 = rx + (noise_mean + noise_std2 * n2)
    data = jnp.concatenate([rx_noise1, rx_noise2, x], axis=0)
    # TODO(synk): Medical_MLP_Classifier (model.tabular.models) is not provided;
    # `out = self.classifier(data)` is omitted and `data` is returned instead.
    return data, hi, xi, mu, logvar, rx, rx_noise1, rx_noise2


# ----------------------------------------------------------------------------
if __name__ == "__main__":
    INPUT_DIM = 261      # args.VAE_input_dim default
    D = 128              # hidden_dim
    Z = 32               # latent_dim
    B = 8                # small batch (sublane aligned)
    IN_PAD = _round_up(INPUT_DIM, 128)          # 384
    BP = max(8, _round_up(B, 8))

    params = init_params(0, INPUT_DIM, D, Z, IN_PAD)

    key = jax.random.PRNGKey(0)
    k_x, k_fwd = jax.random.split(key)
    x = jax.random.normal(k_x, (B, INPUT_DIM), jnp.float32)

    fwd = jax.jit(functools.partial(
        fl_cvae_medical_forward, d=D, z=Z, input_dim=INPUT_DIM,
        batch_pad=BP, in_pad=IN_PAD,
        noise_mean=0.0, noise_std1=0.15, noise_std2=0.25,
        noise_type="Gaussian", dropout_p=0.2, training=True))

    outs = fwd(params, x, k_fwd)
    outs = jax.block_until_ready(outs)

    data, hi, xi, mu, logvar, rx, rxn1, rxn2 = outs
    assert hi.shape == (B, Z) and mu.shape == (B, Z) and logvar.shape == (B, Z)
    assert xi.shape == (B, INPUT_DIM) and rx.shape == (B, INPUT_DIM)
    assert rxn1.shape == (B, INPUT_DIM) and rxn2.shape == (B, INPUT_DIM)
    assert data.shape == (3 * B, INPUT_DIM)
    assert all(bool(jnp.isfinite(o).all()) for o in outs)
    print("KERNEL_OK")
</pallas_src>

<mosaic_0001>
module attributes {stable_mosaic.version = 11 : i64} {
  func.func @_vae_core_kernel(%arg0: memref<8x384xf32, #tpu.memory_space<vmem>>, %arg1: memref<8x32xf32, #tpu.memory_space<vmem>>, %arg2: memref<8x256xf32, #tpu.memory_space<vmem>>, %arg3: memref<384x256xbf16, #tpu.memory_space<vmem>>, %arg4: memref<1x256xf32, #tpu.memory_space<vmem>>, %arg5: memref<1x256xf32, #tpu.memory_space<vmem>>, %arg6: memref<1x256xf32, #tpu.memory_space<vmem>>, %arg7: memref<256x128xbf16, #tpu.memory_space<vmem>>, %arg8: memref<1x128xf32, #tpu.memory_space<vmem>>, %arg9: memref<1x128xf32, #tpu.memory_space<vmem>>, %arg10: memref<1x128xf32, #tpu.memory_space<vmem>>, %arg11: memref<128x128xbf16, #tpu.memory_space<vmem>>, %arg12: memref<1x128xf32, #tpu.memory_space<vmem>>, %arg13: memref<1x128xf32, #tpu.memory_space<vmem>>, %arg14: memref<1x128xf32, #tpu.memory_space<vmem>>, %arg15: memref<128x128xbf16, #tpu.memory_space<vmem>>, %arg16: memref<1x128xf32, #tpu.memory_space<vmem>>, %arg17: memref<1x128xf32, #tpu.memory_space<vmem>>, %arg18: memref<1x128xf32, #tpu.memory_space<vmem>>, %arg19: memref<128x128xbf16, #tpu.memory_space<vmem>>, %arg20: memref<1x128xf32, #tpu.memory_space<vmem>>, %arg21: memref<32x128xbf16, #tpu.memory_space<vmem>>, %arg22: memref<1x128xf32, #tpu.memory_space<vmem>>, %arg23: memref<128x128xbf16, #tpu.memory_space<vmem>>, %arg24: memref<1x128xf32, #tpu.memory_space<vmem>>, %arg25: memref<1x128xf32, #tpu.memory_space<vmem>>, %arg26: memref<1x128xf32, #tpu.memory_space<vmem>>, %arg27: memref<128x128xbf16, #tpu.memory_space<vmem>>, %arg28: memref<1x128xf32, #tpu.memory_space<vmem>>, %arg29: memref<1x128xf32, #tpu.memory_space<vmem>>, %arg30: memref<1x128xf32, #tpu.memory_space<vmem>>, %arg31: memref<128x256xbf16, #tpu.memory_space<vmem>>, %arg32: memref<1x256xf32, #tpu.memory_space<vmem>>, %arg33: memref<1x256xf32, #tpu.memory_space<vmem>>, %arg34: memref<1x256xf32, #tpu.memory_space<vmem>>, %arg35: memref<256x384xbf16, #tpu.memory_space<vmem>>, %arg36: memref<1x384xf32, #tpu.memory_space<vmem>>, %arg37: memref<1x384xf32, #tpu.memory_space<vmem>>, %arg38: memref<1x384xf32, #tpu.memory_space<vmem>>, %arg39: memref<8x32xf32, #tpu.memory_space<vmem>>, %arg40: memref<8x32xf32, #tpu.memory_space<vmem>>, %arg41: memref<8x32xf32, #tpu.memory_space<vmem>>, %arg42: memref<8x384xf32, #tpu.memory_space<vmem>>) attributes {dimension_semantics = [], scalar_prefetch = 0 : i64, scratch_operands = 0 : i64, tpu.core_type = #tpu.core_type<tc>} {
    %c0 = arith.constant 0 : index
    %c0_0 = arith.constant 0 : index
    %0 = vector.load %arg0[%c0, %c0_0] : memref<8x384xf32, #tpu.memory_space<vmem>>, vector<8x384xf32>
    %1 = arith.truncf %0 : vector<8x384xf32> to vector<8x384xbf16>
    %c0_1 = arith.constant 0 : index
    %c0_2 = arith.constant 0 : index
    %2 = vector.load %arg3[%c0_1, %c0_2] : memref<384x256xbf16, #tpu.memory_space<vmem>>, vector<384x256xbf16>
    %cst = arith.constant dense<0.000000e+00> : vector<8x256xf32>
    %3 = tpu.matmul %1, %2, %cst {dimension_numbers = #tpu.dot_dimension_numbers<[1], [0], [0], [1], [0, 0, 1, 1], [], []>} : vector<8x384xbf16>, vector<384x256xbf16>, vector<8x256xf32> -> vector<8x256xf32>
    %c0_3 = arith.constant 0 : index
    %c0_4 = arith.constant 0 : index
    %4 = vector.load %arg4[%c0_3, %c0_4] : memref<1x256xf32, #tpu.memory_space<vmem>>, vector<1x256xf32>
    %5 = vector.broadcast %4 : vector<1x256xf32> to vector<8x256xf32>
    %6 = arith.addf %3, %5 : vector<8x256xf32>
    %7 = tpu.iota {dimensions = array<i32: 0>} : vector<8x256xi32>
    %c8_i32 = arith.constant 8 : i32
    %8 = vector.broadcast %c8_i32 : i32 to vector<8x256xi32>
    %9 = arith.cmpi slt, %7, %8 : vector<8x256xi32>
    %cst_5 = arith.constant 0.000000e+00 : f32
    %10 = vector.broadcast %cst_5 : f32 to vector<8x256xf32>
    %11 = arith.select %9, %6, %10 : vector<8x256xi1>, vector<8x256xf32>
    %cst_6 = arith.constant dense<0.000000e+00> : vector<256xf32>
    %12 = vector.multi_reduction <add>, %11, %cst_6 [0] : vector<8x256xf32> to vector<256xf32>
    %13 = vector.shape_cast %12 : vector<256xf32> to vector<1x256xf32>
    %cst_7 = arith.constant 1.250000e-01 : f32
    %14 = vector.broadcast %cst_7 : f32 to vector<1x256xf32>
    %15 = arith.mulf %13, %14 : vector<1x256xf32>
    %16 = vector.broadcast %15 : vector<1x256xf32> to vector<8x256xf32>
    %17 = arith.subf %6, %16 : vector<8x256xf32>
    %cst_8 = arith.constant 0.000000e+00 : f32
    %18 = vector.broadcast %cst_8 : f32 to vector<8x256xf32>
    %19 = arith.select %9, %17, %18 : vector<8x256xi1>, vector<8x256xf32>
    %20 = arith.mulf %19, %19 : vector<8x256xf32>
    %cst_9 = arith.constant dense<0.000000e+00> : vector<256xf32>
    %21 = vector.multi_reduction <add>, %20, %cst_9 [0] : vector<8x256xf32> to vector<256xf32>
    %22 = vector.shape_cast %21 : vector<256xf32> to vector<1x256xf32>
    %cst_10 = arith.constant 1.250000e-01 : f32
    %23 = vector.broadcast %cst_10 : f32 to vector<1x256xf32>
    %24 = arith.mulf %22, %23 : vector<1x256xf32>
    %c0_11 = arith.constant 0 : index
    %c0_12 = arith.constant 0 : index
    %25 = vector.load %arg5[%c0_11, %c0_12] : memref<1x256xf32, #tpu.memory_space<vmem>>, vector<1x256xf32>
    %cst_13 = arith.constant 9.99999974E-6 : f32
    %26 = vector.broadcast %cst_13 : f32 to vector<1x256xf32>
    %27 = arith.addf %24, %26 : vector<1x256xf32>
    %28 = math.rsqrt %27 : vector<1x256xf32>
    %29 = arith.mulf %25, %28 : vector<1x256xf32>
    %30 = vector.broadcast %15 : vector<1x256xf32> to vector<8x256xf32>
    %31 = arith.subf %6, %30 : vector<8x256xf32>
    %32 = vector.broadcast %29 : vector<1x256xf32> to vector<8x256xf32>
    %33 = arith.mulf %31, %32 : vector<8x256xf32>
    %c0_14 = arith.constant 0 : index
    %c0_15 = arith.constant 0 : index
    %34 = vector.load %arg6[%c0_14, %c0_15] : memref<1x256xf32, #tpu.memory_space<vmem>>, vector<1x256xf32>
    %35 = vector.broadcast %34 : vector<1x256xf32> to vector<8x256xf32>
    %36 = arith.addf %33, %35 : vector<8x256xf32>
    %cst_16 = arith.constant 0.000000e+00 : f32
    %37 = vector.broadcast %cst_16 : f32 to vector<8x256xf32>
    %38 = arith.maximumf %36, %37 : vector<8x256xf32>
    %cst_17 = arith.constant 0.000000e+00 : f32
    %39 = vector.broadcast %cst_17 : f32 to vector<8x256xf32>
    %40 = arith.select %9, %38, %39 : vector<8x256xi1>, vector<8x256xf32>
    %c0_18 = arith.constant 0 : index
    %c0_19 = arith.constant 0 : index
    %41 = vector.load %arg2[%c0_18, %c0_19] : memref<8x256xf32, #tpu.memory_space<vmem>>, vector<8x256xf32>
    %42 = arith.mulf %40, %41 : vector<8x256xf32>
    %43 = arith.truncf %42 : vector<8x256xf32> to vector<8x256xbf16>
    %c0_20 = arith.constant 0 : index
    %c0_21 = arith.constant 0 : index
    %44 = vector.load %arg7[%c0_20, %c0_21] : memref<256x128xbf16, #tpu.memory_space<vmem>>, vector<256x128xbf16>
    %cst_22 = arith.constant dense<0.000000e+00> : vector<8x128xf32>
    %45 = tpu.matmul %43, %44, %cst_22 {dimension_numbers = #tpu.dot_dimension_numbers<[1], [0], [0], [1], [0, 0, 1, 1], [], []>} : vector<8x256xbf16>, vector<256x128xbf16>, vector<8x128xf32> -> vector<8x128xf32>
    %c0_23 = arith.constant 0 : index
    %c0_24 = arith.constant 0 : index
    %46 = vector.load %arg8[%c0_23, %c0_24] : memref<1x128xf32, #tpu.memory_space<vmem>>, vector<1x128xf32>
    %47 = vector.broadcast %46 : vector<1x128xf32> to vector<8x128xf32>
    %48 = arith.addf %45, %47 : vector<8x128xf32>
    %49 = tpu.iota {dimensions = array<i32: 0>} : vector<8x128xi32>
    %c8_i32_25 = arith.constant 8 : i32
    %50 = vector.broadcast %c8_i32_25 : i32 to vector<8x128xi32>
    %51 = arith.cmpi slt, %49, %50 : vector<8x128xi32>
    %cst_26 = arith.constant 0.000000e+00 : f32
    %52 = vector.broadcast %cst_26 : f32 to vector<8x128xf32>
    %53 = arith.select %51, %48, %52 : vector<8x128xi1>, vector<8x128xf32>
    %cst_27 = arith.constant dense<0.000000e+00> : vector<128xf32>
    %54 = vector.multi_reduction <add>, %53, %cst_27 [0] : vector<8x128xf32> to vector<128xf32>
    %55 = vector.shape_cast %54 : vector<128xf32> to vector<1x128xf32>
    %cst_28 = arith.constant 1.250000e-01 : f32
    %56 = vector.broadcast %cst_28 : f32 to vector<1x128xf32>
    %57 = arith.mulf %55, %56 : vector<1x128xf32>
    %58 = vector.broadcast %57 : vector<1x128xf32> to vector<8x128xf32>
    %59 = arith.subf %48, %58 : vector<8x128xf32>
    %cst_29 = arith.constant 0.000000e+00 : f32
    %60 = vector.broadcast %cst_29 : f32 to vector<8x128xf32>
    %61 = arith.select %51, %59, %60 : vector<8x128xi1>, vector<8x128xf32>
    %62 = arith.mulf %61, %61 : vector<8x128xf32>
    %cst_30 = arith.constant dense<0.000000e+00> : vector<128xf32>
    %63 = vector.multi_reduction <add>, %62, %cst_30 [0] : vector<8x128xf32> to vector<128xf32>
    %64 = vector.shape_cast %63 : vector<128xf32> to vector<1x128xf32>
    %cst_31 = arith.constant 1.250000e-01 : f32
    %65 = vector.broadcast %cst_31 : f32 to vector<1x128xf32>
    %66 = arith.mulf %64, %65 : vector<1x128xf32>
    %c0_32 = arith.constant 0 : index
    %c0_33 = arith.constant 0 : index
    %67 = vector.load %arg9[%c0_32, %c0_33] : memref<1x128xf32, #tpu.memory_space<vmem>>, vector<1x128xf32>
    %cst_34 = arith.constant 9.99999974E-6 : f32
    %68 = vector.broadcast %cst_34 : f32 to vector<1x128xf32>
    %69 = arith.addf %66, %68 : vector<1x128xf32>
    %70 = math.rsqrt %69 : vector<1x128xf32>
    %71 = arith.mulf %67, %70 : vector<1x128xf32>
    %72 = vector.broadcast %57 : vector<1x128xf32> to vector<8x128xf32>
    %73 = arith.subf %48, %72 : vector<8x128xf32>
    %74 = vector.broadcast %71 : vector<1x128xf32> to vector<8x128xf32>
    %75 = arith.mulf %73, %74 : vector<8x128xf32>
    %c0_35 = arith.constant 0 : index
    %c0_36 = arith.constant 0 : index
    %76 = vector.load %arg10[%c0_35, %c0_36] : memref<1x128xf32, #tpu.memory_space<vmem>>, vector<1x128xf32>
    %77 = vector.broadcast %76 : vector<1x128xf32> to vector<8x128xf32>
    %78 = arith.addf %75, %77 : vector<8x128xf32>
    %cst_37 = arith.constant 0.000000e+00 : f32
    %79 = vector.broadcast %cst_37 : f32 to vector<8x128xf32>
    %80 = arith.maximumf %78, %79 : vector<8x128xf32>
    %cst_38 = arith.constant 0.000000e+00 : f32
    %81 = vector.broadcast %cst_38 : f32 to vector<8x128xf32>
    %82 = arith.select %51, %80, %81 : vector<8x128xi1>, vector<8x128xf32>
    %83 = arith.truncf %82 : vector<8x128xf32> to vector<8x128xbf16>
    %c0_39 = arith.constant 0 : index
    %c0_40 = arith.constant 0 : index
    %84 = vector.load %arg11[%c0_39, %c0_40] : memref<128x128xbf16, #tpu.memory_space<vmem>>, vector<128x128xbf16>
    %cst_41 = arith.constant dense<0.000000e+00> : vector<8x128xf32>
    %85 = tpu.matmul %83, %84, %cst_41 {dimension_numbers = #tpu.dot_dimension_numbers<[1], [0], [0], [1], [0, 0, 1, 1], [], []>} : vector<8x128xbf16>, vector<128x128xbf16>, vector<8x128xf32> -> vector<8x128xf32>
    %c0_42 = arith.constant 0 : index
    %c0_43 = arith.constant 0 : index
    %86 = vector.load %arg12[%c0_42, %c0_43] : memref<1x128xf32, #tpu.memory_space<vmem>>, vector<1x128xf32>
    %87 = vector.broadcast %86 : vector<1x128xf32> to vector<8x128xf32>
    %88 = arith.addf %85, %87 : vector<8x128xf32>
    %89 = tpu.iota {dimensions = array<i32: 0>} : vector<8x128xi32>
    %c8_i32_44 = arith.constant 8 : i32
    %90 = vector.broadcast %c8_i32_44 : i32 to vector<8x128xi32>
    %91 = arith.cmpi slt, %89, %90 : vector<8x128xi32>
    %cst_45 = arith.constant 0.000000e+00 : f32
    %92 = vector.broadcast %cst_45 : f32 to vector<8x128xf32>
    %93 = arith.select %91, %88, %92 : vector<8x128xi1>, vector<8x128xf32>
    %cst_46 = arith.constant dense<0.000000e+00> : vector<128xf32>
    %94 = vector.multi_reduction <add>, %93, %cst_46 [0] : vector<8x128xf32> to vector<128xf32>
    %95 = vector.shape_cast %94 : vector<128xf32> to vector<1x128xf32>
    %cst_47 = arith.constant 1.250000e-01 : f32
    %96 = vector.broadcast %cst_47 : f32 to vector<1x128xf32>
    %97 = arith.mulf %95, %96 : vector<1x128xf32>
    %98 = vector.broadcast %97 : vector<1x128xf32> to vector<8x128xf32>
    %99 = arith.subf %88, %98 : vector<8x128xf32>
    %cst_48 = arith.constant 0.000000e+00 : f32
    %100 = vector.broadcast %cst_48 : f32 to vector<8x128xf32>
    %101 = arith.select %91, %99, %100 : vector<8x128xi1>, vector<8x128xf32>
    %102 = arith.mulf %101, %101 : vector<8x128xf32>
    %cst_49 = arith.constant dense<0.000000e+00> : vector<128xf32>
    %103 = vector.multi_reduction <add>, %102, %cst_49 [0] : vector<8x128xf32> to vector<128xf32>
    %104 = vector.shape_cast %103 : vector<128xf32> to vector<1x128xf32>
    %cst_50 = arith.constant 1.250000e-01 : f32
    %105 = vector.broadcast %cst_50 : f32 to vector<1x128xf32>
    %106 = arith.mulf %104, %105 : vector<1x128xf32>
    %c0_51 = arith.constant 0 : index
    %c0_52 = arith.constant 0 : index
    %107 = vector.load %arg13[%c0_51, %c0_52] : memref<1x128xf32, #tpu.memory_space<vmem>>, vector<1x128xf32>
    %cst_53 = arith.constant 9.99999974E-6 : f32
    %108 = vector.broadcast %cst_53 : f32 to vector<1x128xf32>
    %109 = arith.addf %106, %108 : vector<1x128xf32>
    %110 = math.rsqrt %109 : vector<1x128xf32>
    %111 = arith.mulf %107, %110 : vector<1x128xf32>
    %112 = vector.broadcast %97 : vector<1x128xf32> to vector<8x128xf32>
    %113 = arith.subf %88, %112 : vector<8x128xf32>
    %114 = vector.broadcast %111 : vector<1x128xf32> to vector<8x128xf32>
    %115 = arith.mulf %113, %114 : vector<8x128xf32>
    %c0_54 = arith.constant 0 : index
    %c0_55 = arith.constant 0 : index
    %116 = vector.load %arg14[%c0_54, %c0_55] : memref<1x128xf32, #tpu.memory_space<vmem>>, vector<1x128xf32>
    %117 = vector.broadcast %116 : vector<1x128xf32> to vector<8x128xf32>
    %118 = arith.addf %115, %117 : vector<8x128xf32>
    %cst_56 = arith.constant 0.000000e+00 : f32
    %119 = vector.broadcast %cst_56 : f32 to vector<8x128xf32>
    %120 = arith.maximumf %118, %119 : vector<8x128xf32>
    %cst_57 = arith.constant 0.000000e+00 : f32
    %121 = vector.broadcast %cst_57 : f32 to vector<8x128xf32>
    %122 = arith.select %91, %120, %121 : vector<8x128xi1>, vector<8x128xf32>
    %123 = arith.truncf %122 : vector<8x128xf32> to vector<8x128xbf16>
    %c0_58 = arith.constant 0 : index
    %c0_59 = arith.constant 0 : index
    %124 = vector.load %arg15[%c0_58, %c0_59] : memref<128x128xbf16, #tpu.memory_space<vmem>>, vector<128x128xbf16>
    %cst_60 = arith.constant dense<0.000000e+00> : vector<8x128xf32>
    %125 = tpu.matmul %123, %124, %cst_60 {dimension_numbers = #tpu.dot_dimension_numbers<[1], [0], [0], [1], [0, 0, 1, 1], [], []>} : vector<8x128xbf16>, vector<128x128xbf16>, vector<8x128xf32> -> vector<8x128xf32>
    %c0_61 = arith.constant 0 : index
    %c0_62 = arith.constant 0 : index
    %126 = vector.load %arg16[%c0_61, %c0_62] : memref<1x128xf32, #tpu.memory_space<vmem>>, vector<1x128xf32>
    %127 = vector.broadcast %126 : vector<1x128xf32> to vector<8x128xf32>
    %128 = arith.addf %125, %127 : vector<8x128xf32>
    %129 = tpu.iota {dimensions = array<i32: 0>} : vector<8x128xi32>
    %c8_i32_63 = arith.constant 8 : i32
    %130 = vector.broadcast %c8_i32_63 : i32 to vector<8x128xi32>
    %131 = arith.cmpi slt, %129, %130 : vector<8x128xi32>
    %cst_64 = arith.constant 0.000000e+00 : f32
    %132 = vector.broadcast %cst_64 : f32 to vector<8x128xf32>
    %133 = arith.select %131, %128, %132 : vector<8x128xi1>, vector<8x128xf32>
    %cst_65 = arith.constant dense<0.000000e+00> : vector<128xf32>
    %134 = vector.multi_reduction <add>, %133, %cst_65 [0] : vector<8x128xf32> to vector<128xf32>
    %135 = vector.shape_cast %134 : vector<128xf32> to vector<1x128xf32>
    %cst_66 = arith.constant 1.250000e-01 : f32
    %136 = vector.broadcast %cst_66 : f32 to vector<1x128xf32>
    %137 = arith.mulf %135, %136 : vector<1x128xf32>
    %138 = vector.broadcast %137 : vector<1x128xf32> to vector<8x128xf32>
    %139 = arith.subf %128, %138 : vector<8x128xf32>
    %cst_67 = arith.constant 0.000000e+00 : f32
    %140 = vector.broadcast %cst_67 : f32 to vector<8x128xf32>
    %141 = arith.select %131, %139, %140 : vector<8x128xi1>, vector<8x128xf32>
    %142 = arith.mulf %141, %141 : vector<8x128xf32>
    %cst_68 = arith.constant dense<0.000000e+00> : vector<128xf32>
    %143 = vector.multi_reduction <add>, %142, %cst_68 [0] : vector<8x128xf32> to vector<128xf32>
    %144 = vector.shape_cast %143 : vector<128xf32> to vector<1x128xf32>
    %cst_69 = arith.constant 1.250000e-01 : f32
    %145 = vector.broadcast %cst_69 : f32 to vector<1x128xf32>
    %146 = arith.mulf %144, %145 : vector<1x128xf32>
    %c0_70 = arith.constant 0 : index
    %c0_71 = arith.constant 0 : index
    %147 = vector.load %arg17[%c0_70, %c0_71] : memref<1x128xf32, #tpu.memory_space<vmem>>, vector<1x128xf32>
    %cst_72 = arith.constant 9.99999974E-6 : f32
    %148 = vector.broadcast %cst_72 : f32 to vector<1x128xf32>
    %149 = arith.addf %146, %148 : vector<1x128xf32>
    %150 = math.rsqrt %149 : vector<1x128xf32>
    %151 = arith.mulf %147, %150 : vector<1x128xf32>
    %152 = vector.broadcast %137 : vector<1x128xf32> to vector<8x128xf32>
    %153 = arith.subf %128, %152 : vector<8x128xf32>
    %154 = vector.broadcast %151 : vector<1x128xf32> to vector<8x128xf32>
    %155 = arith.mulf %153, %154 : vector<8x128xf32>
    %c0_73 = arith.constant 0 : index
    %c0_74 = arith.constant 0 : index
    %156 = vector.load %arg18[%c0_73, %c0_74] : memref<1x128xf32, #tpu.memory_space<vmem>>, vector<1x128xf32>
    %157 = vector.broadcast %156 : vector<1x128xf32> to vector<8x128xf32>
    %158 = arith.addf %155, %157 : vector<8x128xf32>
    %cst_75 = arith.constant 0.000000e+00 : f32
    %159 = vector.broadcast %cst_75 : f32 to vector<8x128xf32>
    %160 = arith.select %131, %158, %159 : vector<8x128xi1>, vector<8x128xf32>
    %161 = arith.truncf %160 : vector<8x128xf32> to vector<8x128xbf16>
    %c0_76 = arith.constant 0 : index
    %c0_77 = arith.constant 0 : index
    %162 = vector.load %arg19[%c0_76, %c0_77] : memref<128x128xbf16, #tpu.memory_space<vmem>>, vector<128x128xbf16>
    %cst_78 = arith.constant dense<0.000000e+00> : vector<8x128xf32>
    %163 = tpu.matmul %161, %162, %cst_78 {dimension_numbers = #tpu.dot_dimension_numbers<[1], [0], [0], [1], [0, 0, 1, 1], [], []>} : vector<8x128xbf16>, vector<128x128xbf16>, vector<8x128xf32> -> vector<8x128xf32>
    %c0_79 = arith.constant 0 : index
    %c0_80 = arith.constant 0 : index
    %164 = vector.load %arg20[%c0_79, %c0_80] : memref<1x128xf32, #tpu.memory_space<vmem>>, vector<1x128xf32>
    %165 = vector.broadcast %164 : vector<1x128xf32> to vector<8x128xf32>
    %166 = arith.addf %163, %165 : vector<8x128xf32>
    %167 = tpu.iota {dimensions = array<i32: 0>} : vector<8x128xi32>
    %c8_i32_81 = arith.constant 8 : i32
    %168 = vector.broadcast %c8_i32_81 : i32 to vector<8x128xi32>
    %169 = arith.cmpi slt, %167, %168 : vector<8x128xi32>
    %cst_82 = arith.constant 0.000000e+00 : f32
    %170 = vector.broadcast %cst_82 : f32 to vector<8x128xf32>
    %171 = arith.select %169, %166, %170 : vector<8x128xi1>, vector<8x128xf32>
    %172 = vector.extract_strided_slice %171 {offsets = [0, 0], sizes = [8, 32], strides = [1, 1]} : vector<8x128xf32> to vector<8x32xf32>
    %173 = vector.extract_strided_slice %171 {offsets = [0, 32], sizes = [8, 32], strides = [1, 1]} : vector<8x128xf32> to vector<8x32xf32>
    %cst_83 = arith.constant 5.000000e-01 : f32
    %174 = vector.broadcast %cst_83 : f32 to vector<8x32xf32>
    %175 = arith.mulf %174, %173 : vector<8x32xf32>
    %176 = math.exp %175 : vector<8x32xf32>
    %c0_84 = arith.constant 0 : index
    %c0_85 = arith.constant 0 : index
    %177 = vector.load %arg1[%c0_84, %c0_85] : memref<8x32xf32, #tpu.memory_space<vmem>>, vector<8x32xf32>
    %178 = arith.mulf %177, %176 : vector<8x32xf32>
    %179 = arith.addf %178, %172 : vector<8x32xf32>
    %180 = arith.truncf %179 : vector<8x32xf32> to vector<8x32xbf16>
    %c0_86 = arith.constant 0 : index
    %c0_87 = arith.constant 0 : index
    %181 = vector.load %arg21[%c0_86, %c0_87] : memref<32x128xbf16, #tpu.memory_space<vmem>>, vector<32x128xbf16>
    %cst_88 = arith.constant dense<0.000000e+00> : vector<8x128xf32>
    %182 = tpu.matmul %180, %181, %cst_88 {dimension_numbers = #tpu.dot_dimension_numbers<[1], [0], [0], [1], [0, 0, 1, 1], [], []>} : vector<8x32xbf16>, vector<32x128xbf16>, vector<8x128xf32> -> vector<8x128xf32>
    %c0_89 = arith.constant 0 : index
    %c0_90 = arith.constant 0 : index
    %183 = vector.load %arg22[%c0_89, %c0_90] : memref<1x128xf32, #tpu.memory_space<vmem>>, vector<1x128xf32>
    %184 = vector.broadcast %183 : vector<1x128xf32> to vector<8x128xf32>
    %185 = arith.addf %182, %184 : vector<8x128xf32>
    %186 = tpu.iota {dimensions = array<i32: 0>} : vector<8x128xi32>
    %c8_i32_91 = arith.constant 8 : i32
    %187 = vector.broadcast %c8_i32_91 : i32 to vector<8x128xi32>
    %188 = arith.cmpi slt, %186, %187 : vector<8x128xi32>
    %cst_92 = arith.constant 0.000000e+00 : f32
    %189 = vector.broadcast %cst_92 : f32 to vector<8x128xf32>
    %190 = arith.select %188, %185, %189 : vector<8x128xi1>, vector<8x128xf32>
    %191 = arith.truncf %190 : vector<8x128xf32> to vector<8x128xbf16>
    %c0_93 = arith.constant 0 : index
    %c0_94 = arith.constant 0 : index
    %192 = vector.load %arg23[%c0_93, %c0_94] : memref<128x128xbf16, #tpu.memory_space<vmem>>, vector<128x128xbf16>
    %cst_95 = arith.constant dense<0.000000e+00> : vector<8x128xf32>
    %193 = tpu.matmul %191, %192, %cst_95 {dimension_numbers = #tpu.dot_dimension_numbers<[1], [0], [0], [1], [0, 0, 1, 1], [], []>} : vector<8x128xbf16>, vector<128x128xbf16>, vector<8x128xf32> -> vector<8x128xf32>
    %c0_96 = arith.constant 0 : index
    %c0_97 = arith.constant 0 : index
    %194 = vector.load %arg24[%c0_96, %c0_97] : memref<1x128xf32, #tpu.memory_space<vmem>>, vector<1x128xf32>
    %195 = vector.broadcast %194 : vector<1x128xf32> to vector<8x128xf32>
    %196 = arith.addf %193, %195 : vector<8x128xf32>
    %197 = tpu.iota {dimensions = array<i32: 0>} : vector<8x128xi32>
    %c8_i32_98 = arith.constant 8 : i32
    %198 = vector.broadcast %c8_i32_98 : i32 to vector<8x128xi32>
    %199 = arith.cmpi slt, %197, %198 : vector<8x128xi32>
    %cst_99 = arith.constant 0.000000e+00 : f32
    %200 = vector.broadcast %cst_99 : f32 to vector<8x128xf32>
    %201 = arith.select %199, %196, %200 : vector<8x128xi1>, vector<8x128xf32>
    %cst_100 = arith.constant dense<0.000000e+00> : vector<128xf32>
    %202 = vector.multi_reduction <add>, %201, %cst_100 [0] : vector<8x128xf32> to vector<128xf32>
    %203 = vector.shape_cast %202 : vector<128xf32> to vector<1x128xf32>
    %cst_101 = arith.constant 1.250000e-01 : f32
    %204 = vector.broadcast %cst_101 : f32 to vector<1x128xf32>
    %205 = arith.mulf %203, %204 : vector<1x128xf32>
    %206 = vector.broadcast %205 : vector<1x128xf32> to vector<8x128xf32>
    %207 = arith.subf %196, %206 : vector<8x128xf32>
    %cst_102 = arith.constant 0.000000e+00 : f32
    %208 = vector.broadcast %cst_102 : f32 to vector<8x128xf32>
    %209 = arith.select %199, %207, %208 : vector<8x128xi1>, vector<8x128xf32>
    %210 = arith.mulf %209, %209 : vector<8x128xf32>
    %cst_103 = arith.constant dense<0.000000e+00> : vector<128xf32>
    %211 = vector.multi_reduction <add>, %210, %cst_103 [0] : vector<8x128xf32> to vector<128xf32>
    %212 = vector.shape_cast %211 : vector<128xf32> to vector<1x128xf32>
    %cst_104 = arith.constant 1.250000e-01 : f32
    %213 = vector.broadcast %cst_104 : f32 to vector<1x128xf32>
    %214 = arith.mulf %212, %213 : vector<1x128xf32>
    %c0_105 = arith.constant 0 : index
    %c0_106 = arith.constant 0 : index
    %215 = vector.load %arg25[%c0_105, %c0_106] : memref<1x128xf32, #tpu.memory_space<vmem>>, vector<1x128xf32>
    %cst_107 = arith.constant 9.99999974E-6 : f32
    %216 = vector.broadcast %cst_107 : f32 to vector<1x128xf32>
    %217 = arith.addf %214, %216 : vector<1x128xf32>
    %218 = math.rsqrt %217 : vector<1x128xf32>
    %219 = arith.mulf %215, %218 : vector<1x128xf32>
    %220 = vector.broadcast %205 : vector<1x128xf32> to vector<8x128xf32>
    %221 = arith.subf %196, %220 : vector<8x128xf32>
    %222 = vector.broadcast %219 : vector<1x128xf32> to vector<8x128xf32>
    %223 = arith.mulf %221, %222 : vector<8x128xf32>
    %c0_108 = arith.constant 0 : index
    %c0_109 = arith.constant 0 : index
    %224 = vector.load %arg26[%c0_108, %c0_109] : memref<1x128xf32, #tpu.memory_space<vmem>>, vector<1x128xf32>
    %225 = vector.broadcast %224 : vector<1x128xf32> to vector<8x128xf32>
    %226 = arith.addf %223, %225 : vector<8x128xf32>
    %cst_110 = arith.constant 0.000000e+00 : f32
    %227 = vector.broadcast %cst_110 : f32 to vector<8x128xf32>
    %228 = arith.maximumf %226, %227 : vector<8x128xf32>
    %cst_111 = arith.constant 0.000000e+00 : f32
    %229 = vector.broadcast %cst_111 : f32 to vector<8x128xf32>
    %230 = arith.select %199, %228, %229 : vector<8x128xi1>, vector<8x128xf32>
    %231 = arith.truncf %230 : vector<8x128xf32> to vector<8x128xbf16>
    %c0_112 = arith.constant 0 : index
    %c0_113 = arith.constant 0 : index
    %232 = vector.load %arg27[%c0_112, %c0_113] : memref<128x128xbf16, #tpu.memory_space<vmem>>, vector<128x128xbf16>
    %cst_114 = arith.constant dense<0.000000e+00> : vector<8x128xf32>
    %233 = tpu.matmul %231, %232, %cst_114 {dimension_numbers = #tpu.dot_dimension_numbers<[1], [0], [0], [1], [0, 0, 1, 1], [], []>} : vector<8x128xbf16>, vector<128x128xbf16>, vector<8x128xf32> -> vector<8x128xf32>
    %c0_115 = arith.constant 0 : index
    %c0_116 = arith.constant 0 : index
    %234 = vector.load %arg28[%c0_115, %c0_116] : memref<1x128xf32, #tpu.memory_space<vmem>>, vector<1x128xf32>
    %235 = vector.broadcast %234 : vector<1x128xf32> to vector<8x128xf32>
    %236 = arith.addf %233, %235 : vector<8x128xf32>
    %237 = tpu.iota {dimensions = array<i32: 0>} : vector<8x128xi32>
    %c8_i32_117 = arith.constant 8 : i32
    %238 = vector.broadcast %c8_i32_117 : i32 to vector<8x128xi32>
    %239 = arith.cmpi slt, %237, %238 : vector<8x128xi32>
    %cst_118 = arith.constant 0.000000e+00 : f32
    %240 = vector.broadcast %cst_118 : f32 to vector<8x128xf32>
    %241 = arith.select %239, %236, %240 : vector<8x128xi1>, vector<8x128xf32>
    %cst_119 = arith.constant dense<0.000000e+00> : vector<128xf32>
    %242 = vector.multi_reduction <add>, %241, %cst_119 [0] : vector<8x128xf32> to vector<128xf32>
    %243 = vector.shape_cast %242 : vector<128xf32> to vector<1x128xf32>
    %cst_120 = arith.constant 1.250000e-01 : f32
    %244 = vector.broadcast %cst_120 : f32 to vector<1x128xf32>
    %245 = arith.mulf %243, %244 : vector<1x128xf32>
    %246 = vector.broadcast %245 : vector<1x128xf32> to vector<8x128xf32>
    %247 = arith.subf %236, %246 : vector<8x128xf32>
    %cst_121 = arith.constant 0.000000e+00 : f32
    %248 = vector.broadcast %cst_121 : f32 to vector<8x128xf32>
    %249 = arith.select %239, %247, %248 : vector<8x128xi1>, vector<8x128xf32>
    %250 = arith.mulf %249, %249 : vector<8x128xf32>
    %cst_122 = arith.constant dense<0.000000e+00> : vector<128xf32>
    %251 = vector.multi_reduction <add>, %250, %cst_122 [0] : vector<8x128xf32> to vector<128xf32>
    %252 = vector.shape_cast %251 : vector<128xf32> to vector<1x128xf32>
    %cst_123 = arith.constant 1.250000e-01 : f32
    %253 = vector.broadcast %cst_123 : f32 to vector<1x128xf32>
    %254 = arith.mulf %252, %253 : vector<1x128xf32>
    %c0_124 = arith.constant 0 : index
    %c0_125 = arith.constant 0 : index
    %255 = vector.load %arg29[%c0_124, %c0_125] : memref<1x128xf32, #tpu.memory_space<vmem>>, vector<1x128xf32>
    %cst_126 = arith.constant 9.99999974E-6 : f32
    %256 = vector.broadcast %cst_126 : f32 to vector<1x128xf32>
    %257 = arith.addf %254, %256 : vector<1x128xf32>
    %258 = math.rsqrt %257 : vector<1x128xf32>
    %259 = arith.mulf %255, %258 : vector<1x128xf32>
    %260 = vector.broadcast %245 : vector<1x128xf32> to vector<8x128xf32>
    %261 = arith.subf %236, %260 : vector<8x128xf32>
    %262 = vector.broadcast %259 : vector<1x128xf32> to vector<8x128xf32>
    %263 = arith.mulf %261, %262 : vector<8x128xf32>
    %c0_127 = arith.constant 0 : index
    %c0_128 = arith.constant 0 : index
    %264 = vector.load %arg30[%c0_127, %c0_128] : memref<1x128xf32, #tpu.memory_space<vmem>>, vector<1x128xf32>
    %265 = vector.broadcast %264 : vector<1x128xf32> to vector<8x128xf32>
    %266 = arith.addf %263, %265 : vector<8x128xf32>
    %cst_129 = arith.constant 0.000000e+00 : f32
    %267 = vector.broadcast %cst_129 : f32 to vector<8x128xf32>
    %268 = arith.maximumf %266, %267 : vector<8x128xf32>
    %cst_130 = arith.constant 0.000000e+00 : f32
    %269 = vector.broadcast %cst_130 : f32 to vector<8x128xf32>
    %270 = arith.select %239, %268, %269 : vector<8x128xi1>, vector<8x128xf32>
    %271 = arith.truncf %270 : vector<8x128xf32> to vector<8x128xbf16>
    %c0_131 = arith.constant 0 : index
    %c0_132 = arith.constant 0 : index
    %272 = vector.load %arg31[%c0_131, %c0_132] : memref<128x256xbf16, #tpu.memory_space<vmem>>, vector<128x256xbf16>
    %cst_133 = arith.constant dense<0.000000e+00> : vector<8x256xf32>
    %273 = tpu.matmul %271, %272, %cst_133 {dimension_numbers = #tpu.dot_dimension_numbers<[1], [0], [0], [1], [0, 0, 1, 1], [], []>} : vector<8x128xbf16>, vector<128x256xbf16>, vector<8x256xf32> -> vector<8x256xf32>
    %c0_134 = arith.constant 0 : index
    %c0_135 = arith.constant 0 : index
    %274 = vector.load %arg32[%c0_134, %c0_135] : memref<1x256xf32, #tpu.memory_space<vmem>>, vector<1x256xf32>
    %275 = vector.broadcast %274 : vector<1x256xf32> to vector<8x256xf32>
    %276 = arith.addf %273, %275 : vector<8x256xf32>
    %277 = tpu.iota {dimensions = array<i32: 0>} : vector<8x256xi32>
    %c8_i32_136 = arith.constant 8 : i32
    %278 = vector.broadcast %c8_i32_136 : i32 to vector<8x256xi32>
    %279 = arith.cmpi slt, %277, %278 : vector<8x256xi32>
    %cst_137 = arith.constant 0.000000e+00 : f32
    %280 = vector.broadcast %cst_137 : f32 to vector<8x256xf32>
    %281 = arith.select %279, %276, %280 : vector<8x256xi1>, vector<8x256xf32>
    %cst_138 = arith.constant dense<0.000000e+00> : vector<256xf32>
    %282 = vector.multi_reduction <add>, %281, %cst_138 [0] : vector<8x256xf32> to vector<256xf32>
    %283 = vector.shape_cast %282 : vector<256xf32> to vector<1x256xf32>
    %cst_139 = arith.constant 1.250000e-01 : f32
    %284 = vector.broadcast %cst_139 : f32 to vector<1x256xf32>
    %285 = arith.mulf %283, %284 : vector<1x256xf32>
    %286 = vector.broadcast %285 : vector<1x256xf32> to vector<8x256xf32>
    %287 = arith.subf %276, %286 : vector<8x256xf32>
    %cst_140 = arith.constant 0.000000e+00 : f32
    %288 = vector.broadcast %cst_140 : f32 to vector<8x256xf32>
    %289 = arith.select %279, %287, %288 : vector<8x256xi1>, vector<8x256xf32>
    %290 = arith.mulf %289, %289 : vector<8x256xf32>
    %cst_141 = arith.constant dense<0.000000e+00> : vector<256xf32>
    %291 = vector.multi_reduction <add>, %290, %cst_141 [0] : vector<8x256xf32> to vector<256xf32>
    %292 = vector.shape_cast %291 : vector<256xf32> to vector<1x256xf32>
    %cst_142 = arith.constant 1.250000e-01 : f32
    %293 = vector.broadcast %cst_142 : f32 to vector<1x256xf32>
    %294 = arith.mulf %292, %293 : vector<1x256xf32>
    %c0_143 = arith.constant 0 : index
    %c0_144 = arith.constant 0 : index
    %295 = vector.load %arg33[%c0_143, %c0_144] : memref<1x256xf32, #tpu.memory_space<vmem>>, vector<1x256xf32>
    %cst_145 = arith.constant 9.99999974E-6 : f32
    %296 = vector.broadcast %cst_145 : f32 to vector<1x256xf32>
    %297 = arith.addf %294, %296 : vector<1x256xf32>
    %298 = math.rsqrt %297 : vector<1x256xf32>
    %299 = arith.mulf %295, %298 : vector<1x256xf32>
    %300 = vector.broadcast %285 : vector<1x256xf32> to vector<8x256xf32>
    %301 = arith.subf %276, %300 : vector<8x256xf32>
    %302 = vector.broadcast %299 : vector<1x256xf32> to vector<8x256xf32>
    %303 = arith.mulf %301, %302 : vector<8x256xf32>
    %c0_146 = arith.constant 0 : index
    %c0_147 = arith.constant 0 : index
    %304 = vector.load %arg34[%c0_146, %c0_147] : memref<1x256xf32, #tpu.memory_space<vmem>>, vector<1x256xf32>
    %305 = vector.broadcast %304 : vector<1x256xf32> to vector<8x256xf32>
    %306 = arith.addf %303, %305 : vector<8x256xf32>
    %cst_148 = arith.constant 0.000000e+00 : f32
    %307 = vector.broadcast %cst_148 : f32 to vector<8x256xf32>
    %308 = arith.maximumf %306, %307 : vector<8x256xf32>
    %309 = math.tanh %308 : vector<8x256xf32>
    %cst_149 = arith.constant 0.000000e+00 : f32
    %310 = vector.broadcast %cst_149 : f32 to vector<8x256xf32>
    %311 = arith.select %279, %309, %310 : vector<8x256xi1>, vector<8x256xf32>
    %312 = arith.truncf %311 : vector<8x256xf32> to vector<8x256xbf16>
    %c0_150 = arith.constant 0 : index
    %c0_151 = arith.constant 0 : index
    %313 = vector.load %arg35[%c0_150, %c0_151] : memref<256x384xbf16, #tpu.memory_space<vmem>>, vector<256x384xbf16>
    %cst_152 = arith.constant dense<0.000000e+00> : vector<8x384xf32>
    %314 = tpu.matmul %312, %313, %cst_152 {dimension_numbers = #tpu.dot_dimension_numbers<[1], [0], [0], [1], [0, 0, 1, 1], [], []>} : vector<8x256xbf16>, vector<256x384xbf16>, vector<8x384xf32> -> vector<8x384xf32>
    %c0_153 = arith.constant 0 : index
    %c0_154 = arith.constant 0 : index
    %315 = vector.load %arg36[%c0_153, %c0_154] : memref<1x384xf32, #tpu.memory_space<vmem>>, vector<1x384xf32>
    %316 = vector.broadcast %315 : vector<1x384xf32> to vector<8x384xf32>
    %317 = arith.addf %314, %316 : vector<8x384xf32>
    %318 = tpu.iota {dimensions = array<i32: 0>} : vector<8x384xi32>
    %c8_i32_155 = arith.constant 8 : i32
    %319 = vector.broadcast %c8_i32_155 : i32 to vector<8x384xi32>
    %320 = arith.cmpi slt, %318, %319 : vector<8x384xi32>
    %cst_156 = arith.constant 0.000000e+00 : f32
    %321 = vector.broadcast %cst_156 : f32 to vector<8x384xf32>
    %322 = arith.select %320, %317, %321 : vector<8x384xi1>, vector<8x384xf32>
    %cst_157 = arith.constant dense<0.000000e+00> : vector<384xf32>
    %323 = vector.multi_reduction <add>, %322, %cst_157 [0] : vector<8x384xf32> to vector<384xf32>
    %324 = vector.shape_cast %323 : vector<384xf32> to vector<1x384xf32>
    %cst_158 = arith.constant 1.250000e-01 : f32
    %325 = vector.broadcast %cst_158 : f32 to vector<1x384xf32>
    %326 = arith.mulf %324, %325 : vector<1x384xf32>
    %327 = vector.broadcast %326 : vector<1x384xf32> to vector<8x384xf32>
    %328 = arith.subf %317, %327 : vector<8x384xf32>
    %cst_159 = arith.constant 0.000000e+00 : f32
    %329 = vector.broadcast %cst_159 : f32 to vector<8x384xf32>
    %330 = arith.select %320, %328, %329 : vector<8x384xi1>, vector<8x384xf32>
    %331 = arith.mulf %330, %330 : vector<8x384xf32>
    %cst_160 = arith.constant dense<0.000000e+00> : vector<384xf32>
    %332 = vector.multi_reduction <add>, %331, %cst_160 [0] : vector<8x384xf32> to vector<384xf32>
    %333 = vector.shape_cast %332 : vector<384xf32> to vector<1x384xf32>
    %cst_161 = arith.constant 1.250000e-01 : f32
    %334 = vector.broadcast %cst_161 : f32 to vector<1x384xf32>
    %335 = arith.mulf %333, %334 : vector<1x384xf32>
    %c0_162 = arith.constant 0 : index
    %c0_163 = arith.constant 0 : index
    %336 = vector.load %arg37[%c0_162, %c0_163] : memref<1x384xf32, #tpu.memory_space<vmem>>, vector<1x384xf32>
    %cst_164 = arith.constant 9.99999974E-6 : f32
    %337 = vector.broadcast %cst_164 : f32 to vector<1x384xf32>
    %338 = arith.addf %335, %337 : vector<1x384xf32>
    %339 = math.rsqrt %338 : vector<1x384xf32>
    %340 = arith.mulf %336, %339 : vector<1x384xf32>
    %341 = vector.broadcast %326 : vector<1x384xf32> to vector<8x384xf32>
    %342 = arith.subf %317, %341 : vector<8x384xf32>
    %343 = vector.broadcast %340 : vector<1x384xf32> to vector<8x384xf32>
    %344 = arith.mulf %342, %343 : vector<8x384xf32>
    %c0_165 = arith.constant 0 : index
    %c0_166 = arith.constant 0 : index
    %345 = vector.load %arg38[%c0_165, %c0_166] : memref<1x384xf32, #tpu.memory_space<vmem>>, vector<1x384xf32>
    %346 = vector.broadcast %345 : vector<1x384xf32> to vector<8x384xf32>
    %347 = arith.addf %344, %346 : vector<8x384xf32>
    %cst_167 = arith.constant 0.000000e+00 : f32
    %348 = vector.broadcast %cst_167 : f32 to vector<8x384xf32>
    %349 = arith.subf %348, %347 : vector<8x384xf32>
    %350 = math.exp %349 : vector<8x384xf32>
    %cst_168 = arith.constant 1.000000e+00 : f32
    %351 = vector.broadcast %cst_168 : f32 to vector<8x384xf32>
    %352 = arith.addf %351, %350 : vector<8x384xf32>
    %cst_169 = arith.constant 1.000000e+00 : f32
    %353 = vector.broadcast %cst_169 : f32 to vector<8x384xf32>
    %354 = arith.divf %353, %352 : vector<8x384xf32>
    %cst_170 = arith.constant 0.000000e+00 : f32
    %355 = vector.broadcast %cst_170 : f32 to vector<8x384xf32>
    %356 = arith.select %320, %354, %355 : vector<8x384xi1>, vector<8x384xf32>
    %c0_171 = arith.constant 0 : index
    %c0_172 = arith.constant 0 : index
    %357 = vector.load %arg39[%c0_171, %c0_172] : memref<8x32xf32, #tpu.memory_space<vmem>>, vector<8x32xf32>
    tpu.vector_store %arg39[%c0_171, %c0_172], %172 {strides = array<i32>} : memref<8x32xf32, #tpu.memory_space<vmem>>, vector<8x32xf32>,
    %c0_173 = arith.constant 0 : index
    %c0_174 = arith.constant 0 : index
    %358 = vector.load %arg40[%c0_173, %c0_174] : memref<8x32xf32, #tpu.memory_space<vmem>>, vector<8x32xf32>
    tpu.vector_store %arg40[%c0_173, %c0_174], %173 {strides = array<i32>} : memref<8x32xf32, #tpu.memory_space<vmem>>, vector<8x32xf32>,
    %c0_175 = arith.constant 0 : index
    %c0_176 = arith.constant 0 : index
    %359 = vector.load %arg41[%c0_175, %c0_176] : memref<8x32xf32, #tpu.memory_space<vmem>>, vector<8x32xf32>
    tpu.vector_store %arg41[%c0_175, %c0_176], %179 {strides = array<i32>} : memref<8x32xf32, #tpu.memory_space<vmem>>, vector<8x32xf32>,
    %c0_177 = arith.constant 0 : index
    %c0_178 = arith.constant 0 : index
    %360 = vector.load %arg42[%c0_177, %c0_178] : memref<8x384xf32, #tpu.memory_space<vmem>>, vector<8x384xf32>
    tpu.vector_store %arg42[%c0_177, %c0_178], %356 {strides = array<i32>} : memref<8x384xf32, #tpu.memory_space<vmem>>, vector<8x384xf32>,
    return
  }
}

</mosaic_0001>

<llo_original>
// kernel: fl_cvae_medical_forward.3
$region0: #{fl_cvae_medical_forward.3}
  #allocation0 [shape = 'u32[]', space=smem, size = 0x4, offset = 0x4, fixed_abs, tag = 'smem constant byte address 0x4 - core index']
  #allocation1 [shape = 'u32[144,128]{1,0:T(1,128)}', space=vmem, size = 0x12000, scoped, tag = 'internal scratch']
  %s0 = inlined_call_operand.smem [shape: u32[43], index: -1, kind: input, shape index: {}]
  %s1 = sld [smem:[%s0]]
  %s2 = scalar_lea.smem %s0, 1
  %s3 = sld [smem:[%s2]]
  %s4 = scalar_lea.smem %s0, 2
  %s5 = sld [smem:[%s4]]
  %s6 = scalar_lea.smem %s0, 3
  %s7 = sld [smem:[%s6]]
  %s8 = scalar_lea.smem %s0, 4
  %s9 = sld [smem:[%s8]]
  %s10 = scalar_lea.smem %s0, 5
  %s11 = sld [smem:[%s10]]
  %s12 = scalar_lea.smem %s0, 6
  %s13 = sld [smem:[%s12]]
  %s14 = scalar_lea.smem %s0, 7
  %s15 = sld [smem:[%s14]]
  %s16 = scalar_lea.smem %s0, 8
  %s17 = sld [smem:[%s16]]
  %s18 = scalar_lea.smem %s0, 9
  %s19 = sld [smem:[%s18]]
  %s20 = scalar_lea.smem %s0, 10
  %s21 = sld [smem:[%s20]]
  %s22 = scalar_lea.smem %s0, 11
  %s23 = sld [smem:[%s22]]
  %s24 = scalar_lea.smem %s0, 12
  %s25 = sld [smem:[%s24]]
  %s26 = scalar_lea.smem %s0, 13
  %s27 = sld [smem:[%s26]]
  %s28 = scalar_lea.smem %s0, 14
  %s29 = sld [smem:[%s28]]
  %s30 = scalar_lea.smem %s0, 15
  %s31 = sld [smem:[%s30]]
  %s32 = scalar_lea.smem %s0, 16
  %s33 = sld [smem:[%s32]]
  %s34 = scalar_lea.smem %s0, 17
  %s35 = sld [smem:[%s34]]
  %s36 = scalar_lea.smem %s0, 18
  %s37 = sld [smem:[%s36]]
  %s38 = scalar_lea.smem %s0, 19
  %s39 = sld [smem:[%s38]]
  %s40 = scalar_lea.smem %s0, 20
  %s41 = sld [smem:[%s40]]
  %s42 = scalar_lea.smem %s0, 21
  %s43 = sld [smem:[%s42]]
  %s44 = scalar_lea.smem %s0, 22
  %s45 = sld [smem:[%s44]]
  %s46 = scalar_lea.smem %s0, 23
  %s47 = sld [smem:[%s46]]
  %s48 = scalar_lea.smem %s0, 24
  %s49 = sld [smem:[%s48]]
  %s50 = scalar_lea.smem %s0, 25
  %s51 = sld [smem:[%s50]]
  %s52 = scalar_lea.smem %s0, 26
  %s53 = sld [smem:[%s52]]
  %s54 = scalar_lea.smem %s0, 27
  %s55 = sld [smem:[%s54]]
  %s56 = scalar_lea.smem %s0, 28
  %s57 = sld [smem:[%s56]]
  %s58 = scalar_lea.smem %s0, 29
  %s59 = sld [smem:[%s58]]
  %s60 = scalar_lea.smem %s0, 30
  %s61 = sld [smem:[%s60]]
  %s62 = scalar_lea.smem %s0, 31
  %s63 = sld [smem:[%s62]]
  %s64 = scalar_lea.smem %s0, 32
  %s65 = sld [smem:[%s64]]
  %s66 = scalar_lea.smem %s0, 33
  %s67 = sld [smem:[%s66]]
  %s68 = scalar_lea.smem %s0, 34
  %s69 = sld [smem:[%s68]]
  %s70 = scalar_lea.smem %s0, 35
  %s71 = sld [smem:[%s70]]
  %s72 = scalar_lea.smem %s0, 36
  %s73 = sld [smem:[%s72]]
  %s74 = scalar_lea.smem %s0, 37
  %s75 = sld [smem:[%s74]]
  %s76 = scalar_lea.smem %s0, 38
  %s77 = sld [smem:[%s76]]
  %s78 = scalar_lea.smem %s0, 39
  %s79 = sld [smem:[%s78]]
  %s80 = scalar_lea.smem %s0, 40
  %s81 = sld [smem:[%s80]]
  %s82 = scalar_lea.smem %s0, 41
  %s83 = sld [smem:[%s82]]
  %s84 = scalar_lea.smem %s0, 42
  %s85 = sld [smem:[%s84]]
  %86 = xla_tuple %s79, %s81, %s83, %s85
  %s87 = sld [smem:[#allocation0]]
  $region298: #{fl_cvae_medical_forward.3} parent=0
    _
  %s89 = ssub.s32 1, %s87
  %s90 = scalar_select 0, %s89, %s87
  $region1: #{fl_cvae_medical_forward.3} parent=0
    #allocation2 [shape = 'u8[196608]{0}', space=vmem, size = 0x30000, scoped, tag = 'input window, operand 3, single buffered']
    #allocation3 [shape = 's32[1]{0}', space=sflag, size = 0x4, scoped, tag = 'scoped memory for fl_cvae_medical_forward.3']
    #allocation4 [shape = 's32[1]{0}', space=sflag, size = 0x4, scoped, tag = 'scoped memory for fl_cvae_medical_forward.3']
    #allocation5 [shape = 'u8[1024]{0}', space=vmem, size = 0x400, scoped, tag = 'input window, operand 6, single buffered']
    #allocation6 [shape = 's32[1]{0}', space=sflag, size = 0x4, scoped, tag = 'scoped memory for fl_cvae_medical_forward.3']
    #allocation7 [shape = 'u8[65536]{0}', space=vmem, size = 0x10000, scoped, tag = 'input window, operand 7, single buffered']
    #allocation8 [shape = 'u8[512]{0}', space=vmem, size = 0x400, scoped, tag = 'input window, operand 9, single buffered']
    #allocation9 [shape = 's32[1]{0}', space=sflag, size = 0x4, scoped, tag = 'scoped memory for fl_cvae_medical_forward.3']
    #allocation10 [shape = 'u8[512]{0}', space=vmem, size = 0x400, scoped, tag = 'input window, operand 10, single buffered']
    #allocation11 [shape = 'u8[512]{0}', space=vmem, size = 0x400, scoped, tag = 'input window, operand 12, single buffered']
    #allocation12 [shape = 's32[1]{0}', space=sflag, size = 0x4, scoped, tag = 'scoped memory for fl_cvae_medical_forward.3']
    #allocation13 [shape = 'u8[512]{0}', space=vmem, size = 0x400, scoped, tag = 'input window, operand 13, single buffered']
    #allocation14 [shape = 'u8[512]{0}', space=vmem, size = 0x400, scoped, tag = 'input window, operand 14, single buffered']
    #allocation15 [shape = 's32[1]{0}', space=sflag, size = 0x4, scoped, tag = 'scoped memory for fl_cvae_medical_forward.3']
    #allocation16 [shape = 'u8[32768]{0}', space=vmem, size = 0x8000, scoped, tag = 'input window, operand 15, single buffered']
    #allocation17 [shape = 'u8[512]{0}', space=vmem, size = 0x400, scoped, tag = 'input window, operand 16, single buffered']
    #allocation18 [shape = 's32[1]{0}', space=sflag, size = 0x4, scoped, tag = 'scoped memory for fl_cvae_medical_forward.3']
    #allocation19 [shape = 'u8[512]{0}', space=vmem, size = 0x400, scoped, tag = 'input window, operand 17, single buffered']
    #allocation20 [shape = 'u8[512]{0}', space=vmem, size = 0x400, scoped, tag = 'input window, operand 18, single buffered']
    #allocation21 [shape = 's32[1]{0}', space=sflag, size = 0x4, scoped, tag = 'scoped memory for fl_cvae_medical_forward.3']
    #allocation22 [shape = 'u8[32768]{0}', space=vmem, size = 0x8000, scoped, tag = 'input window, operand 19, single buffered']
    #allocation23 [shape = 'u8[512]{0}', space=vmem, size = 0x400, scoped, tag = 'input window, operand 20, single buffered']
    #allocation24 [shape = 's32[1]{0}', space=sflag, size = 0x4, scoped, tag = 'scoped memory for fl_cvae_medical_forward.3']
    #allocation25 [shape = 'u8[512]{0}', space=vmem, size = 0x400, scoped, tag = 'input window, operand 22, single buffered']
    #allocation26 [shape = 'u8[32768]{0}', space=vmem, size = 0x8000, scoped, tag = 'input window, operand 23, single buffered']
    #allocation27 [shape = 's32[1]{0}', space=sflag, size = 0x4, scoped, tag = 'scoped memory for fl_cvae_medical_forward.3']
    #allocation28 [shape = 'u8[512]{0}', space=vmem, size = 0x400, scoped, tag = 'input window, operand 24, single buffered']
    #allocation29 [shape = 'u8[512]{0}', space=vmem, size = 0x400, scoped, tag = 'input window, operand 25, single buffered']
    #allocation30 [shape = 's32[1]{0}', space=sflag, size = 0x4, scoped, tag = 'scoped memory for fl_cvae_medical_forward.3']
    #allocation31 [shape = 'u8[512]{0}', space=vmem, size = 0x400, scoped, tag = 'input window, operand 26, single buffered']
    #allocation32 [shape = 'u8[32768]{0}', space=vmem, size = 0x8000, scoped, tag = 'input window, operand 27, single buffered']
    #allocation33 [shape = 's32[1]{0}', space=sflag, size = 0x4, scoped, tag = 'scoped memory for fl_cvae_medical_forward.3']
    #allocation34 [shape = 'u8[512]{0}', space=vmem, size = 0x400, scoped, tag = 'input window, operand 28, single buffered']
    #allocation35 [shape = 'u8[512]{0}', space=vmem, size = 0x400, scoped, tag = 'input window, operand 29, single buffered']
    #allocation36 [shape = 's32[1]{0}', space=sflag, size = 0x4, scoped, tag = 'scoped memory for fl_cvae_medical_forward.3']
    #allocation37 [shape = 'u8[512]{0}', space=vmem, size = 0x400, scoped, tag = 'input window, operand 30, single buffered']
    #allocation38 [shape = 'u8[65536]{0}', space=vmem, size = 0x10000, scoped, tag = 'input window, operand 31, single buffered']
    #allocation39 [shape = 's32[1]{0}', space=sflag, size = 0x4, scoped, tag = 'scoped memory for fl_cvae_medical_forward.3']
    #allocation40 [shape = 'u8[1024]{0}', space=vmem, size = 0x400, scoped, tag = 'input window, operand 32, single buffered']
    #allocation41 [shape = 'u8[1024]{0}', space=vmem, size = 0x400, scoped, tag = 'input window, operand 33, single buffered']
    #allocation42 [shape = 's32[1]{0}', space=sflag, size = 0x4, scoped, tag = 'scoped memory for fl_cvae_medical_forward.3']
    #allocation43 [shape = 'u8[1024]{0}', space=vmem, size = 0x400, scoped, tag = 'input window, operand 34, single buffered']
    #allocation44 [shape = 'u8[4096]{0}', space=vmem, size = 0x1000, scoped, tag = 'output window, operand 0, single buffered']
    #allocation45 [shape = 'u8[4096]{0}', space=vmem, size = 0x1000, scoped, tag = 'output window, operand 1, single buffered']
    #allocation46 [shape = 's32[1]{0}', space=sflag, size = 0x4, scoped, tag = 'scoped memory for fl_cvae_medical_forward.3']
    #allocation47 [shape = 'u8[4096]{0}', space=vmem, size = 0x1000, scoped, tag = 'output window, operand 2, single buffered']
    %91 = vsyncpa [#allocation3], 0
    %92 = vsyncpa [#allocation6], 0
    %93 = vsyncpa [#allocation9], 0
    %94 = vsyncpa [#allocation12], 0
    %95 = vsyncpa [#allocation15], 0
    %96 = vsyncpa [#allocation18], 0
    %97 = vsyncpa [#allocation21], 0
    %98 = vsyncpa [#allocation24], 0
    %99 = vsyncpa [#allocation27], 0
    %100 = vsyncpa [#allocation30], 0
    %101 = vsyncpa [#allocation33], 0
    %102 = vsyncpa [#allocation36], 0
    %103 = vsyncpa [#allocation39], 0
    %104 = vsyncpa [#allocation42], 0
    %105 = vsyncpa [#allocation4], 0
    %106 = vsyncpa [#allocation46], 0
    // Predicated region
    $region2: #{fl_cvae_medical_forward.3} parent=1 // pred_check
      _
    $region3: #{fl_cvae_medical_forward.3} parent=1 // pred_check_branch
      %108 = sbr.rel (0) target = $region5
    $region4: #{fl_cvae_medical_forward.3} parent=1 // pred_region
      _
    $region5: #{fl_cvae_medical_forward.3} parent=1 // pred_fallthru
      _
    // Predicated region
    $region6: #{fl_cvae_medical_forward.3} parent=1 // pred_check
      _
    $region7: #{fl_cvae_medical_forward.3} parent=1 // pred_check_branch
      %110 = sbr.rel (0) target = $region9
    $region8: #{fl_cvae_medical_forward.3} parent=1 // pred_region
      _
    $region9: #{fl_cvae_medical_forward.3} parent=1 // pred_fallthru
      _
    // Predicated region
    $region10: #{fl_cvae_medical_forward.3} parent=1 // pred_check
      _
    $region11: #{fl_cvae_medical_forward.3} parent=1 // pred_check_branch
      %112 = sbr.rel (0) target = $region13
    $region12: #{fl_cvae_medical_forward.3} parent=1 // pred_region
      _
    $region13: #{fl_cvae_medical_forward.3} parent=1 // pred_fallthru
      _
    // Predicated region
    $region14: #{fl_cvae_medical_forward.3} parent=1 // pred_check
      _
    $region15: #{fl_cvae_medical_forward.3} parent=1 // pred_check_branch
      %114 = sbr.rel (0) target = $region17
    $region16: #{fl_cvae_medical_forward.3} parent=1 // pred_region
      %s116 = ssub.s32 6144, 6144
      %117 = vsyncadd [#allocation3], %s116
      %s118 = sshll.u32 [#allocation2], 4
      %s119 = int_to_ptr.vmem [resolvable:$true] %s118
      %124 = dma.hbm_to_vmem [thread:$0]  %s7, 6144, %s119, [#allocation3], 128, 128, 8
    $region17: #{fl_cvae_medical_forward.3} parent=1 // pred_fallthru
      _
    // Predicated region
    $region18: #{fl_cvae_medical_forward.3} parent=1 // pred_check
      _
    $region19: #{fl_cvae_medical_forward.3} parent=1 // pred_check_branch
      %126 = sbr.rel (0) target = $region21
    $region20: #{fl_cvae_medical_forward.3} parent=1 // pred_region
      _
    $region21: #{fl_cvae_medical_forward.3} parent=1 // pred_fallthru
      _
    // Predicated region
    $region22: #{fl_cvae_medical_forward.3} parent=1 // pred_check
      _
    $region23: #{fl_cvae_medical_forward.3} parent=1 // pred_check_branch
      %128 = sbr.rel (0) target = $region25
    $region24: #{fl_cvae_medical_forward.3} parent=1 // pred_region
      _
    $region25: #{fl_cvae_medical_forward.3} parent=1 // pred_fallthru
      _
    // Predicated region
    $region26: #{fl_cvae_medical_forward.3} parent=1 // pred_check
      _
    $region27: #{fl_cvae_medical_forward.3} parent=1 // pred_check_branch
      %130 = sbr.rel (0) target = $region29
    $region28: #{fl_cvae_medical_forward.3} parent=1 // pred_region
      %s132 = ssub.s32 32, 32
      %133 = vsyncadd [#allocation6], %s132
      %s135 = sshll.u32 [#allocation5], 4
      %s136 = int_to_ptr.vmem [resolvable:$true] %s135
      %138 = dma.hbm_to_vmem [thread:$0]  %s13, 32, %s136, [#allocation6]
    $region29: #{fl_cvae_medical_forward.3} parent=1 // pred_fallthru
      _
    // Predicated region
    $region30: #{fl_cvae_medical_forward.3} parent=1 // pred_check
      _
    $region31: #{fl_cvae_medical_forward.3} parent=1 // pred_check_branch
      %140 = sbr.rel (0) target = $region33
    $region32: #{fl_cvae_medical_forward.3} parent=1 // pred_region
      %s142 = ssub.s32 2048, 2048
      %143 = vsyncadd [#allocation6], %s142
      %s144 = sshll.u32 [#allocation7], 4
      %s145 = int_to_ptr.vmem [resolvable:$true] %s144
      %150 = dma.hbm_to_vmem [thread:$0]  %s15, 2048, %s145, [#allocation6], 64, 64, 4
    $region33: #{fl_cvae_medical_forward.3} parent=1 // pred_fallthru
      _
    // Predicated region
    $region34: #{fl_cvae_medical_forward.3} parent=1 // pred_check
      _
    $region35: #{fl_cvae_medical_forward.3} parent=1 // pred_check_branch
      %152 = sbr.rel (0) target = $region37
    $region36: #{fl_cvae_medical_forward.3} parent=1 // pred_region
      _
    $region37: #{fl_cvae_medical_forward.3} parent=1 // pred_fallthru
      _
    // Predicated region
    $region38: #{fl_cvae_medical_forward.3} parent=1 // pred_check
      _
    $region39: #{fl_cvae_medical_forward.3} parent=1 // pred_check_branch
      %154 = sbr.rel (0) target = $region41
    $region40: #{fl_cvae_medical_forward.3} parent=1 // pred_region
      %s156 = ssub.s32 16, 16
      %157 = vsyncadd [#allocation9], %s156
      %s159 = sshll.u32 [#allocation8], 4
      %s160 = int_to_ptr.vmem [resolvable:$true] %s159
      %162 = dma.hbm_to_vmem [thread:$0]  %s19, 16, %s160, [#allocation9]
    $region41: #{fl_cvae_medical_forward.3} parent=1 // pred_fallthru
      _
    // Predicated region
    $region42: #{fl_cvae_medical_forward.3} parent=1 // pred_check
      _
    $region43: #{fl_cvae_medical_forward.3} parent=1 // pred_check_branch
      %164 = sbr.rel (0) target = $region45
    $region44: #{fl_cvae_medical_forward.3} parent=1 // pred_region
      %s166 = ssub.s32 16, 16
      %167 = vsyncadd [#allocation9], %s166
      %s169 = sshll.u32 [#allocation10], 4
      %s170 = int_to_ptr.vmem [resolvable:$true] %s169
      %172 = dma.hbm_to_vmem [thread:$0]  %s21, 16, %s170, [#allocation9]
    $region45: #{fl_cvae_medical_forward.3} parent=1 // pred_fallthru
      _
    // Predicated region
    $region46: #{fl_cvae_medical_forward.3} parent=1 // pred_check
      _
    $region47: #{fl_cvae_medical_forward.3} parent=1 // pred_check_branch
      %174 = sbr.rel (0) target = $region49
    $region48: #{fl_cvae_medical_forward.3} parent=1 // pred_region
      _
    $region49: #{fl_cvae_medical_forward.3} parent=1 // pred_fallthru
      _
    // Predicated region
    $region50: #{fl_cvae_medical_forward.3} parent=1 // pred_check
      _
    $region51: #{fl_cvae_medical_forward.3} parent=1 // pred_check_branch
      %176 = sbr.rel (0) target = $region53
    $region52: #{fl_cvae_medical_forward.3} parent=1 // pred_region
      %s178 = ssub.s32 16, 16
      %179 = vsyncadd [#allocation12], %s178
      %s181 = sshll.u32 [#allocation11], 4
      %s182 = int_to_ptr.vmem [resolvable:$true] %s181
      %184 = dma.hbm_to_vmem [thread:$0]  %s25, 16, %s182, [#allocation12]
    $region53: #{fl_cvae_medical_forward.3} parent=1 // pred_fallthru
      _
    // Predicated region
    $region54: #{fl_cvae_medical_forward.3} parent=1 // pred_check
      _
    $region55: #{fl_cvae_medical_forward.3} parent=1 // pred_check_branch
      %186 = sbr.rel (0) target = $region57
    $region56: #{fl_cvae_medical_forward.3} parent=1 // pred_region
      %s188 = ssub.s32 16, 16
      %189 = vsyncadd [#allocation12], %s188
      %s191 = sshll.u32 [#allocation13], 4
      %s192 = int_to_ptr.vmem [resolvable:$true] %s191
      %194 = dma.hbm_to_vmem [thread:$0]  %s27, 16, %s192, [#allocation12]
    $region57: #{fl_cvae_medical_forward.3} parent=1 // pred_fallthru
      _
    // Predicated region
    $region58: #{fl_cvae_medical_forward.3} parent=1 // pred_check
      _
    $region59: #{fl_cvae_medical_forward.3} parent=1 // pred_check_branch
      %196 = sbr.rel (0) target = $region61
    $region60: #{fl_cvae_medical_forward.3} parent=1 // pred_region
      %s198 = ssub.s32 16, 16
      %199 = vsyncadd [#allocation15], %s198
      %s201 = sshll.u32 [#allocation14], 4
      %s202 = int_to_ptr.vmem [resolvable:$true] %s201
      %204 = dma.hbm_to_vmem [thread:$0]  %s29, 16, %s202, [#allocation15]
    $region61: #{fl_cvae_medical_forward.3} parent=1 // pred_fallthru
      _
    // Predicated region
    $region62: #{fl_cvae_medical_forward.3} parent=1 // pred_check
      _
    $region63: #{fl_cvae_medical_forward.3} parent=1 // pred_check_branch
      %206 = sbr.rel (0) target = $region65
    $region64: #{fl_cvae_medical_forward.3} parent=1 // pred_region
      %s208 = ssub.s32 1024, 1024
      %209 = vsyncadd [#allocation15], %s208
      %s210 = sshll.u32 [#allocation16], 4
      %s211 = int_to_ptr.vmem [resolvable:$true] %s210
      %216 = dma.hbm_to_vmem [thread:$0]  %s31, 1024, %s211, [#allocation15], 64, 64, 4
    $region65: #{fl_cvae_medical_forward.3} parent=1 // pred_fallthru
      _
    // Predicated region
    $region66: #{fl_cvae_medical_forward.3} parent=1 // pred_check
      _
    $region67: #{fl_cvae_medical_forward.3} parent=1 // pred_check_branch
      %218 = sbr.rel (0) target = $region69
    $region68: #{fl_cvae_medical_forward.3} parent=1 // pred_region
      %s220 = ssub.s32 16, 16
      %221 = vsyncadd [#allocation18], %s220
      %s223 = sshll.u32 [#allocation17], 4
      %s224 = int_to_ptr.vmem [resolvable:$true] %s223
      %226 = dma.hbm_to_vmem [thread:$0]  %s33, 16, %s224, [#allocation18]
    $region69: #{fl_cvae_medical_forward.3} parent=1 // pred_fallthru
      _
    // Predicated region
    $region70: #{fl_cvae_medical_forward.3} parent=1 // pred_check
      _
    $region71: #{fl_cvae_medical_forward.3} parent=1 // pred_check_branch
      %228 = sbr.rel (0) target = $region73
    $region72: #{fl_cvae_medical_forward.3} parent=1 // pred_region
      %s230 = ssub.s32 16, 16
      %231 = vsyncadd [#allocation18], %s230
      %s233 = sshll.u32 [#allocation19], 4
      %s234 = int_to_ptr.vmem [resolvable:$true] %s233
      %236 = dma.hbm_to_vmem [thread:$0]  %s35, 16, %s234, [#allocation18]
    $region73: #{fl_cvae_medical_forward.3} parent=1 // pred_fallthru
      _
    // Predicated region
    $region74: #{fl_cvae_medical_forward.3} parent=1 // pred_check
      _
    $region75: #{fl_cvae_medical_forward.3} parent=1 // pred_check_branch
      %238 = sbr.rel (0) target = $region77
    $region76: #{fl_cvae_medical_forward.3} parent=1 // pred_region
      %s240 = ssub.s32 16, 16
      %241 = vsyncadd [#allocation21], %s240
      %s243 = sshll.u32 [#allocation20], 4
      %s244 = int_to_ptr.vmem [resolvable:$true] %s243
      %246 = dma.hbm_to_vmem [thread:$0]  %s37, 16, %s244, [#allocation21]
    $region77: #{fl_cvae_medical_forward.3} parent=1 // pred_fallthru
      _
    // Predicated region
    $region78: #{fl_cvae_medical_forward.3} parent=1 // pred_check
      _
    $region79: #{fl_cvae_medical_forward.3} parent=1 // pred_check_branch
      %248 = sbr.rel (0) target = $region81
    $region80: #{fl_cvae_medical_forward.3} parent=1 // pred_region
      %s250 = ssub.s32 1024, 1024
      %251 = vsyncadd [#allocation21], %s250
      %s252 = sshll.u32 [#allocation22], 4
      %s253 = int_to_ptr.vmem [resolvable:$true] %s252
      %258 = dma.hbm_to_vmem [thread:$0]  %s39, 1024, %s253, [#allocation21], 64, 64, 4
    $region81: #{fl_cvae_medical_forward.3} parent=1 // pred_fallthru
      _
    // Predicated region
    $region82: #{fl_cvae_medical_forward.3} parent=1 // pred_check
      _
    $region83: #{fl_cvae_medical_forward.3} parent=1 // pred_check_branch
      %260 = sbr.rel (0) target = $region85
    $region84: #{fl_cvae_medical_forward.3} parent=1 // pred_region
      %s262 = ssub.s32 16, 16
      %263 = vsyncadd [#allocation24], %s262
      %s265 = sshll.u32 [#allocation23], 4
      %s266 = int_to_ptr.vmem [resolvable:$true] %s265
      %268 = dma.hbm_to_vmem [thread:$0]  %s41, 16, %s266, [#allocation24]
    $region85: #{fl_cvae_medical_forward.3} parent=1 // pred_fallthru
      _
    // Predicated region
    $region86: #{fl_cvae_medical_forward.3} parent=1 // pred_check
      _
    $region87: #{fl_cvae_medical_forward.3} parent=1 // pred_check_branch
      %270 = sbr.rel (0) target = $region89
    $region88: #{fl_cvae_medical_forward.3} parent=1 // pred_region
      _
    $region89: #{fl_cvae_medical_forward.3} parent=1 // pred_fallthru
      _
    // Predicated region
    $region90: #{fl_cvae_medical_forward.3} parent=1 // pred_check
      _
    $region91: #{fl_cvae_medical_forward.3} parent=1 // pred_check_branch
      %272 = sbr.rel (0) target = $region93
    $region92: #{fl_cvae_medical_forward.3} parent=1 // pred_region
      %s274 = ssub.s32 16, 16
      %275 = vsyncadd [#allocation24], %s274
      %s277 = sshll.u32 [#allocation25], 4
      %s278 = int_to_ptr.vmem [resolvable:$true] %s277
      %280 = dma.hbm_to_vmem [thread:$0]  %s45, 16, %s278, [#allocation24]
    $region93: #{fl_cvae_medical_forward.3} parent=1 // pred_fallthru
      _
    // Predicated region
    $region94: #{fl_cvae_medical_forward.3} parent=1 // pred_check
      _
    $region95: #{fl_cvae_medical_forward.3} parent=1 // pred_check_branch
      %282 = sbr.rel (0) target = $region97
    $region96: #{fl_cvae_medical_forward.3} parent=1 // pred_region
      %s284 = ssub.s32 1024, 1024
      %285 = vsyncadd [#allocation27], %s284
      %s286 = sshll.u32 [#allocation26], 4
      %s287 = int_to_ptr.vmem [resolvable:$true] %s286
      %292 = dma.hbm_to_vmem [thread:$0]  %s47, 1024, %s287, [#allocation27], 64, 64, 4
    $region97: #{fl_cvae_medical_forward.3} parent=1 // pred_fallthru
      _
    // Predicated region
    $region98: #{fl_cvae_medical_forward.3} parent=1 // pred_check
      _
    $region99: #{fl_cvae_medical_forward.3} parent=1 // pred_check_branch
      %294 = sbr.rel (0) target = $region101
    $region100: #{fl_cvae_medical_forward.3} parent=1 // pred_region
      %s296 = ssub.s32 16, 16
      %297 = vsyncadd [#allocation27], %s296
      %s299 = sshll.u32 [#allocation28], 4
      %s300 = int_to_ptr.vmem [resolvable:$true] %s299
      %302 = dma.hbm_to_vmem [thread:$0]  %s49, 16, %s300, [#allocation27]
    $region101: #{fl_cvae_medical_forward.3} parent=1 // pred_fallthru
      _
    // Predicated region
    $region102: #{fl_cvae_medical_forward.3} parent=1 // pred_check
      _
    $region103: #{fl_cvae_medical_forward.3} parent=1 // pred_check_branch
      %304 = sbr.rel (0) target = $region105
    $region104: #{fl_cvae_medical_forward.3} parent=1 // pred_region
      %s306 = ssub.s32 16, 16
      %307 = vsyncadd [#allocation30], %s306
      %s309 = sshll.u32 [#allocation29], 4
      %s310 = int_to_ptr.vmem [resolvable:$true] %s309
      %312 = dma.hbm_to_vmem [thread:$0]  %s51, 16, %s310, [#allocation30]
    $region105: #{fl_cvae_medical_forward.3} parent=1 // pred_fallthru
      _
    // Predicated region
    $region106: #{fl_cvae_medical_forward.3} parent=1 // pred_check
      _
    $region107: #{fl_cvae_medical_forward.3} parent=1 // pred_check_branch
      %314 = sbr.rel (0) target = $region109
    $region108: #{fl_cvae_medical_forward.3} parent=1 // pred_region
      %s316 = ssub.s32 16, 16
      %317 = vsyncadd [#allocation30], %s316
      %s319 = sshll.u32 [#allocation31], 4
      %s320 = int_to_ptr.vmem [resolvable:$true] %s319
      %322 = dma.hbm_to_vmem [thread:$0]  %s53, 16, %s320, [#allocation30]
    $region109: #{fl_cvae_medical_forward.3} parent=1 // pred_fallthru
      _
    // Predicated region
    $region110: #{fl_cvae_medical_forward.3} parent=1 // pred_check
      _
    $region111: #{fl_cvae_medical_forward.3} parent=1 // pred_check_branch
      %324 = sbr.rel (0) target = $region113
    $region112: #{fl_cvae_medical_forward.3} parent=1 // pred_region
      %s326 = ssub.s32 1024, 1024
      %327 = vsyncadd [#allocation33], %s326
      %s328 = sshll.u32 [#allocation32], 4
      %s329 = int_to_ptr.vmem [resolvable:$true] %s328
      %334 = dma.hbm_to_vmem [thread:$0]  %s55, 1024, %s329, [#allocation33], 64, 64, 4
    $region113: #{fl_cvae_medical_forward.3} parent=1 // pred_fallthru
      _
    // Predicated region
    $region114: #{fl_cvae_medical_forward.3} parent=1 // pred_check
      _
    $region115: #{fl_cvae_medical_forward.3} parent=1 // pred_check_branch
      %336 = sbr.rel (0) target = $region117
    $region116: #{fl_cvae_medical_forward.3} parent=1 // pred_region
      %s338 = ssub.s32 16, 16
      %339 = vsyncadd [#allocation33], %s338
      %s341 = sshll.u32 [#allocation34], 4
      %s342 = int_to_ptr.vmem [resolvable:$true] %s341
      %344 = dma.hbm_to_vmem [thread:$0]  %s57, 16, %s342, [#allocation33]
    $region117: #{fl_cvae_medical_forward.3} parent=1 // pred_fallthru
      _
    // Predicated region
    $region118: #{fl_cvae_medical_forward.3} parent=1 // pred_check
      _
    $region119: #{fl_cvae_medical_forward.3} parent=1 // pred_check_branch
      %346 = sbr.rel (0) target = $region121
    $region120: #{fl_cvae_medical_forward.3} parent=1 // pred_region
      %s348 = ssub.s32 16, 16
      %349 = vsyncadd [#allocation36], %s348
      %s351 = sshll.u32 [#allocation35], 4
      %s352 = int_to_ptr.vmem [resolvable:$true] %s351
      %354 = dma.hbm_to_vmem [thread:$0]  %s59, 16, %s352, [#allocation36]
    $region121: #{fl_cvae_medical_forward.3} parent=1 // pred_fallthru
      _
    // Predicated region
    $region122: #{fl_cvae_medical_forward.3} parent=1 // pred_check
      _
    $region123: #{fl_cvae_medical_forward.3} parent=1 // pred_check_branch
      %356 = sbr.rel (0) target = $region125
    $region124: #{fl_cvae_medical_forward.3} parent=1 // pred_region
      %s358 = ssub.s32 16, 16
      %359 = vsyncadd [#allocation36], %s358
      %s361 = sshll.u32 [#allocation37], 4
      %s362 = int_to_ptr.vmem [resolvable:$true] %s361
      %364 = dma.hbm_to_vmem [thread:$0]  %s61, 16, %s362, [#allocation36]
    $region125: #{fl_cvae_medical_forward.3} parent=1 // pred_fallthru
      _
    // Predicated region
    $region126: #{fl_cvae_medical_forward.3} parent=1 // pred_check
      _
    $region127: #{fl_cvae_medical_forward.3} parent=1 // pred_check_branch
      %366 = sbr.rel (0) target = $region129
    $region128: #{fl_cvae_medical_forward.3} parent=1 // pred_region
      %s368 = ssub.s32 2048, 2048
      %369 = vsyncadd [#allocation39], %s368
      %s370 = sshll.u32 [#allocation38], 4
      %s371 = int_to_ptr.vmem [resolvable:$true] %s370
      %376 = dma.hbm_to_vmem [thread:$0]  %s63, 2048, %s371, [#allocation39], 128, 128, 8
    $region129: #{fl_cvae_medical_forward.3} parent=1 // pred_fallthru
      _
    // Predicated region
    $region130: #{fl_cvae_medical_forward.3} parent=1 // pred_check
      _
    $region131: #{fl_cvae_medical_forward.3} parent=1 // pred_check_branch
      %378 = sbr.rel (0) target = $region133
    $region132: #{fl_cvae_medical_forward.3} parent=1 // pred_region
      %s380 = ssub.s32 32, 32
      %381 = vsyncadd [#allocation39], %s380
      %s383 = sshll.u32 [#allocation40], 4
      %s384 = int_to_ptr.vmem [resolvable:$true] %s383
      %386 = dma.hbm_to_vmem [thread:$0]  %s65, 32, %s384, [#allocation39]
    $region133: #{fl_cvae_medical_forward.3} parent=1 // pred_fallthru
      _
    // Predicated region
    $region134: #{fl_cvae_medical_forward.3} parent=1 // pred_check
      _
    $region135: #{fl_cvae_medical_forward.3} parent=1 // pred_check_branch
      %388 = sbr.rel (0) target = $region137
    $region136: #{fl_cvae_medical_forward.3} parent=1 // pred_region
      %s390 = ssub.s32 32, 32
      %391 = vsyncadd [#allocation42], %s390
      %s393 = sshll.u32 [#allocation41], 4
      %s394 = int_to_ptr.vmem [resolvable:$true] %s393
      %396 = dma.hbm_to_vmem [thread:$0]  %s67, 32, %s394, [#allocation42]
    $region137: #{fl_cvae_medical_forward.3} parent=1 // pred_fallthru
      _
    // Predicated region
    $region138: #{fl_cvae_medical_forward.3} parent=1 // pred_check
      _
    $region139: #{fl_cvae_medical_forward.3} parent=1 // pred_check_branch
      %398 = sbr.rel (0) target = $region141
    $region140: #{fl_cvae_medical_forward.3} parent=1 // pred_region
      %s400 = ssub.s32 32, 32
      %401 = vsyncadd [#allocation42], %s400
      %s403 = sshll.u32 [#allocation43], 4
      %s404 = int_to_ptr.vmem [resolvable:$true] %s403
      %406 = dma.hbm_to_vmem [thread:$0]  %s69, 32, %s404, [#allocation42]
    $region141: #{fl_cvae_medical_forward.3} parent=1 // pred_fallthru
      _
    // Predicated region
    $region142: #{fl_cvae_medical_forward.3} parent=1 // pred_check
      _
    $region143: #{fl_cvae_medical_forward.3} parent=1 // pred_check_branch
      %408 = sbr.rel (0) target = $region145
    $region144: #{fl_cvae_medical_forward.3} parent=1 // pred_region
      _
    $region145: #{fl_cvae_medical_forward.3} parent=1 // pred_fallthru
      _
    // Predicated region
    $region146: #{fl_cvae_medical_forward.3} parent=1 // pred_check
      _
    $region147: #{fl_cvae_medical_forward.3} parent=1 // pred_check_branch
      %410 = sbr.rel (0) target = $region149
    $region148: #{fl_cvae_medical_forward.3} parent=1 // pred_region
      _
    $region149: #{fl_cvae_medical_forward.3} parent=1 // pred_fallthru
      _
    // Predicated region
    $region150: #{fl_cvae_medical_forward.3} parent=1 // pred_check
      _
    $region151: #{fl_cvae_medical_forward.3} parent=1 // pred_check_branch
      %412 = sbr.rel (0) target = $region153
    $region152: #{fl_cvae_medical_forward.3} parent=1 // pred_region
      _
    $region153: #{fl_cvae_medical_forward.3} parent=1 // pred_fallthru
      _
    // Predicated region
    $region154: #{fl_cvae_medical_forward.3} parent=1 // pred_check
      _
    $region155: #{fl_cvae_medical_forward.3} parent=1 // pred_check_branch
      %414 = sbr.rel (0) target = $region157
    $region156: #{fl_cvae_medical_forward.3} parent=1 // pred_region
      _
    $region157: #{fl_cvae_medical_forward.3} parent=1 // pred_fallthru
      _
    // Predicated region
    $region158: #{fl_cvae_medical_forward.3} parent=1 // pred_check
      _
    $region159: #{fl_cvae_medical_forward.3} parent=1 // pred_check_branch
      %416 = sbr.rel (0) target = $region161
    $region160: #{fl_cvae_medical_forward.3} parent=1 // pred_region
      %417 = dma.done [#allocation3], 6144
    $region161: #{fl_cvae_medical_forward.3} parent=1 // pred_fallthru
      _
    // Predicated region
    $region162: #{fl_cvae_medical_forward.3} parent=1 // pred_check
      _
    $region163: #{fl_cvae_medical_forward.3} parent=1 // pred_check_branch
      %419 = sbr.rel (0) target = $region165
    $region164: #{fl_cvae_medical_forward.3} parent=1 // pred_region
      %420 = dma.done [#allocation6], 32
    $region165: #{fl_cvae_medical_forward.3} parent=1 // pred_fallthru
      _
    // Predicated region
    $region166: #{fl_cvae_medical_forward.3} parent=1 // pred_check
      _
    $region167: #{fl_cvae_medical_forward.3} parent=1 // pred_check_branch
      %422 = sbr.rel (0) target = $region169
    $region168: #{fl_cvae_medical_forward.3} parent=1 // pred_region
      %423 = dma.done [#allocation6], 2048
    $region169: #{fl_cvae_medical_forward.3} parent=1 // pred_fallthru
      _
    // Predicated region
    $region170: #{fl_cvae_medical_forward.3} parent=1 // pred_check
      _
    $region171: #{fl_cvae_medical_forward.3} parent=1 // pred_check_branch
      %425 = sbr.rel (0) target = $region173
    $region172: #{fl_cvae_medical_forward.3} parent=1 // pred_region
      %426 = dma.done [#allocation9], 16
    $region173: #{fl_cvae_medical_forward.3} parent=1 // pred_fallthru
      _
    // Predicated region
    $region174: #{fl_cvae_medical_forward.3} parent=1 // pred_check
      _
    $region175: #{fl_cvae_medical_forward.3} parent=1 // pred_check_branch
      %428 = sbr.rel (0) target = $region177
    $region176: #{fl_cvae_medical_forward.3} parent=1 // pred_region
      %429 = dma.done [#allocation9], 16
    $region177: #{fl_cvae_medical_forward.3} parent=1 // pred_fallthru
      _
    // Predicated region
    $region178: #{fl_cvae_medical_forward.3} parent=1 // pred_check
      _
    $region179: #{fl_cvae_medical_forward.3} parent=1 // pred_check_branch
      %431 = sbr.rel (0) target = $region181
    $region180: #{fl_cvae_medical_forward.3} parent=1 // pred_region
      %432 = dma.done [#allocation12], 16
    $region181: #{fl_cvae_medical_forward.3} parent=1 // pred_fallthru
      _
    // Predicated region
    $region182: #{fl_cvae_medical_forward.3} parent=1 // pred_check
      _
    $region183: #{fl_cvae_medical_forward.3} parent=1 // pred_check_branch
      %434 = sbr.rel (0) target = $region185
    $region184: #{fl_cvae_medical_forward.3} parent=1 // pred_region
      %435 = dma.done [#allocation12], 16
    $region185: #{fl_cvae_medical_forward.3} parent=1 // pred_fallthru
      _
    // Predicated region
    $region186: #{fl_cvae_medical_forward.3} parent=1 // pred_check
      _
    $region187: #{fl_cvae_medical_forward.3} parent=1 // pred_check_branch
      %437 = sbr.rel (0) target = $region189
    $region188: #{fl_cvae_medical_forward.3} parent=1 // pred_region
      %438 = dma.done [#allocation15], 16
    $region189: #{fl_cvae_medical_forward.3} parent=1 // pred_fallthru
      _
    // Predicated region
    $region190: #{fl_cvae_medical_forward.3} parent=1 // pred_check
      _
    $region191: #{fl_cvae_medical_forward.3} parent=1 // pred_check_branch
      %440 = sbr.rel (0) target = $region193
    $region192: #{fl_cvae_medical_forward.3} parent=1 // pred_region
      %441 = dma.done [#allocation15], 1024
    $region193: #{fl_cvae_medical_forward.3} parent=1 // pred_fallthru
      _
    // Predicated region
    $region194: #{fl_cvae_medical_forward.3} parent=1 // pred_check
      _
    $region195: #{fl_cvae_medical_forward.3} parent=1 // pred_check_branch
      %443 = sbr.rel (0) target = $region197
    $region196: #{fl_cvae_medical_forward.3} parent=1 // pred_region
      %444 = dma.done [#allocation18], 16
    $region197: #{fl_cvae_medical_forward.3} parent=1 // pred_fallthru
      _
    // Predicated region
    $region198: #{fl_cvae_medical_forward.3} parent=1 // pred_check
      _
    $region199: #{fl_cvae_medical_forward.3} parent=1 // pred_check_branch
      %446 = sbr.rel (0) target = $region201
    $region200: #{fl_cvae_medical_forward.3} parent=1 // pred_region
      %447 = dma.done [#allocation18], 16
    $region201: #{fl_cvae_medical_forward.3} parent=1 // pred_fallthru
      _
    // Predicated region
    $region202: #{fl_cvae_medical_forward.3} parent=1 // pred_check
      _
    $region203: #{fl_cvae_medical_forward.3} parent=1 // pred_check_branch
      %449 = sbr.rel (0) target = $region205
    $region204: #{fl_cvae_medical_forward.3} parent=1 // pred_region
      %450 = dma.done [#allocation21], 16
    $region205: #{fl_cvae_medical_forward.3} parent=1 // pred_fallthru
      _
    // Predicated region
    $region206: #{fl_cvae_medical_forward.3} parent=1 // pred_check
      _
    $region207: #{fl_cvae_medical_forward.3} parent=1 // pred_check_branch
      %452 = sbr.rel (0) target = $region209
    $region208: #{fl_cvae_medical_forward.3} parent=1 // pred_region
      %453 = dma.done [#allocation21], 1024
    $region209: #{fl_cvae_medical_forward.3} parent=1 // pred_fallthru
      _
    // Predicated region
    $region210: #{fl_cvae_medical_forward.3} parent=1 // pred_check
      _
    $region211: #{fl_cvae_medical_forward.3} parent=1 // pred_check_branch
      %455 = sbr.rel (0) target = $region213
    $region212: #{fl_cvae_medical_forward.3} parent=1 // pred_region
      %456 = dma.done [#allocation24], 16
    $region213: #{fl_cvae_medical_forward.3} parent=1 // pred_fallthru
      _
    // Predicated region
    $region214: #{fl_cvae_medical_forward.3} parent=1 // pred_check
      _
    $region215: #{fl_cvae_medical_forward.3} parent=1 // pred_check_branch
      %458 = sbr.rel (0) target = $region217
    $region216: #{fl_cvae_medical_forward.3} parent=1 // pred_region
      %459 = dma.done [#allocation24], 16
    $region217: #{fl_cvae_medical_forward.3} parent=1 // pred_fallthru
      _
    // Predicated region
    $region218: #{fl_cvae_medical_forward.3} parent=1 // pred_check
      _
    $region219: #{fl_cvae_medical_forward.3} parent=1 // pred_check_branch
      %461 = sbr.rel (0) target = $region221
    $region220: #{fl_cvae_medical_forward.3} parent=1 // pred_region
      %462 = dma.done [#allocation27], 1024
    $region221: #{fl_cvae_medical_forward.3} parent=1 // pred_fallthru
      _
    // Predicated region
    $region222: #{fl_cvae_medical_forward.3} parent=1 // pred_check
      _
    $region223: #{fl_cvae_medical_forward.3} parent=1 // pred_check_branch
      %464 = sbr.rel (0) target = $region225
    $region224: #{fl_cvae_medical_forward.3} parent=1 // pred_region
      %465 = dma.done [#allocation27], 16
    $region225: #{fl_cvae_medical_forward.3} parent=1 // pred_fallthru
      _
    // Predicated region
    $region226: #{fl_cvae_medical_forward.3} parent=1 // pred_check
      _
    $region227: #{fl_cvae_medical_forward.3} parent=1 // pred_check_branch
      %467 = sbr.rel (0) target = $region229
    $region228: #{fl_cvae_medical_forward.3} parent=1 // pred_region
      %468 = dma.done [#allocation30], 16
    $region229: #{fl_cvae_medical_forward.3} parent=1 // pred_fallthru
      _
    // Predicated region
    $region230: #{fl_cvae_medical_forward.3} parent=1 // pred_check
      _
    $region231: #{fl_cvae_medical_forward.3} parent=1 // pred_check_branch
      %470 = sbr.rel (0) target = $region233
    $region232: #{fl_cvae_medical_forward.3} parent=1 // pred_region
      %471 = dma.done [#allocation30], 16
    $region233: #{fl_cvae_medical_forward.3} parent=1 // pred_fallthru
      _
    // Predicated region
    $region234: #{fl_cvae_medical_forward.3} parent=1 // pred_check
      _
    $region235: #{fl_cvae_medical_forward.3} parent=1 // pred_check_branch
      %473 = sbr.rel (0) target = $region237
    $region236: #{fl_cvae_medical_forward.3} parent=1 // pred_region
      %474 = dma.done [#allocation33], 1024
    $region237: #{fl_cvae_medical_forward.3} parent=1 // pred_fallthru
      _
    // Predicated region
    $region238: #{fl_cvae_medical_forward.3} parent=1 // pred_check
      _
    $region239: #{fl_cvae_medical_forward.3} parent=1 // pred_check_branch
      %476 = sbr.rel (0) target = $region241
    $region240: #{fl_cvae_medical_forward.3} parent=1 // pred_region
      %477 = dma.done [#allocation33], 16
    $region241: #{fl_cvae_medical_forward.3} parent=1 // pred_fallthru
      _
    // Predicated region
    $region242: #{fl_cvae_medical_forward.3} parent=1 // pred_check
      _
    $region243: #{fl_cvae_medical_forward.3} parent=1 // pred_check_branch
      %479 = sbr.rel (0) target = $region245
    $region244: #{fl_cvae_medical_forward.3} parent=1 // pred_region
      %480 = dma.done [#allocation36], 16
    $region245: #{fl_cvae_medical_forward.3} parent=1 // pred_fallthru
      _
    // Predicated region
    $region246: #{fl_cvae_medical_forward.3} parent=1 // pred_check
      _
    $region247: #{fl_cvae_medical_forward.3} parent=1 // pred_check_branch
      %482 = sbr.rel (0) target = $region249
    $region248: #{fl_cvae_medical_forward.3} parent=1 // pred_region
      %483 = dma.done [#allocation36], 16
    $region249: #{fl_cvae_medical_forward.3} parent=1 // pred_fallthru
      _
    // Predicated region
    $region250: #{fl_cvae_medical_forward.3} parent=1 // pred_check
      _
    $region251: #{fl_cvae_medical_forward.3} parent=1 // pred_check_branch
      %485 = sbr.rel (0) target = $region253
    $region252: #{fl_cvae_medical_forward.3} parent=1 // pred_region
      %486 = dma.done [#allocation39], 2048
    $region253: #{fl_cvae_medical_forward.3} parent=1 // pred_fallthru
      _
    // Predicated region
    $region254: #{fl_cvae_medical_forward.3} parent=1 // pred_check
      _
    $region255: #{fl_cvae_medical_forward.3} parent=1 // pred_check_branch
      %488 = sbr.rel (0) target = $region257
    $region256: #{fl_cvae_medical_forward.3} parent=1 // pred_region
      %489 = dma.done [#allocation39], 32
    $region257: #{fl_cvae_medical_forward.3} parent=1 // pred_fallthru
      _
    // Predicated region
    $region258: #{fl_cvae_medical_forward.3} parent=1 // pred_check
      _
    $region259: #{fl_cvae_medical_forward.3} parent=1 // pred_check_branch
      %491 = sbr.rel (0) target = $region261
    $region260: #{fl_cvae_medical_forward.3} parent=1 // pred_region
      %492 = dma.done [#allocation42], 32
    $region261: #{fl_cvae_medical_forward.3} parent=1 // pred_fallthru
      _
    // Predicated region
    $region262: #{fl_cvae_medical_forward.3} parent=1 // pred_check
      _
    $region263: #{fl_cvae_medical_forward.3} parent=1 // pred_check_branch
      %494 = sbr.rel (0) target = $region265
    $region264: #{fl_cvae_medical_forward.3} parent=1 // pred_region
      %495 = dma.done [#allocation42], 32
    $region265: #{fl_cvae_medical_forward.3} parent=1 // pred_fallthru
      _
    %v497 = vld [vmem:[%s1] sm:$0xff]
    %v498 = vld [vmem:[%s1 + $0x8] sm:$0xff]
    %v499 = vld [vmem:[%s1 + $0x10] sm:$0xff]
    %v500 = vpack.c.bf16 %v497, %v497
    %v501 = vpack.c.bf16 %v498, %v498
    %v502 = vpack.c.bf16 %v499, %v499
    %v503 = vld [vmem:[#allocation2] sm:$0xff]
    %v504 = vld [vmem:[#allocation2 + $0x8] sm:$0xff]
    %v505 = vld [vmem:[#allocation2 + $0x10] sm:$0xff]
    %v506 = vld [vmem:[#allocation2 + $0x18] sm:$0xff]
    %v507 = vld [vmem:[#allocation2 + $0x20] sm:$0xff]
    %v508 = vld [vmem:[#allocation2 + $0x28] sm:$0xff]
    %v509 = vld [vmem:[#allocation2 + $0x30] sm:$0xff]
    %v510 = vld [vmem:[#allocation2 + $0x38] sm:$0xff]
    %v511 = vld [vmem:[#allocation2 + $0x40] sm:$0xff]
    %v512 = vld [vmem:[#allocation2 + $0x48] sm:$0xff]
    %v513 = vld [vmem:[#allocation2 + $0x50] sm:$0xff]
    %v514 = vld [vmem:[#allocation2 + $0x58] sm:$0xff]
    %v515 = vld [vmem:[#allocation2 + $0x60] sm:$0xff]
    %v516 = vld [vmem:[#allocation2 + $0x68] sm:$0xff]
    %v517 = vld [vmem:[#allocation2 + $0x70] sm:$0xff]
    %v518 = vld [vmem:[#allocation2 + $0x78] sm:$0xff]
    %v519 = vld [vmem:[#allocation2 + $0x80] sm:$0xff]
    %v520 = vld [vmem:[#allocation2 + $0x88] sm:$0xff]
    %v521 = vld [vmem:[#allocation2 + $0x90] sm:$0xff]
    %v522 = vld [vmem:[#allocation2 + $0x98] sm:$0xff]
    %v523 = vld [vmem:[#allocation2 + $0xa0] sm:$0xff]
    %v524 = vld [vmem:[#allocation2 + $0xa8] sm:$0xff]
    %v525 = vld [vmem:[#allocation2 + $0xb0] sm:$0xff]
    %v526 = vld [vmem:[#allocation2 + $0xb8] sm:$0xff]
    %v527 = vld [vmem:[#allocation2 + $0xc0] sm:$0xff]
    %v528 = vld [vmem:[#allocation2 + $0xc8] sm:$0xff]
    %v529 = vld [vmem:[#allocation2 + $0xd0] sm:$0xff]
    %v530 = vld [vmem:[#allocation2 + $0xd8] sm:$0xff]
    %v531 = vld [vmem:[#allocation2 + $0xe0] sm:$0xff]
    %v532 = vld [vmem:[#allocation2 + $0xe8] sm:$0xff]
    %v533 = vld [vmem:[#allocation2 + $0xf0] sm:$0xff]
    %v534 = vld [vmem:[#allocation2 + $0xf8] sm:$0xff]
    %v535 = vld [vmem:[#allocation2 + $0x100] sm:$0xff]
    %v536 = vld [vmem:[#allocation2 + $0x108] sm:$0xff]
    %v537 = vld [vmem:[#allocation2 + $0x110] sm:$0xff]
    %v538 = vld [vmem:[#allocation2 + $0x118] sm:$0xff]
    %v539 = vld [vmem:[#allocation2 + $0x120] sm:$0xff]
    %v540 = vld [vmem:[#allocation2 + $0x128] sm:$0xff]
    %v541 = vld [vmem:[#allocation2 + $0x130] sm:$0xff]
    %v542 = vld [vmem:[#allocation2 + $0x138] sm:$0xff]
    %v543 = vld [vmem:[#allocation2 + $0x140] sm:$0xff]
    %v544 = vld [vmem:[#allocation2 + $0x148] sm:$0xff]
    %v545 = vld [vmem:[#allocation2 + $0x150] sm:$0xff]
    %v546 = vld [vmem:[#allocation2 + $0x158] sm:$0xff]
    %v547 = vld [vmem:[#allocation2 + $0x160] sm:$0xff]
    %v548 = vld [vmem:[#allocation2 + $0x168] sm:$0xff]
    %v549 = vld [vmem:[#allocation2 + $0x170] sm:$0xff]
    %v550 = vld [vmem:[#allocation2 + $0x178] sm:$0xff]
    %v551 = vld [vmem:[%s9] sm:$0x3]
    %v553 = vlaneseq
    %v554 = vshrl.u32 %v553, 7
    %v555 = vsub.s32 0, %v554
    %v556 = vrot.slane %v551, %v555
    %v557 = vlaneseq
    %v558 = vshrl.u32 %v557, 7
    %v559 = vsub.s32 1, %v558
    %v560 = vrot.slane %v551, %v559
    %v611 = vunpack.c.l.b16 %v503
    %v612 = vunpack.c.h.b16 %v503
    %v613 = vunpack.c.l.b16 %v504
    %v614 = vunpack.c.h.b16 %v504
    %v615 = vunpack.c.l.b16 %v505
    %v616 = vunpack.c.h.b16 %v505
    %v617 = vunpack.c.l.b16 %v506
    %v618 = vunpack.c.h.b16 %v506
    %v619 = vunpack.c.l.b16 %v507
    %v620 = vunpack.c.h.b16 %v507
    %v621 = vunpack.c.l.b16 %v508
    %v622 = vunpack.c.h.b16 %v508
    %v623 = vunpack.c.l.b16 %v509
    %v624 = vunpack.c.h.b16 %v509
    %v625 = vunpack.c.l.b16 %v510
    %v626 = vunpack.c.h.b16 %v510
    %v627 = vunpack.c.l.b16 %v511
    %v628 = vunpack.c.h.b16 %v511
    %v629 = vunpack.c.l.b16 %v512
    %v630 = vunpack.c.h.b16 %v512
    %v631 = vunpack.c.l.b16 %v513
    %v632 = vunpack.c.h.b16 %v513
    %v633 = vunpack.c.l.b16 %v514
    %v634 = vunpack.c.h.b16 %v514
    %v635 = vunpack.c.l.b16 %v515
    %v636 = vunpack.c.h.b16 %v515
    %v637 = vunpack.c.l.b16 %v516
    %v638 = vunpack.c.h.b16 %v516
    %v639 = vunpack.c.l.b16 %v517
    %v640 = vunpack.c.h.b16 %v517
    %v641 = vunpack.c.l.b16 %v518
    %v642 = vunpack.c.h.b16 %v518
    %v643 = vunpack.c.l.b16 %v519
    %v644 = vunpack.c.h.b16 %v519
    %v645 = vunpack.c.l.b16 %v520
    %v646 = vunpack.c.h.b16 %v520
    %v647 = vunpack.c.l.b16 %v521
    %v648 = vunpack.c.h.b16 %v521
    %v649 = vunpack.c.l.b16 %v522
    %v650 = vunpack.c.h.b16 %v522
    %v651 = vunpack.c.l.b16 %v523
    %v652 = vunpack.c.h.b16 %v523
    %v653 = vunpack.c.l.b16 %v524
    %v654 = vunpack.c.h.b16 %v524
    %v655 = vunpack.c.l.b16 %v525
    %v656 = vunpack.c.h.b16 %v525
    %v657 = vunpack.c.l.b16 %v526
    %v658 = vunpack.c.h.b16 %v526
    %v659 = vunpack.c.l.b16 %v527
    %v660 = vunpack.c.h.b16 %v527
    %v661 = vunpack.c.l.b16 %v528
    %v662 = vunpack.c.h.b16 %v528
    %v663 = vunpack.c.l.b16 %v529
    %v664 = vunpack.c.h.b16 %v529
    %v665 = vunpack.c.l.b16 %v530
    %v666 = vunpack.c.h.b16 %v530
    %v667 = vunpack.c.l.b16 %v531
    %v668 = vunpack.c.h.b16 %v531
    %v669 = vunpack.c.l.b16 %v532
    %v670 = vunpack.c.h.b16 %v532
    %v671 = vunpack.c.l.b16 %v533
    %v672 = vunpack.c.h.b16 %v533
    %v673 = vunpack.c.l.b16 %v534
    %v674 = vunpack.c.h.b16 %v534
    %v675 = vunpack.c.l.b16 %v535
    %v676 = vunpack.c.h.b16 %v535
    %v677 = vunpack.c.l.b16 %v536
    %v678 = vunpack.c.h.b16 %v536
    %v679 = vunpack.c.l.b16 %v537
    %v680 = vunpack.c.h.b16 %v537
    %v681 = vunpack.c.l.b16 %v538
    %v682 = vunpack.c.h.b16 %v538
    %v683 = vunpack.c.l.b16 %v539
    %v684 = vunpack.c.h.b16 %v539
    %v685 = vunpack.c.l.b16 %v540
    %v686 = vunpack.c.h.b16 %v540
    %v687 = vunpack.c.l.b16 %v541
    %v688 = vunpack.c.h.b16 %v541
    %v689 = vunpack.c.l.b16 %v542
    %v690 = vunpack.c.h.b16 %v542
    %v691 = vunpack.c.l.b16 %v543
    %v692 = vunpack.c.h.b16 %v543
    %v693 = vunpack.c.l.b16 %v544
    %v694 = vunpack.c.h.b16 %v544
    %v695 = vunpack.c.l.b16 %v545
    %v696 = vunpack.c.h.b16 %v545
    %v697 = vunpack.c.l.b16 %v546
    %v698 = vunpack.c.h.b16 %v546
    %v699 = vunpack.c.l.b16 %v547
    %v700 = vunpack.c.h.b16 %v547
    %v701 = vunpack.c.l.b16 %v548
    %v702 = vunpack.c.h.b16 %v548
    %v703 = vunpack.c.l.b16 %v549
    %v704 = vunpack.c.h.b16 %v549
    %v705 = vunpack.c.l.b16 %v550
    %v706 = vunpack.c.h.b16 %v550
    %v707 = vpack.c.b16 %v613, %v611
    %v708 = vpack.c.b16 %v614, %v612
    %v709 = vpack.c.b16 %v617, %v615
    %v710 = vpack.c.b16 %v618, %v616
    %v711 = vpack.c.b16 %v621, %v619
    %v712 = vpack.c.b16 %v622, %v620
    %v713 = vpack.c.b16 %v625, %v623
    %v714 = vpack.c.b16 %v626, %v624
    %v715 = vpack.c.b16 %v629, %v627
    %v716 = vpack.c.b16 %v630, %v628
    %v717 = vpack.c.b16 %v633, %v631
    %v718 = vpack.c.b16 %v634, %v632
    %v719 = vpack.c.b16 %v637, %v635
    %v720 = vpack.c.b16 %v638, %v636
    %v721 = vpack.c.b16 %v641, %v639
    %v722 = vpack.c.b16 %v642, %v640
    %v723 = vpack.c.b16 %v645, %v643
    %v724 = vpack.c.b16 %v646, %v644
    %v725 = vpack.c.b16 %v649, %v647
    %v726 = vpack.c.b16 %v650, %v648
    %v727 = vpack.c.b16 %v653, %v651
    %v728 = vpack.c.b16 %v654, %v652
    %v729 = vpack.c.b16 %v657, %v655
    %v730 = vpack.c.b16 %v658, %v656
    %v731 = vpack.c.b16 %v661, %v659
    %v732 = vpack.c.b16 %v662, %v660
    %v733 = vpack.c.b16 %v665, %v663
    %v734 = vpack.c.b16 %v666, %v664
    %v735 = vpack.c.b16 %v669, %v667
    %v736 = vpack.c.b16 %v670, %v668
    %v737 = vpack.c.b16 %v673, %v671
    %v738 = vpack.c.b16 %v674, %v672
    %v739 = vpack.c.b16 %v677, %v675
    %v740 = vpack.c.b16 %v678, %v676
    %v741 = vpack.c.b16 %v681, %v679
    %v742 = vpack.c.b16 %v682, %v680
    %v743 = vpack.c.b16 %v685, %v683
    %v744 = vpack.c.b16 %v686, %v684
    %v745 = vpack.c.b16 %v689, %v687
    %v746 = vpack.c.b16 %v690, %v688
    %v747 = vpack.c.b16 %v693, %v691
    %v748 = vpack.c.b16 %v694, %v692
    %v749 = vpack.c.b16 %v697, %v695
    %v750 = vpack.c.b16 %v698, %v696
    %v751 = vpack.c.b16 %v701, %v699
    %v752 = vpack.c.b16 %v702, %v700
    %v753 = vpack.c.b16 %v705, %v703
    %v754 = vpack.c.b16 %v706, %v704
    %803 = vmatprep.subr.bf16.mxu0 %v708
    %804 = vmatpush1.bf16.msra.mxu0 %v707
    %805 = vmatprep.subr.bf16.mxu0 %v710
    %806 = vmatpush1.bf16.msra.mxu0 %v709
    %807 = vmatprep.subr.bf16.mxu0 %v712
    %808 = vmatpush1.bf16.msra.mxu0 %v711
    %809 = vmatprep.subr.bf16.mxu0 %v714
    %810 = vmatpush1.bf16.msra.mxu0 %v713
    %811 = vmatprep.subr.bf16.mxu0 %v716
    %812 = vmatpush1.bf16.msra.mxu0 %v715
    %813 = vmatprep.subr.bf16.mxu0 %v718
    %814 = vmatpush1.bf16.msra.mxu0 %v717
    %815 = vmatprep.subr.bf16.mxu0 %v720
    %816 = vmatpush1.bf16.msra.mxu0 %v719
    %817 = vmatprep.subr.bf16.mxu0 %v722
    %818 = vmatpush1.bf16.msra.mxu0 %v721
    %819 = vmatprep.subr.bf16.mxu0 %v724
    %820 = vmatpush1.bf16.msra.mxu0 %v723
    %821 = vmatprep.subr.bf16.mxu0 %v726
    %822 = vmatpush1.bf16.msra.mxu0 %v725
    %823 = vmatprep.subr.bf16.mxu0 %v728
    %824 = vmatpush1.bf16.msra.mxu0 %v727
    %825 = vmatprep.subr.bf16.mxu0 %v730
    %826 = vmatpush1.bf16.msra.mxu0 %v729
    %827 = vmatprep.subr.bf16.mxu0 %v732
    %828 = vmatpush1.bf16.msra.mxu0 %v731
    %829 = vmatprep.subr.bf16.mxu0 %v734
    %830 = vmatpush1.bf16.msra.mxu0 %v733
    %831 = vmatprep.subr.bf16.mxu0 %v736
    %832 = vmatpush1.bf16.msra.mxu0 %v735
    %833 = vmatprep.subr.bf16.mxu0 %v738
    %834 = vmatpush1.bf16.msra.mxu0 %v737
    %835 = vmatprep.mubr.bf16.mxu0 %v501
    %836 = vmatmul.mubr.bf16.gmra.mrb[0].mxu0 %v500
    %v837 = vpop.f32.mrb[0].mxu0
    %v838 = vadd.f32 %v556, %v837
    %v839 = vpop.f32.mrb[0].mxu0
    %v840 = vadd.f32 %v560, %v839
    %v841 = vpop.f32.mrb[0].mxu0
    %v842 = vpop.f32.mrb[0].mxu0
    %843 = vdwg.mxu0
    %844 = vmatprep.subr.bf16.mxu0 %v740
    %845 = vmatpush1.bf16.msra.mxu0 %v739
    %846 = vmatprep.subr.bf16.mxu0 %v742
    %847 = vmatpush1.bf16.msra.mxu0 %v741
    %848 = vmatprep.subr.bf16.mxu0 %v744
    %849 = vmatpush1.bf16.msra.mxu0 %v743
    %850 = vmatprep.subr.bf16.mxu0 %v746
    %851 = vmatpush1.bf16.msra.mxu0 %v745
    %852 = vmatprep.subr.bf16.mxu0 %v748
    %853 = vmatpush1.bf16.msra.mxu0 %v747
    %854 = vmatprep.subr.bf16.mxu0 %v750
    %855 = vmatpush1.bf16.msra.mxu0 %v749
    %856 = vmatprep.subr.bf16.mxu0 %v752
    %857 = vmatpush1.bf16.msra.mxu0 %v751
    %858 = vmatprep.subr.bf16.mxu0 %v754
    %859 = vmatpush1.bf16.msra.mxu0 %v753
    %860 = vmatprep.subr.bf16.mxu0 0
    %861 = vmatpush1.bf16.msra.mxu0 0
    %862 = vmatprep.subr.bf16.mxu0 0
    %863 = vmatpush1.bf16.msra.mxu0 0
    %864 = vmatprep.subr.bf16.mxu0 0
    %865 = vmatpush1.bf16.msra.mxu0 0
    %866 = vmatprep.subr.bf16.mxu0 0
    %867 = vmatpush1.bf16.msra.mxu0 0
    %868 = vmatprep.subr.bf16.mxu0 0
    %869 = vmatpush1.bf16.msra.mxu0 0
    %870 = vmatprep.subr.bf16.mxu0 0
    %871 = vmatpush1.bf16.msra.mxu0 0
    %872 = vmatprep.subr.bf16.mxu0 0
    %873 = vmatpush1.bf16.msra.mxu0 0
    %874 = vmatprep.subr.bf16.mxu0 0
    %875 = vmatpush1.bf16.msra.mxu0 0
    %876 = vmatprep.mubr.bf16.mxu0 0
    %877 = vmatmul.mubr.bf16.gmra.mrb[0].mxu0 %v502
    %v878 = vpop.f32.mrb[0].mxu0
    %v879 = vadd.f32 %v838, %v878
    %v880 = vpop.f32.mrb[0].mxu0
    %v881 = vadd.f32 %v840, %v880
    %v882 = vpop.f32.mrb[0].mxu0
    %v883 = vpop.f32.mrb[0].mxu0
    %884 = vdwg.mxu0
    %v885 = vlaneseq
    %v886 = vshrl.u32 %v885, 7
    %vm887 = vcmp.lt.s32.totalorder %v886, 8
    %v888 = vsel %vm887, %v879, 0.0
    %v889 = vsel %vm887, %v881, 0.0
    %v890 = vrot.slane %v888, 4
    %v891 = vadd.f32 %v888, %v890
    %v892 = vrot.slane %v891, 2
    %v893 = vadd.f32 %v891, %v892
    %v894 = vrot.slane %v893, 1
    %v895 = vadd.f32 %v893, %v894
    %v896 = vrot.slane %v889, 4
    %v897 = vadd.f32 %v889, %v896
    %v898 = vrot.slane %v897, 2
    %v899 = vadd.f32 %v897, %v898
    %v900 = vrot.slane %v899, 1
    %v901 = vadd.f32 %v899, %v900
    %v902 = vmul.f32 %v895, 0.125
    %v903 = vmul.f32 %v901, 0.125
    %v904 = vsub.f32 %v879, %v902
    %v905 = vsub.f32 %v881, %v903
    %v906 = vsel %vm887, %v904, 0.0
    %v907 = vsel %vm887, %v905, 0.0
    %v908 = vmul.f32 %v906, %v906
    %v909 = vmul.f32 %v907, %v907
    %v910 = vrot.slane %v908, 4
    %v911 = vadd.f32 %v908, %v910
    %v912 = vrot.slane %v911, 2
    %v913 = vadd.f32 %v911, %v912
    %v914 = vrot.slane %v913, 1
    %v915 = vadd.f32 %v913, %v914
    %v916 = vrot.slane %v909, 4
    %v917 = vadd.f32 %v909, %v916
    %v918 = vrot.slane %v917, 2
    %v919 = vadd.f32 %v917, %v918
    %v920 = vrot.slane %v919, 1
    %v921 = vadd.f32 %v919, %v920
    %v922 = vmul.f32 %v915, 0.125
    %v923 = vmul.f32 %v921, 0.125
    %v924 = vld [vmem:[%s11] sm:$0x3]
    %v925 = vadd.f32 %v922, 1e-05
    %v926 = vadd.f32 %v923, 1e-05
    %v927 = vrsqrt.pop %v925
    %v928 = vrsqrt.pop %v926
    %v931 = vcombine.low %v927, %v928
    %v933 = vunpack.c.l.s4 1966171168
    %v934 = vunpack.c.0.s8 %v933
    %v935 = vlaneseq
    %v936 = vshrl.u32 %v935, 7
    %v937 = vsub.s32 %v934, %v936
    %v938 = vrot.slane %v931, %v937
    %v940 = vunpack.c.l.s4 1966171168
    %v941 = vunpack.c.0.s8 %v940
    %v942 = vlaneseq
    %v943 = vshrl.u32 %v942, 7
    %v944 = vsub.s32 %v941, %v943
    %v945 = vrot.slane %v938, %v944
    %v947 = vmul.f32 %v924, %v945
    %v949 = vlaneseq
    %v950 = vshrl.u32 %v949, 7
    %v951 = vsub.s32 0, %v950
    %v952 = vrot.slane %v947, %v951
    %v953 = vlaneseq
    %v954 = vshrl.u32 %v953, 7
    %v955 = vsub.s32 1, %v954
    %v956 = vrot.slane %v947, %v955
    %v959 = vmul.f32 %v904, %v952
    %v960 = vmul.f32 %v905, %v956
    %v961 = vld [vmem:[#allocation5] sm:$0x3]
    %v963 = vlaneseq
    %v964 = vshrl.u32 %v963, 7
    %v965 = vsub.s32 0, %v964
    %v966 = vrot.slane %v961, %v965
    %v967 = vlaneseq
    %v968 = vshrl.u32 %v967, 7
    %v969 = vsub.s32 1, %v968
    %v970 = vrot.slane %v961, %v969
    %v973 = vadd.f32 %v959, %v966
    %v974 = vadd.f32 %v960, %v970
    %v975 = vmax.f32 %v973, 0.0
    %v976 = vmax.f32 %v974, 0.0
    %v977 = vsel %vm887, %v975, 0.0
    %v978 = vsel %vm887, %v976, 0.0
    %v979 = vld [vmem:[%s5] sm:$0xff]
    %v980 = vld [vmem:[%s5 + $0x8] sm:$0xff]
    %v981 = vmul.f32 %v977, %v979
    %v982 = vmul.f32 %v978, %v980
    %v983 = vpack.c.bf16 %v981, %v981
    %v984 = vpack.c.bf16 %v982, %v982
    %v985 = vld [vmem:[#allocation7] sm:$0xf]
    %v986 = vld [vmem:[#allocation7 + $0x4] sm:$0xf]
    %v987 = vld [vmem:[#allocation7 + $0x8] sm:$0xf]
    %v988 = vld [vmem:[#allocation7 + $0xc] sm:$0xf]
    %v989 = vld [vmem:[#allocation7 + $0x10] sm:$0xf]
    %v990 = vld [vmem:[#allocation7 + $0x14] sm:$0xf]
    %v991 = vld [vmem:[#allocation7 + $0x18] sm:$0xf]
    %v992 = vld [vmem:[#allocation7 + $0x1c] sm:$0xf]
    %v993 = vld [vmem:[#allocation7 + $0x20] sm:$0xf]
    %v994 = vld [vmem:[#allocation7 + $0x24] sm:$0xf]
    %v995 = vld [vmem:[#allocation7 + $0x28] sm:$0xf]
    %v996 = vld [vmem:[#allocation7 + $0x2c] sm:$0xf]
    %v997 = vld [vmem:[#allocation7 + $0x30] sm:$0xf]
    %v998 = vld [vmem:[#allocation7 + $0x34] sm:$0xf]
    %v999 = vld [vmem:[#allocation7 + $0x38] sm:$0xf]
    %v1000 = vld [vmem:[#allocation7 + $0x3c] sm:$0xf]
    %v1001 = vld [vmem:[#allocation7 + $0x40] sm:$0xf]
    %v1002 = vld [vmem:[#allocation7 + $0x44] sm:$0xf]
    %v1003 = vld [vmem:[#allocation7 + $0x48] sm:$0xf]
    %v1004 = vld [vmem:[#allocation7 + $0x4c] sm:$0xf]
    %v1005 = vld [vmem:[#allocation7 + $0x50] sm:$0xf]
    %v1006 = vld [vmem:[#allocation7 + $0x54] sm:$0xf]
    %v1007 = vld [vmem:[#allocation7 + $0x58] sm:$0xf]
    %v1008 = vld [vmem:[#allocation7 + $0x5c] sm:$0xf]
    %v1009 = vld [vmem:[#allocation7 + $0x60] sm:$0xf]
    %v1010 = vld [vmem:[#allocation7 + $0x64] sm:$0xf]
    %v1011 = vld [vmem:[#allocation7 + $0x68] sm:$0xf]
    %v1012 = vld [vmem:[#allocation7 + $0x6c] sm:$0xf]
    %v1013 = vld [vmem:[#allocation7 + $0x70] sm:$0xf]
    %v1014 = vld [vmem:[#allocation7 + $0x74] sm:$0xf]
    %v1015 = vld [vmem:[#allocation7 + $0x78] sm:$0xf]
    %v1016 = vld [vmem:[#allocation7 + $0x7c] sm:$0xf]
    %v1017 = vld [vmem:[%s17] sm:$0x1]
    %v1019 = vlaneseq
    %v1020 = vshrl.u32 %v1019, 7
    %v1021 = vsub.s32 0, %v1020
    %v1022 = vrot.slane %v1017, %v1021
    %v1056 = vunpack.c.l.b16 %v985
    %v1057 = vunpack.c.l.b16 %v986
    %v1058 = vunpack.c.l.b16 %v987
    %v1059 = vunpack.c.l.b16 %v988
    %v1060 = vunpack.c.l.b16 %v989
    %v1061 = vunpack.c.l.b16 %v990
    %v1062 = vunpack.c.l.b16 %v991
    %v1063 = vunpack.c.l.b16 %v992
    %v1064 = vunpack.c.l.b16 %v993
    %v1065 = vunpack.c.l.b16 %v994
    %v1066 = vunpack.c.l.b16 %v995
    %v1067 = vunpack.c.l.b16 %v996
    %v1068 = vunpack.c.l.b16 %v997
    %v1069 = vunpack.c.l.b16 %v998
    %v1070 = vunpack.c.l.b16 %v999
    %v1071 = vunpack.c.l.b16 %v1000
    %v1072 = vunpack.c.l.b16 %v1001
    %v1073 = vunpack.c.l.b16 %v1002
    %v1074 = vunpack.c.l.b16 %v1003
    %v1075 = vunpack.c.l.b16 %v1004
    %v1076 = vunpack.c.l.b16 %v1005
    %v1077 = vunpack.c.l.b16 %v1006
    %v1078 = vunpack.c.l.b16 %v1007
    %v1079 = vunpack.c.l.b16 %v1008
    %v1080 = vunpack.c.l.b16 %v1009
    %v1081 = vunpack.c.l.b16 %v1010
    %v1082 = vunpack.c.l.b16 %v1011
    %v1083 = vunpack.c.l.b16 %v1012
    %v1084 = vunpack.c.l.b16 %v1013
    %v1085 = vunpack.c.l.b16 %v1014
    %v1086 = vunpack.c.l.b16 %v1015
    %v1087 = vunpack.c.l.b16 %v1016
    %v1088 = vpack.c.b16 %v1057, %v1056
    %v1089 = vpack.c.b16 %v1059, %v1058
    %v1090 = vpack.c.b16 %v1061, %v1060
    %v1091 = vpack.c.b16 %v1063, %v1062
    %v1092 = vpack.c.b16 %v1065, %v1064
    %v1093 = vpack.c.b16 %v1067, %v1066
    %v1094 = vpack.c.b16 %v1069, %v1068
    %v1095 = vpack.c.b16 %v1071, %v1070
    %v1096 = vpack.c.b16 %v1073, %v1072
    %v1097 = vpack.c.b16 %v1075, %v1074
    %v1098 = vpack.c.b16 %v1077, %v1076
    %v1099 = vpack.c.b16 %v1079, %v1078
    %v1100 = vpack.c.b16 %v1081, %v1080
    %v1101 = vpack.c.b16 %v1083, %v1082
    %v1102 = vpack.c.b16 %v1085, %v1084
    %v1103 = vpack.c.b16 %v1087, %v1086
    %1120 = vmatprep.subr.bf16.mxu0 0
    %1121 = vmatpush1.bf16.msra.mxu0 %v1088
    %1122 = vmatprep.subr.bf16.mxu0 0
    %1123 = vmatpush1.bf16.msra.mxu0 %v1089
    %1124 = vmatprep.subr.bf16.mxu0 0
    %1125 = vmatpush1.bf16.msra.mxu0 %v1090
    %1126 = vmatprep.subr.bf16.mxu0 0
    %1127 = vmatpush1.bf16.msra.mxu0 %v1091
    %1128 = vmatprep.subr.bf16.mxu0 0
    %1129 = vmatpush1.bf16.msra.mxu0 %v1092
    %1130 = vmatprep.subr.bf16.mxu0 0
    %1131 = vmatpush1.bf16.msra.mxu0 %v1093
    %1132 = vmatprep.subr.bf16.mxu0 0
    %1133 = vmatpush1.bf16.msra.mxu0 %v1094
    %1134 = vmatprep.subr.bf16.mxu0 0
    %1135 = vmatpush1.bf16.msra.mxu0 %v1095
    %1136 = vmatprep.subr.bf16.mxu0 0
    %1137 = vmatpush1.bf16.msra.mxu0 %v1096
    %1138 = vmatprep.subr.bf16.mxu0 0
    %1139 = vmatpush1.bf16.msra.mxu0 %v1097
    %1140 = vmatprep.subr.bf16.mxu0 0
    %1141 = vmatpush1.bf16.msra.mxu0 %v1098
    %1142 = vmatprep.subr.bf16.mxu0 0
    %1143 = vmatpush1.bf16.msra.mxu0 %v1099
    %1144 = vmatprep.subr.bf16.mxu0 0
    %1145 = vmatpush1.bf16.msra.mxu0 %v1100
    %1146 = vmatprep.subr.bf16.mxu0 0
    %1147 = vmatpush1.bf16.msra.mxu0 %v1101
    %1148 = vmatprep.subr.bf16.mxu0 0
    %1149 = vmatpush1.bf16.msra.mxu0 %v1102
    %1150 = vmatprep.subr.bf16.mxu0 0
    %1151 = vmatpush1.bf16.msra.mxu0 %v1103
    %1152 = vmatprep.mubr.bf16.mxu0 %v984
    %1153 = vmatmul.mubr.bf16.gmra.mrb[0].mxu0 %v983
    %v1154 = vpop.f32.mrb[0].mxu0
    %v1155 = vadd.f32 %v1022, %v1154
    %v1156 = vpop.f32.mrb[0].mxu0
    %v1157 = vpop.f32.mrb[0].mxu0
    %v1158 = vpop.f32.mrb[0].mxu0
    %1159 = vdwg.mxu0
    %v1160 = vsel %vm887, %v1155, 0.0
    %v1161 = vrot.slane %v1160, 4
    %v1162 = vadd.f32 %v1160, %v1161
    %v1163 = vrot.slane %v1162, 2
    %v1164 = vadd.f32 %v1162, %v1163
    %v1165 = vrot.slane %v1164, 1
    %v1166 = vadd.f32 %v1164, %v1165
    %v1167 = vmul.f32 %v1166, 0.125
    %v1168 = vsub.f32 %v1155, %v1167
    %v1169 = vsel %vm887, %v1168, 0.0
    %v1170 = vmul.f32 %v1169, %v1169
    %v1171 = vrot.slane %v1170, 4
    %v1172 = vadd.f32 %v1170, %v1171
    %v1173 = vrot.slane %v1172, 2
    %v1174 = vadd.f32 %v1172, %v1173
    %v1175 = vrot.slane %v1174, 1
    %v1176 = vadd.f32 %v1174, %v1175
    %v1177 = vmul.f32 %v1176, 0.125
    %v1178 = vld [vmem:[#allocation8] sm:$0x1]
    %v1179 = vadd.f32 %v1177, 1e-05
    %v1180 = vrsqrt.pop %v1179
    %v1181 = vmul.f32 %v1178, %v1180
    %v1183 = vlaneseq
    %v1184 = vshrl.u32 %v1183, 7
    %v1185 = vsub.s32 0, %v1184
    %v1186 = vrot.slane %v1181, %v1185
    %v1188 = vmul.f32 %v1168, %v1186
    %v1189 = vld [vmem:[#allocation10] sm:$0x1]
    %v1191 = vlaneseq
    %v1192 = vshrl.u32 %v1191, 7
    %v1193 = vsub.s32 0, %v1192
    %v1194 = vrot.slane %v1189, %v1193
    %v1196 = vadd.f32 %v1188, %v1194
    %v1197 = vmax.f32 %v1196, 0.0
    %v1198 = vsel %vm887, %v1197, 0.0
    %v1199 = vpack.c.bf16 %v1198, %v1198
    %v1200 = vld [vmem:[%s23] sm:$0xf]
    %v1201 = vld [vmem:[%s23 + $0x4] sm:$0xf]
    %v1202 = vld [vmem:[%s23 + $0x8] sm:$0xf]
    %v1203 = vld [vmem:[%s23 + $0xc] sm:$0xf]
    %v1204 = vld [vmem:[%s23 + $0x10] sm:$0xf]
    %v1205 = vld [vmem:[%s23 + $0x14] sm:$0xf]
    %v1206 = vld [vmem:[%s23 + $0x18] sm:$0xf]
    %v1207 = vld [vmem:[%s23 + $0x1c] sm:$0xf]
    %v1208 = vld [vmem:[%s23 + $0x20] sm:$0xf]
    %v1209 = vld [vmem:[%s23 + $0x24] sm:$0xf]
    %v1210 = vld [vmem:[%s23 + $0x28] sm:$0xf]
    %v1211 = vld [vmem:[%s23 + $0x2c] sm:$0xf]
    %v1212 = vld [vmem:[%s23 + $0x30] sm:$0xf]
    %v1213 = vld [vmem:[%s23 + $0x34] sm:$0xf]
    %v1214 = vld [vmem:[%s23 + $0x38] sm:$0xf]
    %v1215 = vld [vmem:[%s23 + $0x3c] sm:$0xf]
    %v1216 = vld [vmem:[#allocation11] sm:$0x1]
    %v1218 = vlaneseq
    %v1219 = vshrl.u32 %v1218, 7
    %v1220 = vsub.s32 0, %v1219
    %v1221 = vrot.slane %v1216, %v1220
    %v1239 = vunpack.c.l.b16 %v1200
    %v1240 = vunpack.c.l.b16 %v1201
    %v1241 = vunpack.c.l.b16 %v1202
    %v1242 = vunpack.c.l.b16 %v1203
    %v1243 = vunpack.c.l.b16 %v1204
    %v1244 = vunpack.c.l.b16 %v1205
    %v1245 = vunpack.c.l.b16 %v1206
    %v1246 = vunpack.c.l.b16 %v1207
    %v1247 = vunpack.c.l.b16 %v1208
    %v1248 = vunpack.c.l.b16 %v1209
    %v1249 = vunpack.c.l.b16 %v1210
    %v1250 = vunpack.c.l.b16 %v1211
    %v1251 = vunpack.c.l.b16 %v1212
    %v1252 = vunpack.c.l.b16 %v1213
    %v1253 = vunpack.c.l.b16 %v1214
    %v1254 = vunpack.c.l.b16 %v1215
    %v1255 = vpack.c.b16 %v1240, %v1239
    %v1256 = vpack.c.b16 %v1242, %v1241
    %v1257 = vpack.c.b16 %v1244, %v1243
    %v1258 = vpack.c.b16 %v1246, %v1245
    %v1259 = vpack.c.b16 %v1248, %v1247
    %v1260 = vpack.c.b16 %v1250, %v1249
    %v1261 = vpack.c.b16 %v1252, %v1251
    %v1262 = vpack.c.b16 %v1254, %v1253
    %1271 = vmatprep.subr.bf16.mxu0 0
    %1272 = vmatpush1.bf16.msra.mxu0 %v1255
    %1273 = vmatprep.subr.bf16.mxu0 0
    %1274 = vmatpush1.bf16.msra.mxu0 %v1256
    %1275 = vmatprep.subr.bf16.mxu0 0
    %1276 = vmatpush1.bf16.msra.mxu0 %v1257
    %1277 = vmatprep.subr.bf16.mxu0 0
    %1278 = vmatpush1.bf16.msra.mxu0 %v1258
    %1279 = vmatprep.subr.bf16.mxu0 0
    %1280 = vmatpush1.bf16.msra.mxu0 %v1259
    %1281 = vmatprep.subr.bf16.mxu0 0
    %1282 = vmatpush1.bf16.msra.mxu0 %v1260
    %1283 = vmatprep.subr.bf16.mxu0 0
    %1284 = vmatpush1.bf16.msra.mxu0 %v1261
    %1285 = vmatprep.subr.bf16.mxu0 0
    %1286 = vmatpush1.bf16.msra.mxu0 %v1262
    %1287 = vmatprep.subr.bf16.mxu0 0
    %1288 = vmatpush1.bf16.msra.mxu0 0
    %1289 = vmatprep.subr.bf16.mxu0 0
    %1290 = vmatpush1.bf16.msra.mxu0 0
    %1291 = vmatprep.subr.bf16.mxu0 0
    %1292 = vmatpush1.bf16.msra.mxu0 0
    %1293 = vmatprep.subr.bf16.mxu0 0
    %1294 = vmatpush1.bf16.msra.mxu0 0
    %1295 = vmatprep.subr.bf16.mxu0 0
    %1296 = vmatpush1.bf16.msra.mxu0 0
    %1297 = vmatprep.subr.bf16.mxu0 0
    %1298 = vmatpush1.bf16.msra.mxu0 0
    %1299 = vmatprep.subr.bf16.mxu0 0
    %1300 = vmatpush1.bf16.msra.mxu0 0
    %1301 = vmatprep.subr.bf16.mxu0 0
    %1302 = vmatpush1.bf16.msra.mxu0 0
    %1303 = vmatprep.mubr.bf16.mxu0 0
    %1304 = vmatmul.mubr.bf16.gmra.mrb[0].mxu0 %v1199
    %v1305 = vpop.f32.mrb[0].mxu0
    %v1306 = vadd.f32 %v1221, %v1305
    %v1307 = vpop.f32.mrb[0].mxu0
    %v1308 = vpop.f32.mrb[0].mxu0
    %v1309 = vpop.f32.mrb[0].mxu0
    %1310 = vdwg.mxu0
    %v1311 = vsel %vm887, %v1306, 0.0
    %v1312 = vrot.slane %v1311, 4
    %v1313 = vadd.f32 %v1311, %v1312
    %v1314 = vrot.slane %v1313, 2
    %v1315 = vadd.f32 %v1313, %v1314
    %v1316 = vrot.slane %v1315, 1
    %v1317 = vadd.f32 %v1315, %v1316
    %v1318 = vmul.f32 %v1317, 0.125
    %v1319 = vsub.f32 %v1306, %v1318
    %v1320 = vsel %vm887, %v1319, 0.0
    %v1321 = vmul.f32 %v1320, %v1320
    %v1322 = vrot.slane %v1321, 4
    %v1323 = vadd.f32 %v1321, %v1322
    %v1324 = vrot.slane %v1323, 2
    %v1325 = vadd.f32 %v1323, %v1324
    %v1326 = vrot.slane %v1325, 1
    %v1327 = vadd.f32 %v1325, %v1326
    %v1328 = vmul.f32 %v1327, 0.125
    %v1329 = vld [vmem:[#allocation13] sm:$0x1]
    %v1330 = vadd.f32 %v1328, 1e-05
    %v1331 = vrsqrt.pop %v1330
    %v1332 = vmul.f32 %v1329, %v1331
    %v1334 = vlaneseq
    %v1335 = vshrl.u32 %v1334, 7
    %v1336 = vsub.s32 0, %v1335
    %v1337 = vrot.slane %v1332, %v1336
    %v1339 = vmul.f32 %v1319, %v1337
    %v1340 = vld [vmem:[#allocation14] sm:$0x1]
    %v1342 = vlaneseq
    %v1343 = vshrl.u32 %v1342, 7
    %v1344 = vsub.s32 0, %v1343
    %v1345 = vrot.slane %v1340, %v1344
    %v1347 = vadd.f32 %v1339, %v1345
    %v1348 = vmax.f32 %v1347, 0.0
    %v1349 = vsel %vm887, %v1348, 0.0
    %v1350 = vpack.c.bf16 %v1349, %v1349
    %v1351 = vld [vmem:[#allocation16] sm:$0xf]
    %v1352 = vld [vmem:[#allocation16 + $0x4] sm:$0xf]
    %v1353 = vld [vmem:[#allocation16 + $0x8] sm:$0xf]
    %v1354 = vld [vmem:[#allocation16 + $0xc] sm:$0xf]
    %v1355 = vld [vmem:[#allocation16 + $0x10] sm:$0xf]
    %v1356 = vld [vmem:[#allocation16 + $0x14] sm:$0xf]
    %v1357 = vld [vmem:[#allocation16 + $0x18] sm:$0xf]
    %v1358 = vld [vmem:[#allocation16 + $0x1c] sm:$0xf]
    %v1359 = vld [vmem:[#allocation16 + $0x20] sm:$0xf]
    %v1360 = vld [vmem:[#allocation16 + $0x24] sm:$0xf]
    %v1361 = vld [vmem:[#allocation16 + $0x28] sm:$0xf]
    %v1362 = vld [vmem:[#allocation16 + $0x2c] sm:$0xf]
    %v1363 = vld [vmem:[#allocation16 + $0x30] sm:$0xf]
    %v1364 = vld [vmem:[#allocation16 + $0x34] sm:$0xf]
    %v1365 = vld [vmem:[#allocation16 + $0x38] sm:$0xf]
    %v1366 = vld [vmem:[#allocation16 + $0x3c] sm:$0xf]
    %v1367 = vld [vmem:[#allocation17] sm:$0x1]
    %v1369 = vlaneseq
    %v1370 = vshrl.u32 %v1369, 7
    %v1371 = vsub.s32 0, %v1370
    %v1372 = vrot.slane %v1367, %v1371
    %v1390 = vunpack.c.l.b16 %v1351
    %v1391 = vunpack.c.l.b16 %v1352
    %v1392 = vunpack.c.l.b16 %v1353
    %v1393 = vunpack.c.l.b16 %v1354
    %v1394 = vunpack.c.l.b16 %v1355
    %v1395 = vunpack.c.l.b16 %v1356
    %v1396 = vunpack.c.l.b16 %v1357
    %v1397 = vunpack.c.l.b16 %v1358
    %v1398 = vunpack.c.l.b16 %v1359
    %v1399 = vunpack.c.l.b16 %v1360
    %v1400 = vunpack.c.l.b16 %v1361
    %v1401 = vunpack.c.l.b16 %v1362
    %v1402 = vunpack.c.l.b16 %v1363
    %v1403 = vunpack.c.l.b16 %v1364
    %v1404 = vunpack.c.l.b16 %v1365
    %v1405 = vunpack.c.l.b16 %v1366
    %v1406 = vpack.c.b16 %v1391, %v1390
    %v1407 = vpack.c.b16 %v1393, %v1392
    %v1408 = vpack.c.b16 %v1395, %v1394
    %v1409 = vpack.c.b16 %v1397, %v1396
    %v1410 = vpack.c.b16 %v1399, %v1398
    %v1411 = vpack.c.b16 %v1401, %v1400
    %v1412 = vpack.c.b16 %v1403, %v1402
    %v1413 = vpack.c.b16 %v1405, %v1404
    %1422 = vmatprep.subr.bf16.mxu0 0
    %1423 = vmatpush1.bf16.msra.mxu0 %v1406
    %1424 = vmatprep.subr.bf16.mxu0 0
    %1425 = vmatpush1.bf16.msra.mxu0 %v1407
    %1426 = vmatprep.subr.bf16.mxu0 0
    %1427 = vmatpush1.bf16.msra.mxu0 %v1408
    %1428 = vmatprep.subr.bf16.mxu0 0
    %1429 = vmatpush1.bf16.msra.mxu0 %v1409
    %1430 = vmatprep.subr.bf16.mxu0 0
    %1431 = vmatpush1.bf16.msra.mxu0 %v1410
    %1432 = vmatprep.subr.bf16.mxu0 0
    %1433 = vmatpush1.bf16.msra.mxu0 %v1411
    %1434 = vmatprep.subr.bf16.mxu0 0
    %1435 = vmatpush1.bf16.msra.mxu0 %v1412
    %1436 = vmatprep.subr.bf16.mxu0 0
    %1437 = vmatpush1.bf16.msra.mxu0 %v1413
    %1438 = vmatprep.subr.bf16.mxu0 0
    %1439 = vmatpush1.bf16.msra.mxu0 0
    %1440 = vmatprep.subr.bf16.mxu0 0
    %1441 = vmatpush1.bf16.msra.mxu0 0
    %1442 = vmatprep.subr.bf16.mxu0 0
    %1443 = vmatpush1.bf16.msra.mxu0 0
    %1444 = vmatprep.subr.bf16.mxu0 0
    %1445 = vmatpush1.bf16.msra.mxu0 0
    %1446 = vmatprep.subr.bf16.mxu0 0
    %1447 = vmatpush1.bf16.msra.mxu0 0
    %1448 = vmatprep.subr.bf16.mxu0 0
    %1449 = vmatpush1.bf16.msra.mxu0 0
    %1450 = vmatprep.subr.bf16.mxu0 0
    %1451 = vmatpush1.bf16.msra.mxu0 0
    %1452 = vmatprep.subr.bf16.mxu0 0
    %1453 = vmatpush1.bf16.msra.mxu0 0
    %1454 = vmatprep.mubr.bf16.mxu0 0
    %1455 = vmatmul.mubr.bf16.gmra.mrb[0].mxu0 %v1350
    %v1456 = vpop.f32.mrb[0].mxu0
    %v1457 = vadd.f32 %v1372, %v1456
    %v1458 = vpop.f32.mrb[0].mxu0
    %v1459 = vpop.f32.mrb[0].mxu0
    %v1460 = vpop.f32.mrb[0].mxu0
    %1461 = vdwg.mxu0
    %v1462 = vsel %vm887, %v1457, 0.0
    %v1463 = vrot.slane %v1462, 4
    %v1464 = vadd.f32 %v1462, %v1463
    %v1465 = vrot.slane %v1464, 2
    %v1466 = vadd.f32 %v1464, %v1465
    %v1467 = vrot.slane %v1466, 1
    %v1468 = vadd.f32 %v1466, %v1467
    %v1469 = vmul.f32 %v1468, 0.125
    %v1470 = vsub.f32 %v1457, %v1469
    %v1471 = vsel %vm887, %v1470, 0.0
    %v1472 = vmul.f32 %v1471, %v1471
    %v1473 = vrot.slane %v1472, 4
    %v1474 = vadd.f32 %v1472, %v1473
    %v1475 = vrot.slane %v1474, 2
    %v1476 = vadd.f32 %v1474, %v1475
    %v1477 = vrot.slane %v1476, 1
    %v1478 = vadd.f32 %v1476, %v1477
    %v1479 = vmul.f32 %v1478, 0.125
    %v1480 = vld [vmem:[#allocation19] sm:$0x1]
    %v1481 = vadd.f32 %v1479, 1e-05
    %v1482 = vrsqrt.pop %v1481
    %v1483 = vmul.f32 %v1480, %v1482
    %v1485 = vlaneseq
    %v1486 = vshrl.u32 %v1485, 7
    %v1487 = vsub.s32 0, %v1486
    %v1488 = vrot.slane %v1483, %v1487
    %v1490 = vmul.f32 %v1470, %v1488
    %v1491 = vld [vmem:[#allocation20] sm:$0x1]
    %v1493 = vlaneseq
    %v1494 = vshrl.u32 %v1493, 7
    %v1495 = vsub.s32 0, %v1494
    %v1496 = vrot.slane %v1491, %v1495
    %v1498 = vadd.f32 %v1490, %v1496
    %v1499 = vsel %vm887, %v1498, 0.0
    %v1500 = vpack.c.bf16 %v1499, %v1499
    %v1501 = vld [vmem:[#allocation22] sm:$0xf]
    %v1502 = vld [vmem:[#allocation22 + $0x4] sm:$0xf]
    %v1503 = vld [vmem:[#allocation22 + $0x8] sm:$0xf]
    %v1504 = vld [vmem:[#allocation22 + $0xc] sm:$0xf]
    %v1505 = vld [vmem:[#allocation22 + $0x10] sm:$0xf]
    %v1506 = vld [vmem:[#allocation22 + $0x14] sm:$0xf]
    %v1507 = vld [vmem:[#allocation22 + $0x18] sm:$0xf]
    %v1508 = vld [vmem:[#allocation22 + $0x1c] sm:$0xf]
    %v1509 = vld [vmem:[#allocation22 + $0x20] sm:$0xf]
    %v1510 = vld [vmem:[#allocation22 + $0x24] sm:$0xf]
    %v1511 = vld [vmem:[#allocation22 + $0x28] sm:$0xf]
    %v1512 = vld [vmem:[#allocation22 + $0x2c] sm:$0xf]
    %v1513 = vld [vmem:[#allocation22 + $0x30] sm:$0xf]
    %v1514 = vld [vmem:[#allocation22 + $0x34] sm:$0xf]
    %v1515 = vld [vmem:[#allocation22 + $0x38] sm:$0xf]
    %v1516 = vld [vmem:[#allocation22 + $0x3c] sm:$0xf]
    %v1517 = vld [vmem:[#allocation23] sm:$0x1]
    %v1519 = vlaneseq
    %v1520 = vshrl.u32 %v1519, 7
    %v1521 = vsub.s32 0, %v1520
    %v1522 = vrot.slane %v1517, %v1521
    %v1540 = vunpack.c.l.b16 %v1501
    %v1541 = vunpack.c.l.b16 %v1502
    %v1542 = vunpack.c.l.b16 %v1503
    %v1543 = vunpack.c.l.b16 %v1504
    %v1544 = vunpack.c.l.b16 %v1505
    %v1545 = vunpack.c.l.b16 %v1506
    %v1546 = vunpack.c.l.b16 %v1507
    %v1547 = vunpack.c.l.b16 %v1508
    %v1548 = vunpack.c.l.b16 %v1509
    %v1549 = vunpack.c.l.b16 %v1510
    %v1550 = vunpack.c.l.b16 %v1511
    %v1551 = vunpack.c.l.b16 %v1512
    %v1552 = vunpack.c.l.b16 %v1513
    %v1553 = vunpack.c.l.b16 %v1514
    %v1554 = vunpack.c.l.b16 %v1515
    %v1555 = vunpack.c.l.b16 %v1516
    %v1556 = vpack.c.b16 %v1541, %v1540
    %v1557 = vpack.c.b16 %v1543, %v1542
    %v1558 = vpack.c.b16 %v1545, %v1544
    %v1559 = vpack.c.b16 %v1547, %v1546
    %v1560 = vpack.c.b16 %v1549, %v1548
    %v1561 = vpack.c.b16 %v1551, %v1550
    %v1562 = vpack.c.b16 %v1553, %v1552
    %v1563 = vpack.c.b16 %v1555, %v1554
    %1572 = vmatprep.subr.bf16.mxu0 0
    %1573 = vmatpush1.bf16.msra.mxu0 %v1556
    %1574 = vmatprep.subr.bf16.mxu0 0
    %1575 = vmatpush1.bf16.msra.mxu0 %v1557
    %1576 = vmatprep.subr.bf16.mxu0 0
    %1577 = vmatpush1.bf16.msra.mxu0 %v1558
    %1578 = vmatprep.subr.bf16.mxu0 0
    %1579 = vmatpush1.bf16.msra.mxu0 %v1559
    %1580 = vmatprep.subr.bf16.mxu0 0
    %1581 = vmatpush1.bf16.msra.mxu0 %v1560
    %1582 = vmatprep.subr.bf16.mxu0 0
    %1583 = vmatpush1.bf16.msra.mxu0 %v1561
    %1584 = vmatprep.subr.bf16.mxu0 0
    %1585 = vmatpush1.bf16.msra.mxu0 %v1562
    %1586 = vmatprep.subr.bf16.mxu0 0
    %1587 = vmatpush1.bf16.msra.mxu0 %v1563
    %1588 = vmatprep.subr.bf16.mxu0 0
    %1589 = vmatpush1.bf16.msra.mxu0 0
    %1590 = vmatprep.subr.bf16.mxu0 0
    %1591 = vmatpush1.bf16.msra.mxu0 0
    %1592 = vmatprep.subr.bf16.mxu0 0
    %1593 = vmatpush1.bf16.msra.mxu0 0
    %1594 = vmatprep.subr.bf16.mxu0 0
    %1595 = vmatpush1.bf16.msra.mxu0 0
    %1596 = vmatprep.subr.bf16.mxu0 0
    %1597 = vmatpush1.bf16.msra.mxu0 0
    %1598 = vmatprep.subr.bf16.mxu0 0
    %1599 = vmatpush1.bf16.msra.mxu0 0
    %1600 = vmatprep.subr.bf16.mxu0 0
    %1601 = vmatpush1.bf16.msra.mxu0 0
    %1602 = vmatprep.subr.bf16.mxu0 0
    %1603 = vmatpush1.bf16.msra.mxu0 0
    %1604 = vmatprep.mubr.bf16.mxu0 0
    %1605 = vmatmul.mubr.bf16.gmra.mrb[0].mxu0 %v1500
    %v1606 = vpop.f32.mrb[0].mxu0
    %v1607 = vadd.f32 %v1522, %v1606
    %v1608 = vpop.f32.mrb[0].mxu0
    %v1609 = vpop.f32.mrb[0].mxu0
    %v1610 = vpop.f32.mrb[0].mxu0
    %1611 = vdwg.mxu0
    %v1612 = vsel %vm887, %v1607, 0.0
    %v1613 = vmul.f32 %v1612, 0.5
    %v1614 = vmul.f32 %v1613, 1.442695
    %v1615 = vpow.pop %v1614
    %v1616 = vld [vmem:[%s3] sm:$0xff]
    %1618 = vrot.lane.b32.xlu0 %v1615, 96
    %v1619 = vpop.permute.xlu0 %1618
    %v1621 = vmul.f32 %v1616, %v1619
    %v1622 = vadd.f32 %v1621, %v1612
    %v1623 = vpack.c.bf16 %v1622, %v1622
    %v1624 = vld [vmem:[%s43] sm:$0xf]
    %v1625 = vld [vmem:[%s43 + $0x4] sm:$0xf]
    %v1626 = vld [vmem:[%s43 + $0x8] sm:$0xf]
    %v1627 = vld [vmem:[%s43 + $0xc] sm:$0xf]
    %v1628 = vld [vmem:[#allocation25] sm:$0x1]
    %v1630 = vlaneseq
    %v1631 = vshrl.u32 %v1630, 7
    %v1632 = vsub.s32 0, %v1631
    %v1633 = vrot.slane %v1628, %v1632
    %v1639 = vunpack.c.l.b16 %v1624
    %v1640 = vunpack.c.l.b16 %v1625
    %v1641 = vunpack.c.l.b16 %v1626
    %v1642 = vunpack.c.l.b16 %v1627
    %v1643 = vpack.c.b16 %v1640, %v1639
    %v1644 = vpack.c.b16 %v1642, %v1641
    %vm1647 = vcmask 261120
    %v1649 = vsel %vm1647, %v1623, 0
    %1651 = vmatprep.subr.bf16.mxu0 0
    %1652 = vmatpush1.bf16.msra.mxu0 %v1643
    %1653 = vmatprep.subr.bf16.mxu0 0
    %1654 = vmatpush1.bf16.msra.mxu0 %v1644
    %1655 = vmatprep.subr.bf16.mxu0 0
    %1656 = vmatpush1.bf16.msra.mxu0 0
    %1657 = vmatprep.subr.bf16.mxu0 0
    %1658 = vmatpush1.bf16.msra.mxu0 0
    %1659 = vmatprep.subr.bf16.mxu0 0
    %1660 = vmatpush1.bf16.msra.mxu0 0
    %1661 = vmatprep.subr.bf16.mxu0 0
    %1662 = vmatpush1.bf16.msra.mxu0 0
    %1663 = vmatprep.subr.bf16.mxu0 0
    %1664 = vmatpush1.bf16.msra.mxu0 0
    %1665 = vmatprep.subr.bf16.mxu0 0
    %1666 = vmatpush1.bf16.msra.mxu0 0
    %1667 = vmatprep.subr.bf16.mxu0 0
    %1668 = vmatpush1.bf16.msra.mxu0 0
    %1669 = vmatprep.subr.bf16.mxu0 0
    %1670 = vmatpush1.bf16.msra.mxu0 0
    %1671 = vmatprep.subr.bf16.mxu0 0
    %1672 = vmatpush1.bf16.msra.mxu0 0
    %1673 = vmatprep.subr.bf16.mxu0 0
    %1674 = vmatpush1.bf16.msra.mxu0 0
    %1675 = vmatprep.subr.bf16.mxu0 0
    %1676 = vmatpush1.bf16.msra.mxu0 0
    %1677 = vmatprep.subr.bf16.mxu0 0
    %1678 = vmatpush1.bf16.msra.mxu0 0
    %1679 = vmatprep.subr.bf16.mxu0 0
    %1680 = vmatpush1.bf16.msra.mxu0 0
    %1681 = vmatprep.subr.bf16.mxu0 0
    %1682 = vmatpush1.bf16.msra.mxu0 0
    %1683 = vmatprep.mubr.bf16.mxu0 0
    %1684 = vmatmul.mubr.bf16.gmra.mrb[0].mxu0 %v1649
    %v1685 = vpop.f32.mrb[0].mxu0
    %v1686 = vadd.f32 %v1633, %v1685
    %v1687 = vpop.f32.mrb[0].mxu0
    %v1688 = vpop.f32.mrb[0].mxu0
    %v1689 = vpop.f32.mrb[0].mxu0
    %1690 = vdwg.mxu0
    %v1691 = vsel %vm887, %v1686, 0.0
    %v1692 = vpack.c.bf16 %v1691, %v1691
    %v1693 = vld [vmem:[#allocation26] sm:$0xf]
    %v1694 = vld [vmem:[#allocation26 + $0x4] sm:$0xf]
    %v1695 = vld [vmem:[#allocation26 + $0x8] sm:$0xf]
    %v1696 = vld [vmem:[#allocation26 + $0xc] sm:$0xf]
    %v1697 = vld [vmem:[#allocation26 + $0x10] sm:$0xf]
    %v1698 = vld [vmem:[#allocation26 + $0x14] sm:$0xf]
    %v1699 = vld [vmem:[#allocation26 + $0x18] sm:$0xf]
    %v1700 = vld [vmem:[#allocation26 + $0x1c] sm:$0xf]
    %v1701 = vld [vmem:[#allocation26 + $0x20] sm:$0xf]
    %v1702 = vld [vmem:[#allocation26 + $0x24] sm:$0xf]
    %v1703 = vld [vmem:[#allocation26 + $0x28] sm:$0xf]
    %v1704 = vld [vmem:[#allocation26 + $0x2c] sm:$0xf]
    %v1705 = vld [vmem:[#allocation26 + $0x30] sm:$0xf]
    %v1706 = vld [vmem:[#allocation26 + $0x34] sm:$0xf]
    %v1707 = vld [vmem:[#allocation26 + $0x38] sm:$0xf]
    %v1708 = vld [vmem:[#allocation26 + $0x3c] sm:$0xf]
    %v1709 = vld [vmem:[#allocation28] sm:$0x1]
    %v1711 = vlaneseq
    %v1712 = vshrl.u32 %v1711, 7
    %v1713 = vsub.s32 0, %v1712
    %v1714 = vrot.slane %v1709, %v1713
    %v1732 = vunpack.c.l.b16 %v1693
    %v1733 = vunpack.c.l.b16 %v1694
    %v1734 = vunpack.c.l.b16 %v1695
    %v1735 = vunpack.c.l.b16 %v1696
    %v1736 = vunpack.c.l.b16 %v1697
    %v1737 = vunpack.c.l.b16 %v1698
    %v1738 = vunpack.c.l.b16 %v1699
    %v1739 = vunpack.c.l.b16 %v1700
    %v1740 = vunpack.c.l.b16 %v1701
    %v1741 = vunpack.c.l.b16 %v1702
    %v1742 = vunpack.c.l.b16 %v1703
    %v1743 = vunpack.c.l.b16 %v1704
    %v1744 = vunpack.c.l.b16 %v1705
    %v1745 = vunpack.c.l.b16 %v1706
    %v1746 = vunpack.c.l.b16 %v1707
    %v1747 = vunpack.c.l.b16 %v1708
    %v1748 = vpack.c.b16 %v1733, %v1732
    %v1749 = vpack.c.b16 %v1735, %v1734
    %v1750 = vpack.c.b16 %v1737, %v1736
    %v1751 = vpack.c.b16 %v1739, %v1738
    %v1752 = vpack.c.b16 %v1741, %v1740
    %v1753 = vpack.c.b16 %v1743, %v1742
    %v1754 = vpack.c.b16 %v1745, %v1744
    %v1755 = vpack.c.b16 %v1747, %v1746
    %1764 = vmatprep.subr.bf16.mxu0 0
    %1765 = vmatpush1.bf16.msra.mxu0 %v1748
    %1766 = vmatprep.subr.bf16.mxu0 0
    %1767 = vmatpush1.bf16.msra.mxu0 %v1749
    %1768 = vmatprep.subr.bf16.mxu0 0
    %1769 = vmatpush1.bf16.msra.mxu0 %v1750
    %1770 = vmatprep.subr.bf16.mxu0 0
    %1771 = vmatpush1.bf16.msra.mxu0 %v1751
    %1772 = vmatprep.subr.bf16.mxu0 0
    %1773 = vmatpush1.bf16.msra.mxu0 %v1752
    %1774 = vmatprep.subr.bf16.mxu0 0
    %1775 = vmatpush1.bf16.msra.mxu0 %v1753
    %1776 = vmatprep.subr.bf16.mxu0 0
    %1777 = vmatpush1.bf16.msra.mxu0 %v1754
    %1778 = vmatprep.subr.bf16.mxu0 0
    %1779 = vmatpush1.bf16.msra.mxu0 %v1755
    %1780 = vmatprep.subr.bf16.mxu0 0
    %1781 = vmatpush1.bf16.msra.mxu0 0
    %1782 = vmatprep.subr.bf16.mxu0 0
    %1783 = vmatpush1.bf16.msra.mxu0 0
    %1784 = vmatprep.subr.bf16.mxu0 0
    %1785 = vmatpush1.bf16.msra.mxu0 0
    %1786 = vmatprep.subr.bf16.mxu0 0
    %1787 = vmatpush1.bf16.msra.mxu0 0
    %1788 = vmatprep.subr.bf16.mxu0 0
    %1789 = vmatpush1.bf16.msra.mxu0 0
    %1790 = vmatprep.subr.bf16.mxu0 0
    %1791 = vmatpush1.bf16.msra.mxu0 0
    %1792 = vmatprep.subr.bf16.mxu0 0
    %1793 = vmatpush1.bf16.msra.mxu0 0
    %1794 = vmatprep.subr.bf16.mxu0 0
    %1795 = vmatpush1.bf16.msra.mxu0 0
    %1796 = vmatprep.mubr.bf16.mxu0 0
    %1797 = vmatmul.mubr.bf16.gmra.mrb[0].mxu0 %v1692
    %v1798 = vpop.f32.mrb[0].mxu0
    %v1799 = vadd.f32 %v1714, %v1798
    %v1800 = vpop.f32.mrb[0].mxu0
    %v1801 = vpop.f32.mrb[0].mxu0
    %v1802 = vpop.f32.mrb[0].mxu0
    %1803 = vdwg.mxu0
    %v1804 = vsel %vm887, %v1799, 0.0
    %v1805 = vrot.slane %v1804, 4
    %v1806 = vadd.f32 %v1804, %v1805
    %v1807 = vrot.slane %v1806, 2
    %v1808 = vadd.f32 %v1806, %v1807
    %v1809 = vrot.slane %v1808, 1
    %v1810 = vadd.f32 %v1808, %v1809
    %v1811 = vmul.f32 %v1810, 0.125
    %v1812 = vsub.f32 %v1799, %v1811
    %v1813 = vsel %vm887, %v1812, 0.0
    %v1814 = vmul.f32 %v1813, %v1813
    %v1815 = vrot.slane %v1814, 4
    %v1816 = vadd.f32 %v1814, %v1815
    %v1817 = vrot.slane %v1816, 2
    %v1818 = vadd.f32 %v1816, %v1817
    %v1819 = vrot.slane %v1818, 1
    %v1820 = vadd.f32 %v1818, %v1819
    %v1821 = vmul.f32 %v1820, 0.125
    %v1822 = vld [vmem:[#allocation29] sm:$0x1]
    %v1823 = vadd.f32 %v1821, 1e-05
    %v1824 = vrsqrt.pop %v1823
    %v1825 = vmul.f32 %v1822, %v1824
    %v1827 = vlaneseq
    %v1828 = vshrl.u32 %v1827, 7
    %v1829 = vsub.s32 0, %v1828
    %v1830 = vrot.slane %v1825, %v1829
    %v1832 = vmul.f32 %v1812, %v1830
    %v1833 = vld [vmem:[#allocation31] sm:$0x1]
    %v1835 = vlaneseq
    %v1836 = vshrl.u32 %v1835, 7
    %v1837 = vsub.s32 0, %v1836
    %v1838 = vrot.slane %v1833, %v1837
    %v1840 = vadd.f32 %v1832, %v1838
    %v1841 = vmax.f32 %v1840, 0.0
    %v1842 = vsel %vm887, %v1841, 0.0
    %v1843 = vpack.c.bf16 %v1842, %v1842
    %v1844 = vld [vmem:[#allocation32] sm:$0xf]
    %v1845 = vld [vmem:[#allocation32 + $0x4] sm:$0xf]
    %v1846 = vld [vmem:[#allocation32 + $0x8] sm:$0xf]
    %v1847 = vld [vmem:[#allocation32 + $0xc] sm:$0xf]
    %v1848 = vld [vmem:[#allocation32 + $0x10] sm:$0xf]
    %v1849 = vld [vmem:[#allocation32 + $0x14] sm:$0xf]
    %v1850 = vld [vmem:[#allocation32 + $0x18] sm:$0xf]
    %v1851 = vld [vmem:[#allocation32 + $0x1c] sm:$0xf]
    %v1852 = vld [vmem:[#allocation32 + $0x20] sm:$0xf]
    %v1853 = vld [vmem:[#allocation32 + $0x24] sm:$0xf]
    %v1854 = vld [vmem:[#allocation32 + $0x28] sm:$0xf]
    %v1855 = vld [vmem:[#allocation32 + $0x2c] sm:$0xf]
    %v1856 = vld [vmem:[#allocation32 + $0x30] sm:$0xf]
    %v1857 = vld [vmem:[#allocation32 + $0x34] sm:$0xf]
    %v1858 = vld [vmem:[#allocation32 + $0x38] sm:$0xf]
    %v1859 = vld [vmem:[#allocation32 + $0x3c] sm:$0xf]
    %v1860 = vld [vmem:[#allocation34] sm:$0x1]
    %v1862 = vlaneseq
    %v1863 = vshrl.u32 %v1862, 7
    %v1864 = vsub.s32 0, %v1863
    %v1865 = vrot.slane %v1860, %v1864
    %v1883 = vunpack.c.l.b16 %v1844
    %v1884 = vunpack.c.l.b16 %v1845
    %v1885 = vunpack.c.l.b16 %v1846
    %v1886 = vunpack.c.l.b16 %v1847
    %v1887 = vunpack.c.l.b16 %v1848
    %v1888 = vunpack.c.l.b16 %v1849
    %v1889 = vunpack.c.l.b16 %v1850
    %v1890 = vunpack.c.l.b16 %v1851
    %v1891 = vunpack.c.l.b16 %v1852
    %v1892 = vunpack.c.l.b16 %v1853
    %v1893 = vunpack.c.l.b16 %v1854
    %v1894 = vunpack.c.l.b16 %v1855
    %v1895 = vunpack.c.l.b16 %v1856
    %v1896 = vunpack.c.l.b16 %v1857
    %v1897 = vunpack.c.l.b16 %v1858
    %v1898 = vunpack.c.l.b16 %v1859
    %v1899 = vpack.c.b16 %v1884, %v1883
    %v1900 = vpack.c.b16 %v1886, %v1885
    %v1901 = vpack.c.b16 %v1888, %v1887
    %v1902 = vpack.c.b16 %v1890, %v1889
    %v1903 = vpack.c.b16 %v1892, %v1891
    %v1904 = vpack.c.b16 %v1894, %v1893
    %v1905 = vpack.c.b16 %v1896, %v1895
    %v1906 = vpack.c.b16 %v1898, %v1897
    %1915 = vmatprep.subr.bf16.mxu0 0
    %1916 = vmatpush1.bf16.msra.mxu0 %v1899
    %1917 = vmatprep.subr.bf16.mxu0 0
    %1918 = vmatpush1.bf16.msra.mxu0 %v1900
    %1919 = vmatprep.subr.bf16.mxu0 0
    %1920 = vmatpush1.bf16.msra.mxu0 %v1901
    %1921 = vmatprep.subr.bf16.mxu0 0
    %1922 = vmatpush1.bf16.msra.mxu0 %v1902
    %1923 = vmatprep.subr.bf16.mxu0 0
    %1924 = vmatpush1.bf16.msra.mxu0 %v1903
    %1925 = vmatprep.subr.bf16.mxu0 0
    %1926 = vmatpush1.bf16.msra.mxu0 %v1904
    %1927 = vmatprep.subr.bf16.mxu0 0
    %1928 = vmatpush1.bf16.msra.mxu0 %v1905
    %1929 = vmatprep.subr.bf16.mxu0 0
    %1930 = vmatpush1.bf16.msra.mxu0 %v1906
    %1931 = vmatprep.subr.bf16.mxu0 0
    %1932 = vmatpush1.bf16.msra.mxu0 0
    %1933 = vmatprep.subr.bf16.mxu0 0
    %1934 = vmatpush1.bf16.msra.mxu0 0
    %1935 = vmatprep.subr.bf16.mxu0 0
    %1936 = vmatpush1.bf16.msra.mxu0 0
    %1937 = vmatprep.subr.bf16.mxu0 0
    %1938 = vmatpush1.bf16.msra.mxu0 0
    %1939 = vmatprep.subr.bf16.mxu0 0
    %1940 = vmatpush1.bf16.msra.mxu0 0
    %1941 = vmatprep.subr.bf16.mxu0 0
    %1942 = vmatpush1.bf16.msra.mxu0 0
    %1943 = vmatprep.subr.bf16.mxu0 0
    %1944 = vmatpush1.bf16.msra.mxu0 0
    %1945 = vmatprep.subr.bf16.mxu0 0
    %1946 = vmatpush1.bf16.msra.mxu0 0
    %1947 = vmatprep.mubr.bf16.mxu0 0
    %1948 = vmatmul.mubr.bf16.gmra.mrb[0].mxu0 %v1843
    %v1949 = vpop.f32.mrb[0].mxu0
    %v1950 = vadd.f32 %v1865, %v1949
    %v1951 = vpop.f32.mrb[0].mxu0
    %v1952 = vpop.f32.mrb[0].mxu0
    %v1953 = vpop.f32.mrb[0].mxu0
    %1954 = vdwg.mxu0
    %v1955 = vsel %vm887, %v1950, 0.0
    %v1956 = vrot.slane %v1955, 4
    %v1957 = vadd.f32 %v1955, %v1956
    %v1958 = vrot.slane %v1957, 2
    %v1959 = vadd.f32 %v1957, %v1958
    %v1960 = vrot.slane %v1959, 1
    %v1961 = vadd.f32 %v1959, %v1960
    %v1962 = vmul.f32 %v1961, 0.125
    %v1963 = vsub.f32 %v1950, %v1962
    %v1964 = vsel %vm887, %v1963, 0.0
    %v1965 = vmul.f32 %v1964, %v1964
    %v1966 = vrot.slane %v1965, 4
    %v1967 = vadd.f32 %v1965, %v1966
    %v1968 = vrot.slane %v1967, 2
    %v1969 = vadd.f32 %v1967, %v1968
    %v1970 = vrot.slane %v1969, 1
    %v1971 = vadd.f32 %v1969, %v1970
    %v1972 = vmul.f32 %v1971, 0.125
    %v1973 = vld [vmem:[#allocation35] sm:$0x1]
    %v1974 = vadd.f32 %v1972, 1e-05
    %v1975 = vrsqrt.pop %v1974
    %v1976 = vmul.f32 %v1973, %v1975
    %v1978 = vlaneseq
    %v1979 = vshrl.u32 %v1978, 7
    %v1980 = vsub.s32 0, %v1979
    %v1981 = vrot.slane %v1976, %v1980
    %v1983 = vmul.f32 %v1963, %v1981
    %v1984 = vld [vmem:[#allocation37] sm:$0x1]
    %v1986 = vlaneseq
    %v1987 = vshrl.u32 %v1986, 7
    %v1988 = vsub.s32 0, %v1987
    %v1989 = vrot.slane %v1984, %v1988
    %v1991 = vadd.f32 %v1983, %v1989
    %v1992 = vmax.f32 %v1991, 0.0
    %v1993 = vsel %vm887, %v1992, 0.0
    %v1994 = vpack.c.bf16 %v1993, %v1993
    %v1995 = vld [vmem:[#allocation38] sm:$0xff]
    %v1996 = vld [vmem:[#allocation38 + $0x8] sm:$0xff]
    %v1997 = vld [vmem:[#allocation38 + $0x10] sm:$0xff]
    %v1998 = vld [vmem:[#allocation38 + $0x18] sm:$0xff]
    %v1999 = vld [vmem:[#allocation38 + $0x20] sm:$0xff]
    %v2000 = vld [vmem:[#allocation38 + $0x28] sm:$0xff]
    %v2001 = vld [vmem:[#allocation38 + $0x30] sm:$0xff]
    %v2002 = vld [vmem:[#allocation38 + $0x38] sm:$0xff]
    %v2003 = vld [vmem:[#allocation38 + $0x40] sm:$0xff]
    %v2004 = vld [vmem:[#allocation38 + $0x48] sm:$0xff]
    %v2005 = vld [vmem:[#allocation38 + $0x50] sm:$0xff]
    %v2006 = vld [vmem:[#allocation38 + $0x58] sm:$0xff]
    %v2007 = vld [vmem:[#allocation38 + $0x60] sm:$0xff]
    %v2008 = vld [vmem:[#allocation38 + $0x68] sm:$0xff]
    %v2009 = vld [vmem:[#allocation38 + $0x70] sm:$0xff]
    %v2010 = vld [vmem:[#allocation38 + $0x78] sm:$0xff]
    %v2011 = vld [vmem:[#allocation40] sm:$0x3]
    %v2013 = vlaneseq
    %v2014 = vshrl.u32 %v2013, 7
    %v2015 = vsub.s32 0, %v2014
    %v2016 = vrot.slane %v2011, %v2015
    %v2017 = vlaneseq
    %v2018 = vshrl.u32 %v2017, 7
    %v2019 = vsub.s32 1, %v2018
    %v2020 = vrot.slane %v2011, %v2019
    %v2039 = vunpack.c.l.b16 %v1995
    %v2040 = vunpack.c.h.b16 %v1995
    %v2041 = vunpack.c.l.b16 %v1996
    %v2042 = vunpack.c.h.b16 %v1996
    %v2043 = vunpack.c.l.b16 %v1997
    %v2044 = vunpack.c.h.b16 %v1997
    %v2045 = vunpack.c.l.b16 %v1998
    %v2046 = vunpack.c.h.b16 %v1998
    %v2047 = vunpack.c.l.b16 %v1999
    %v2048 = vunpack.c.h.b16 %v1999
    %v2049 = vunpack.c.l.b16 %v2000
    %v2050 = vunpack.c.h.b16 %v2000
    %v2051 = vunpack.c.l.b16 %v2001
    %v2052 = vunpack.c.h.b16 %v2001
    %v2053 = vunpack.c.l.b16 %v2002
    %v2054 = vunpack.c.h.b16 %v2002
    %v2055 = vunpack.c.l.b16 %v2003
    %v2056 = vunpack.c.h.b16 %v2003
    %v2057 = vunpack.c.l.b16 %v2004
    %v2058 = vunpack.c.h.b16 %v2004
    %v2059 = vunpack.c.l.b16 %v2005
    %v2060 = vunpack.c.h.b16 %v2005
    %v2061 = vunpack.c.l.b16 %v2006
    %v2062 = vunpack.c.h.b16 %v2006
    %v2063 = vunpack.c.l.b16 %v2007
    %v2064 = vunpack.c.h.b16 %v2007
    %v2065 = vunpack.c.l.b16 %v2008
    %v2066 = vunpack.c.h.b16 %v2008
    %v2067 = vunpack.c.l.b16 %v2009
    %v2068 = vunpack.c.h.b16 %v2009
    %v2069 = vunpack.c.l.b16 %v2010
    %v2070 = vunpack.c.h.b16 %v2010
    %v2071 = vpack.c.b16 %v2041, %v2039
    %v2072 = vpack.c.b16 %v2042, %v2040
    %v2073 = vpack.c.b16 %v2045, %v2043
    %v2074 = vpack.c.b16 %v2046, %v2044
    %v2075 = vpack.c.b16 %v2049, %v2047
    %v2076 = vpack.c.b16 %v2050, %v2048
    %v2077 = vpack.c.b16 %v2053, %v2051
    %v2078 = vpack.c.b16 %v2054, %v2052
    %v2079 = vpack.c.b16 %v2057, %v2055
    %v2080 = vpack.c.b16 %v2058, %v2056
    %v2081 = vpack.c.b16 %v2061, %v2059
    %v2082 = vpack.c.b16 %v2062, %v2060
    %v2083 = vpack.c.b16 %v2065, %v2063
    %v2084 = vpack.c.b16 %v2066, %v2064
    %v2085 = vpack.c.b16 %v2069, %v2067
    %v2086 = vpack.c.b16 %v2070, %v2068
    %2103 = vmatprep.subr.bf16.mxu0 %v2072
    %2104 = vmatpush1.bf16.msra.mxu0 %v2071
    %2105 = vmatprep.subr.bf16.mxu0 %v2074
    %2106 = vmatpush1.bf16.msra.mxu0 %v2073
    %2107 = vmatprep.subr.bf16.mxu0 %v2076
    %2108 = vmatpush1.bf16.msra.mxu0 %v2075
    %2109 = vmatprep.subr.bf16.mxu0 %v2078
    %2110 = vmatpush1.bf16.msra.mxu0 %v2077
    %2111 = vmatprep.subr.bf16.mxu0 %v2080
    %2112 = vmatpush1.bf16.msra.mxu0 %v2079
    %2113 = vmatprep.subr.bf16.mxu0 %v2082
    %2114 = vmatpush1.bf16.msra.mxu0 %v2081
    %2115 = vmatprep.subr.bf16.mxu0 %v2084
    %2116 = vmatpush1.bf16.msra.mxu0 %v2083
    %2117 = vmatprep.subr.bf16.mxu0 %v2086
    %2118 = vmatpush1.bf16.msra.mxu0 %v2085
    %2119 = vmatprep.subr.bf16.mxu0 0
    %2120 = vmatpush1.bf16.msra.mxu0 0
    %2121 = vmatprep.subr.bf16.mxu0 0
    %2122 = vmatpush1.bf16.msra.mxu0 0
    %2123 = vmatprep.subr.bf16.mxu0 0
    %2124 = vmatpush1.bf16.msra.mxu0 0
    %2125 = vmatprep.subr.bf16.mxu0 0
    %2126 = vmatpush1.bf16.msra.mxu0 0
    %2127 = vmatprep.subr.bf16.mxu0 0
    %2128 = vmatpush1.bf16.msra.mxu0 0
    %2129 = vmatprep.subr.bf16.mxu0 0
    %2130 = vmatpush1.bf16.msra.mxu0 0
    %2131 = vmatprep.subr.bf16.mxu0 0
    %2132 = vmatpush1.bf16.msra.mxu0 0
    %2133 = vmatprep.subr.bf16.mxu0 0
    %2134 = vmatpush1.bf16.msra.mxu0 0
    %2135 = vmatprep.mubr.bf16.mxu0 0
    %2136 = vmatmul.mubr.bf16.gmra.mrb[0].mxu0 %v1994
    %v2137 = vpop.f32.mrb[0].mxu0
    %v2138 = vadd.f32 %v2016, %v2137
    %v2139 = vpop.f32.mrb[0].mxu0
    %v2140 = vadd.f32 %v2020, %v2139
    %v2141 = vpop.f32.mrb[0].mxu0
    %v2142 = vpop.f32.mrb[0].mxu0
    %2143 = vdwg.mxu0
    %v2144 = vsel %vm887, %v2138, 0.0
    %v2145 = vsel %vm887, %v2140, 0.0
    %v2146 = vrot.slane %v2144, 4
    %v2147 = vadd.f32 %v2144, %v2146
    %v2148 = vrot.slane %v2147, 2
    %v2149 = vadd.f32 %v2147, %v2148
    %v2150 = vrot.slane %v2149, 1
    %v2151 = vadd.f32 %v2149, %v2150
    %v2152 = vrot.slane %v2145, 4
    %v2153 = vadd.f32 %v2145, %v2152
    %v2154 = vrot.slane %v2153, 2
    %v2155 = vadd.f32 %v2153, %v2154
    %v2156 = vrot.slane %v2155, 1
    %v2157 = vadd.f32 %v2155, %v2156
    %v2158 = vmul.f32 %v2151, 0.125
    %v2159 = vmul.f32 %v2157, 0.125
    %v2160 = vsub.f32 %v2138, %v2158
    %v2161 = vsub.f32 %v2140, %v2159
    %v2162 = vsel %vm887, %v2160, 0.0
    %v2163 = vsel %vm887, %v2161, 0.0
    %v2164 = vmul.f32 %v2162, %v2162
    %v2165 = vmul.f32 %v2163, %v2163
    %v2166 = vrot.slane %v2164, 4
    %v2167 = vadd.f32 %v2164, %v2166
    %v2168 = vrot.slane %v2167, 2
    %v2169 = vadd.f32 %v2167, %v2168
    %v2170 = vrot.slane %v2169, 1
    %v2171 = vadd.f32 %v2169, %v2170
    %v2172 = vrot.slane %v2165, 4
    %v2173 = vadd.f32 %v2165, %v2172
    %v2174 = vrot.slane %v2173, 2
    %v2175 = vadd.f32 %v2173, %v2174
    %v2176 = vrot.slane %v2175, 1
    %v2177 = vadd.f32 %v2175, %v2176
    %v2178 = vmul.f32 %v2171, 0.125
    %v2179 = vmul.f32 %v2177, 0.125
    %v2180 = vld [vmem:[#allocation41] sm:$0x3]
    %v2181 = vadd.f32 %v2178, 1e-05
    %v2182 = vadd.f32 %v2179, 1e-05
    %v2183 = vrsqrt.pop %v2181
    %v2184 = vrsqrt.pop %v2182
    %v2187 = vcombine.low %v2183, %v2184
    %v2189 = vunpack.c.l.s4 1966171168
    %v2190 = vunpack.c.0.s8 %v2189
    %v2191 = vlaneseq
    %v2192 = vshrl.u32 %v2191, 7
    %v2193 = vsub.s32 %v2190, %v2192
    %v2194 = vrot.slane %v2187, %v2193
    %v2196 = vunpack.c.l.s4 1966171168
    %v2197 = vunpack.c.0.s8 %v2196
    %v2198 = vlaneseq
    %v2199 = vshrl.u32 %v2198, 7
    %v2200 = vsub.s32 %v2197, %v2199
    %v2201 = vrot.slane %v2194, %v2200
    %v2203 = vmul.f32 %v2180, %v2201
    %v2205 = vlaneseq
    %v2206 = vshrl.u32 %v2205, 7
    %v2207 = vsub.s32 0, %v2206
    %v2208 = vrot.slane %v2203, %v2207
    %v2209 = vlaneseq
    %v2210 = vshrl.u32 %v2209, 7
    %v2211 = vsub.s32 1, %v2210
    %v2212 = vrot.slane %v2203, %v2211
    %v2215 = vmul.f32 %v2160, %v2208
    %v2216 = vmul.f32 %v2161, %v2212
    %v2217 = vld [vmem:[#allocation43] sm:$0x3]
    %v2219 = vlaneseq
    %v2220 = vshrl.u32 %v2219, 7
    %v2221 = vsub.s32 0, %v2220
    %v2222 = vrot.slane %v2217, %v2221
    %v2223 = vlaneseq
    %v2224 = vshrl.u32 %v2223, 7
    %v2225 = vsub.s32 1, %v2224
    %v2226 = vrot.slane %v2217, %v2225
    %v2229 = vadd.f32 %v2215, %v2222
    %v2230 = vadd.f32 %v2216, %v2226
    %v2231 = vmax.f32 %v2229, 0.0
    %v2232 = vmax.f32 %v2230, 0.0
    %v2233 = vtanh.pop %v2231
    %v2234 = vtanh.pop %v2232
    %v2235 = vsel %vm887, %v2233, 0.0
    %v2236 = vsel %vm887, %v2234, 0.0
    %v2237 = vpack.c.bf16 %v2235, %v2235
    %v2238 = vpack.c.bf16 %v2236, %v2236
    %v2239 = vld [vmem:[%s71] sm:$0xff]
    %v2240 = vld [vmem:[%s71 + $0x8] sm:$0xf]
    %v2241 = vld [vmem:[%s71 + $0xc] sm:$0xff]
    %v2242 = vld [vmem:[%s71 + $0x14] sm:$0xf]
    %v2243 = vld [vmem:[%s71 + $0x18] sm:$0xff]
    %v2244 = vld [vmem:[%s71 + $0x20] sm:$0xf]
    %v2245 = vld [vmem:[%s71 + $0x24] sm:$0xff]
    %v2246 = vld [vmem:[%s71 + $0x2c] sm:$0xf]
    %v2247 = vld [vmem:[%s71 + $0x30] sm:$0xff]
    %v2248 = vld [vmem:[%s71 + $0x38] sm:$0xf]
    %v2249 = vld [vmem:[%s71 + $0x3c] sm:$0xff]
    %v2250 = vld [vmem:[%s71 + $0x44] sm:$0xf]
    %v2251 = vld [vmem:[%s71 + $0x48] sm:$0xff]
    %v2252 = vld [vmem:[%s71 + $0x50] sm:$0xf]
    %v2253 = vld [vmem:[%s71 + $0x54] sm:$0xff]
    %v2254 = vld [vmem:[%s71 + $0x5c] sm:$0xf]
    %v2255 = vld [vmem:[%s71 + $0x60] sm:$0xff]
    %v2256 = vld [vmem:[%s71 + $0x68] sm:$0xf]
    %v2257 = vld [vmem:[%s71 + $0x6c] sm:$0xff]
    %v2258 = vld [vmem:[%s71 + $0x74] sm:$0xf]
    %v2259 = vld [vmem:[%s71 + $0x78] sm:$0xff]
    %v2260 = vld [vmem:[%s71 + $0x80] sm:$0xf]
    %v2261 = vld [vmem:[%s71 + $0x84] sm:$0xff]
    %v2262 = vld [vmem:[%s71 + $0x8c] sm:$0xf]
    %v2263 = vld [vmem:[%s71 + $0x90] sm:$0xff]
    %v2264 = vld [vmem:[%s71 + $0x98] sm:$0xf]
    %v2265 = vld [vmem:[%s71 + $0x9c] sm:$0xff]
    %v2266 = vld [vmem:[%s71 + $0xa4] sm:$0xf]
    %v2267 = vld [vmem:[%s71 + $0xa8] sm:$0xff]
    %v2268 = vld [vmem:[%s71 + $0xb0] sm:$0xf]
    %v2269 = vld [vmem:[%s71 + $0xb4] sm:$0xff]
    %v2270 = vld [vmem:[%s71 + $0xbc] sm:$0xf]
    %v2271 = vld [vmem:[%s71 + $0xc0] sm:$0xff]
    %v2272 = vld [vmem:[%s71 + $0xc8] sm:$0xf]
    %v2273 = vld [vmem:[%s71 + $0xcc] sm:$0xff]
    %v2274 = vld [vmem:[%s71 + $0xd4] sm:$0xf]
    %v2275 = vld [vmem:[%s71 + $0xd8] sm:$0xff]
    %v2276 = vld [vmem:[%s71 + $0xe0] sm:$0xf]
    %v2277 = vld [vmem:[%s71 + $0xe4] sm:$0xff]
    %v2278 = vld [vmem:[%s71 + $0xec] sm:$0xf]
    %v2279 = vld [vmem:[%s71 + $0xf0] sm:$0xff]
    %v2280 = vld [vmem:[%s71 + $0xf8] sm:$0xf]
    %v2281 = vld [vmem:[%s71 + $0xfc] sm:$0xff]
    %v2282 = vld [vmem:[%s71 + $0x104] sm:$0xf]
    %v2283 = vld [vmem:[%s71 + $0x108] sm:$0xff]
    %v2284 = vld [vmem:[%s71 + $0x110] sm:$0xf]
    %v2285 = vld [vmem:[%s71 + $0x114] sm:$0xff]
    %v2286 = vld [vmem:[%s71 + $0x11c] sm:$0xf]
    %v2287 = vld [vmem:[%s71 + $0x120] sm:$0xff]
    %v2288 = vld [vmem:[%s71 + $0x128] sm:$0xf]
    %v2289 = vld [vmem:[%s71 + $0x12c] sm:$0xff]
    %v2290 = vld [vmem:[%s71 + $0x134] sm:$0xf]
    %v2291 = vld [vmem:[%s71 + $0x138] sm:$0xff]
    %v2292 = vld [vmem:[%s71 + $0x140] sm:$0xf]
    %v2293 = vld [vmem:[%s71 + $0x144] sm:$0xff]
    %v2294 = vld [vmem:[%s71 + $0x14c] sm:$0xf]
    %v2295 = vld [vmem:[%s71 + $0x150] sm:$0xff]
    %v2296 = vld [vmem:[%s71 + $0x158] sm:$0xf]
    %v2297 = vld [vmem:[%s71 + $0x15c] sm:$0xff]
    %v2298 = vld [vmem:[%s71 + $0x164] sm:$0xf]
    %v2299 = vld [vmem:[%s71 + $0x168] sm:$0xff]
    %v2300 = vld [vmem:[%s71 + $0x170] sm:$0xf]
    %v2301 = vld [vmem:[%s71 + $0x174] sm:$0xff]
    %v2302 = vld [vmem:[%s71 + $0x17c] sm:$0xf]
    %v2303 = vld [vmem:[%s73] sm:$0x7]
    %v2305 = vlaneseq
    %v2306 = vshrl.u32 %v2305, 7
    %v2307 = vsub.s32 0, %v2306
    %v2308 = vrot.slane %v2303, %v2307
    %v2309 = vlaneseq
    %v2310 = vshrl.u32 %v2309, 7
    %v2311 = vsub.s32 1, %v2310
    %v2312 = vrot.slane %v2303, %v2311
    %v2313 = vlaneseq
    %v2314 = vshrl.u32 %v2313, 7
    %v2315 = vsub.s32 2, %v2314
    %v2316 = vrot.slane %v2303, %v2315
    %v2384 = vunpack.c.l.b16 %v2239
    %v2385 = vunpack.c.h.b16 %v2239
    %v2386 = vunpack.c.l.b16 %v2240
    %v2387 = vunpack.c.l.b16 %v2241
    %v2388 = vunpack.c.h.b16 %v2241
    %v2389 = vunpack.c.l.b16 %v2242
    %v2390 = vunpack.c.l.b16 %v2243
    %v2391 = vunpack.c.h.b16 %v2243
    %v2392 = vunpack.c.l.b16 %v2244
    %v2393 = vunpack.c.l.b16 %v2245
    %v2394 = vunpack.c.h.b16 %v2245
    %v2395 = vunpack.c.l.b16 %v2246
    %v2396 = vunpack.c.l.b16 %v2247
    %v2397 = vunpack.c.h.b16 %v2247
    %v2398 = vunpack.c.l.b16 %v2248
    %v2399 = vunpack.c.l.b16 %v2249
    %v2400 = vunpack.c.h.b16 %v2249
    %v2401 = vunpack.c.l.b16 %v2250
    %v2402 = vunpack.c.l.b16 %v2251
    %v2403 = vunpack.c.h.b16 %v2251
    %v2404 = vunpack.c.l.b16 %v2252
    %v2405 = vunpack.c.l.b16 %v2253
    %v2406 = vunpack.c.h.b16 %v2253
    %v2407 = vunpack.c.l.b16 %v2254
    %v2408 = vunpack.c.l.b16 %v2255
    %v2409 = vunpack.c.h.b16 %v2255
    %v2410 = vunpack.c.l.b16 %v2256
    %v2411 = vunpack.c.l.b16 %v2257
    %v2412 = vunpack.c.h.b16 %v2257
    %v2413 = vunpack.c.l.b16 %v2258
    %v2414 = vunpack.c.l.b16 %v2259
    %v2415 = vunpack.c.h.b16 %v2259
    %v2416 = vunpack.c.l.b16 %v2260
    %v2417 = vunpack.c.l.b16 %v2261
    %v2418 = vunpack.c.h.b16 %v2261
    %v2419 = vunpack.c.l.b16 %v2262
    %v2420 = vunpack.c.l.b16 %v2263
    %v2421 = vunpack.c.h.b16 %v2263
    %v2422 = vunpack.c.l.b16 %v2264
    %v2423 = vunpack.c.l.b16 %v2265
    %v2424 = vunpack.c.h.b16 %v2265
    %v2425 = vunpack.c.l.b16 %v2266
    %v2426 = vunpack.c.l.b16 %v2267
    %v2427 = vunpack.c.h.b16 %v2267
    %v2428 = vunpack.c.l.b16 %v2268
    %v2429 = vunpack.c.l.b16 %v2269
    %v2430 = vunpack.c.h.b16 %v2269
    %v2431 = vunpack.c.l.b16 %v2270
    %v2432 = vunpack.c.l.b16 %v2271
    %v2433 = vunpack.c.h.b16 %v2271
    %v2434 = vunpack.c.l.b16 %v2272
    %v2435 = vunpack.c.l.b16 %v2273
    %v2436 = vunpack.c.h.b16 %v2273
    %v2437 = vunpack.c.l.b16 %v2274
    %v2438 = vunpack.c.l.b16 %v2275
    %v2439 = vunpack.c.h.b16 %v2275
    %v2440 = vunpack.c.l.b16 %v2276
    %v2441 = vunpack.c.l.b16 %v2277
    %v2442 = vunpack.c.h.b16 %v2277
    %v2443 = vunpack.c.l.b16 %v2278
    %v2444 = vunpack.c.l.b16 %v2279
    %v2445 = vunpack.c.h.b16 %v2279
    %v2446 = vunpack.c.l.b16 %v2280
    %v2447 = vunpack.c.l.b16 %v2281
    %v2448 = vunpack.c.h.b16 %v2281
    %v2449 = vunpack.c.l.b16 %v2282
    %v2450 = vunpack.c.l.b16 %v2283
    %v2451 = vunpack.c.h.b16 %v2283
    %v2452 = vunpack.c.l.b16 %v2284
    %v2453 = vunpack.c.l.b16 %v2285
    %v2454 = vunpack.c.h.b16 %v2285
    %v2455 = vunpack.c.l.b16 %v2286
    %v2456 = vunpack.c.l.b16 %v2287
    %v2457 = vunpack.c.h.b16 %v2287
    %v2458 = vunpack.c.l.b16 %v2288
    %v2459 = vunpack.c.l.b16 %v2289
    %v2460 = vunpack.c.h.b16 %v2289
    %v2461 = vunpack.c.l.b16 %v2290
    %v2462 = vunpack.c.l.b16 %v2291
    %v2463 = vunpack.c.h.b16 %v2291
    %v2464 = vunpack.c.l.b16 %v2292
    %v2465 = vunpack.c.l.b16 %v2293
    %v2466 = vunpack.c.h.b16 %v2293
    %v2467 = vunpack.c.l.b16 %v2294
    %v2468 = vunpack.c.l.b16 %v2295
    %v2469 = vunpack.c.h.b16 %v2295
    %v2470 = vunpack.c.l.b16 %v2296
    %v2471 = vunpack.c.l.b16 %v2297
    %v2472 = vunpack.c.h.b16 %v2297
    %v2473 = vunpack.c.l.b16 %v2298
    %v2474 = vunpack.c.l.b16 %v2299
    %v2475 = vunpack.c.h.b16 %v2299
    %v2476 = vunpack.c.l.b16 %v2300
    %v2477 = vunpack.c.l.b16 %v2301
    %v2478 = vunpack.c.h.b16 %v2301
    %v2479 = vunpack.c.l.b16 %v2302
    %v2480 = vpack.c.b16 %v2387, %v2384
    %v2481 = vpack.c.b16 %v2388, %v2385
    %v2482 = vpack.c.b16 %v2389, %v2386
    %v2483 = vpack.c.b16 %v2393, %v2390
    %v2484 = vpack.c.b16 %v2394, %v2391
    %v2485 = vpack.c.b16 %v2395, %v2392
    %v2486 = vpack.c.b16 %v2399, %v2396
    %v2487 = vpack.c.b16 %v2400, %v2397
    %v2488 = vpack.c.b16 %v2401, %v2398
    %v2489 = vpack.c.b16 %v2405, %v2402
    %v2490 = vpack.c.b16 %v2406, %v2403
    %v2491 = vpack.c.b16 %v2407, %v2404
    %v2492 = vpack.c.b16 %v2411, %v2408
    %v2493 = vpack.c.b16 %v2412, %v2409
    %v2494 = vpack.c.b16 %v2413, %v2410
    %v2495 = vpack.c.b16 %v2417, %v2414
    %v2496 = vpack.c.b16 %v2418, %v2415
    %v2497 = vpack.c.b16 %v2419, %v2416
    %v2498 = vpack.c.b16 %v2423, %v2420
    %v2499 = vpack.c.b16 %v2424, %v2421
    %v2500 = vpack.c.b16 %v2425, %v2422
    %v2501 = vpack.c.b16 %v2429, %v2426
    %v2502 = vpack.c.b16 %v2430, %v2427
    %v2503 = vpack.c.b16 %v2431, %v2428
    %v2504 = vpack.c.b16 %v2435, %v2432
    %v2505 = vpack.c.b16 %v2436, %v2433
    %v2506 = vpack.c.b16 %v2437, %v2434
    %v2507 = vpack.c.b16 %v2441, %v2438
    %v2508 = vpack.c.b16 %v2442, %v2439
    %v2509 = vpack.c.b16 %v2443, %v2440
    %v2510 = vpack.c.b16 %v2447, %v2444
    %v2511 = vpack.c.b16 %v2448, %v2445
    %v2512 = vpack.c.b16 %v2449, %v2446
    %v2513 = vpack.c.b16 %v2453, %v2450
    %v2514 = vpack.c.b16 %v2454, %v2451
    %v2515 = vpack.c.b16 %v2455, %v2452
    %v2516 = vpack.c.b16 %v2459, %v2456
    %v2517 = vpack.c.b16 %v2460, %v2457
    %v2518 = vpack.c.b16 %v2461, %v2458
    %v2519 = vpack.c.b16 %v2465, %v2462
    %v2520 = vpack.c.b16 %v2466, %v2463
    %v2521 = vpack.c.b16 %v2467, %v2464
    %v2522 = vpack.c.b16 %v2471, %v2468
    %v2523 = vpack.c.b16 %v2472, %v2469
    %v2524 = vpack.c.b16 %v2473, %v2470
    %v2525 = vpack.c.b16 %v2477, %v2474
    %v2526 = vpack.c.b16 %v2478, %v2475
    %v2527 = vpack.c.b16 %v2479, %v2476
    %2576 = vmatprep.subr.bf16.mxu0 %v2481
    %2577 = vmatpush1.bf16.msra.mxu0 %v2480
    %2578 = vmatprep.subr.bf16.mxu0 %v2484
    %2579 = vmatpush1.bf16.msra.mxu0 %v2483
    %2580 = vmatprep.subr.bf16.mxu0 %v2487
    %2581 = vmatpush1.bf16.msra.mxu0 %v2486
    %2582 = vmatprep.subr.bf16.mxu0 %v2490
    %2583 = vmatpush1.bf16.msra.mxu0 %v2489
    %2584 = vmatprep.subr.bf16.mxu0 %v2493
    %2585 = vmatpush1.bf16.msra.mxu0 %v2492
    %2586 = vmatprep.subr.bf16.mxu0 %v2496
    %2587 = vmatpush1.bf16.msra.mxu0 %v2495
    %2588 = vmatprep.subr.bf16.mxu0 %v2499
    %2589 = vmatpush1.bf16.msra.mxu0 %v2498
    %2590 = vmatprep.subr.bf16.mxu0 %v2502
    %2591 = vmatpush1.bf16.msra.mxu0 %v2501
    %2592 = vmatprep.subr.bf16.mxu0 %v2505
    %2593 = vmatpush1.bf16.msra.mxu0 %v2504
    %2594 = vmatprep.subr.bf16.mxu0 %v2508
    %2595 = vmatpush1.bf16.msra.mxu0 %v2507
    %2596 = vmatprep.subr.bf16.mxu0 %v2511
    %2597 = vmatpush1.bf16.msra.mxu0 %v2510
    %2598 = vmatprep.subr.bf16.mxu0 %v2514
    %2599 = vmatpush1.bf16.msra.mxu0 %v2513
    %2600 = vmatprep.subr.bf16.mxu0 %v2517
    %2601 = vmatpush1.bf16.msra.mxu0 %v2516
    %2602 = vmatprep.subr.bf16.mxu0 %v2520
    %2603 = vmatpush1.bf16.msra.mxu0 %v2519
    %2604 = vmatprep.subr.bf16.mxu0 %v2523
    %2605 = vmatpush1.bf16.msra.mxu0 %v2522
    %2606 = vmatprep.subr.bf16.mxu0 %v2526
    %2607 = vmatpush1.bf16.msra.mxu0 %v2525
    %2608 = vmatprep.mubr.bf16.mxu0 %v2238
    %2609 = vmatmul.mubr.bf16.gmra.mrb[0].mxu0 %v2237
    %v2610 = vpop.f32.mrb[0].mxu0
    %v2611 = vadd.f32 %v2308, %v2610
    %v2612 = vpop.f32.mrb[0].mxu0
    %v2613 = vadd.f32 %v2312, %v2612
    %v2614 = vpop.f32.mrb[0].mxu0
    %v2615 = vpop.f32.mrb[0].mxu0
    %2616 = vdwg.mxu0
    %2617 = vmatprep.subr.bf16.mxu0 0
    %2618 = vmatpush1.bf16.msra.mxu0 %v2482
    %2619 = vmatprep.subr.bf16.mxu0 0
    %2620 = vmatpush1.bf16.msra.mxu0 %v2485
    %2621 = vmatprep.subr.bf16.mxu0 0
    %2622 = vmatpush1.bf16.msra.mxu0 %v2488
    %2623 = vmatprep.subr.bf16.mxu0 0
    %2624 = vmatpush1.bf16.msra.mxu0 %v2491
    %2625 = vmatprep.subr.bf16.mxu0 0
    %2626 = vmatpush1.bf16.msra.mxu0 %v2494
    %2627 = vmatprep.subr.bf16.mxu0 0
    %2628 = vmatpush1.bf16.msra.mxu0 %v2497
    %2629 = vmatprep.subr.bf16.mxu0 0
    %2630 = vmatpush1.bf16.msra.mxu0 %v2500
    %2631 = vmatprep.subr.bf16.mxu0 0
    %2632 = vmatpush1.bf16.msra.mxu0 %v2503
    %2633 = vmatprep.subr.bf16.mxu0 0
    %2634 = vmatpush1.bf16.msra.mxu0 %v2506
    %2635 = vmatprep.subr.bf16.mxu0 0
    %2636 = vmatpush1.bf16.msra.mxu0 %v2509
    %2637 = vmatprep.subr.bf16.mxu0 0
    %2638 = vmatpush1.bf16.msra.mxu0 %v2512
    %2639 = vmatprep.subr.bf16.mxu0 0
    %2640 = vmatpush1.bf16.msra.mxu0 %v2515
    %2641 = vmatprep.subr.bf16.mxu0 0
    %2642 = vmatpush1.bf16.msra.mxu0 %v2518
    %2643 = vmatprep.subr.bf16.mxu0 0
    %2644 = vmatpush1.bf16.msra.mxu0 %v2521
    %2645 = vmatprep.subr.bf16.mxu0 0
    %2646 = vmatpush1.bf16.msra.mxu0 %v2524
    %2647 = vmatprep.subr.bf16.mxu0 0
    %2648 = vmatpush1.bf16.msra.mxu0 %v2527
    %2649 = vmatprep.mubr.bf16.mxu0 %v2238
    %2650 = vmatmul.mubr.bf16.gmra.mrb[0].mxu0 %v2237
    %v2651 = vpop.f32.mrb[0].mxu0
    %v2652 = vadd.f32 %v2316, %v2651
    %v2653 = vpop.f32.mrb[0].mxu0
    %v2654 = vpop.f32.mrb[0].mxu0
    %v2655 = vpop.f32.mrb[0].mxu0
    %2656 = vdwg.mxu0
    %v2657 = vsel %vm887, %v2611, 0.0
    %v2658 = vsel %vm887, %v2613, 0.0
    %v2659 = vsel %vm887, %v2652, 0.0
    %v2660 = vrot.slane %v2657, 4
    %v2661 = vadd.f32 %v2657, %v2660
    %v2662 = vrot.slane %v2661, 2
    %v2663 = vadd.f32 %v2661, %v2662
    %v2664 = vrot.slane %v2663, 1
    %v2665 = vadd.f32 %v2663, %v2664
    %v2666 = vrot.slane %v2658, 4
    %v2667 = vadd.f32 %v2658, %v2666
    %v2668 = vrot.slane %v2667, 2
    %v2669 = vadd.f32 %v2667, %v2668
    %v2670 = vrot.slane %v2669, 1
    %v2671 = vadd.f32 %v2669, %v2670
    %v2672 = vrot.slane %v2659, 4
    %v2673 = vadd.f32 %v2659, %v2672
    %v2674 = vrot.slane %v2673, 2
    %v2675 = vadd.f32 %v2673, %v2674
    %v2676 = vrot.slane %v2675, 1
    %v2677 = vadd.f32 %v2675, %v2676
    %v2678 = vmul.f32 %v2665, 0.125
    %v2679 = vmul.f32 %v2671, 0.125
    %v2680 = vmul.f32 %v2677, 0.125
    %v2681 = vsub.f32 %v2611, %v2678
    %v2682 = vsub.f32 %v2613, %v2679
    %v2683 = vsub.f32 %v2652, %v2680
    %v2684 = vsel %vm887, %v2681, 0.0
    %v2685 = vsel %vm887, %v2682, 0.0
    %v2686 = vsel %vm887, %v2683, 0.0
    %v2687 = vmul.f32 %v2684, %v2684
    %v2688 = vmul.f32 %v2685, %v2685
    %v2689 = vmul.f32 %v2686, %v2686
    %v2690 = vrot.slane %v2687, 4
    %v2691 = vadd.f32 %v2687, %v2690
    %v2692 = vrot.slane %v2691, 2
    %v2693 = vadd.f32 %v2691, %v2692
    %v2694 = vrot.slane %v2693, 1
    %v2695 = vadd.f32 %v2693, %v2694
    %v2696 = vrot.slane %v2688, 4
    %v2697 = vadd.f32 %v2688, %v2696
    %v2698 = vrot.slane %v2697, 2
    %v2699 = vadd.f32 %v2697, %v2698
    %v2700 = vrot.slane %v2699, 1
    %v2701 = vadd.f32 %v2699, %v2700
    %v2702 = vrot.slane %v2689, 4
    %v2703 = vadd.f32 %v2689, %v2702
    %v2704 = vrot.slane %v2703, 2
    %v2705 = vadd.f32 %v2703, %v2704
    %v2706 = vrot.slane %v2705, 1
    %v2707 = vadd.f32 %v2705, %v2706
    %v2708 = vmul.f32 %v2695, 0.125
    %v2709 = vmul.f32 %v2701, 0.125
    %v2710 = vmul.f32 %v2707, 0.125
    %v2711 = vld [vmem:[%s75] sm:$0x7]
    %v2712 = vadd.f32 %v2708, 1e-05
    %v2713 = vadd.f32 %v2709, 1e-05
    %v2714 = vadd.f32 %v2710, 1e-05
    %v2715 = vrsqrt.pop %v2712
    %v2716 = vrsqrt.pop %v2713
    %v2717 = vrsqrt.pop %v2714
    %v2721 = vcombine.low %v2715, %v2716
    %v2723 = vunpack.c.l.s4 1966171168
    %v2724 = vunpack.c.0.s8 %v2723
    %v2725 = vlaneseq
    %v2726 = vshrl.u32 %v2725, 7
    %v2727 = vsub.s32 %v2724, %v2726
    %v2728 = vrot.slane %v2721, %v2727
    %v2730 = vunpack.c.l.s4 1966171168
    %v2731 = vunpack.c.0.s8 %v2730
    %v2732 = vlaneseq
    %v2733 = vshrl.u32 %v2732, 7
    %v2734 = vsub.s32 %v2731, %v2733
    %v2735 = vrot.slane %v2717, %v2734
    %v2736 = vcombine.low %v2728, %v2735
    %v2738 = vunpack.c.l.s4 1966171168
    %v2739 = vunpack.c.0.s8 %v2738
    %v2740 = vlaneseq
    %v2741 = vshrl.u32 %v2740, 7
    %v2742 = vsub.s32 %v2739, %v2741
    %v2743 = vrot.slane %v2736, %v2742
    %v2745 = vmul.f32 %v2711, %v2743
    %v2747 = vlaneseq
    %v2748 = vshrl.u32 %v2747, 7
    %v2749 = vsub.s32 0, %v2748
    %v2750 = vrot.slane %v2745, %v2749
    %v2751 = vlaneseq
    %v2752 = vshrl.u32 %v2751, 7
    %v2753 = vsub.s32 1, %v2752
    %v2754 = vrot.slane %v2745, %v2753
    %v2755 = vlaneseq
    %v2756 = vshrl.u32 %v2755, 7
    %v2757 = vsub.s32 2, %v2756
    %v2758 = vrot.slane %v2745, %v2757
    %v2762 = vmul.f32 %v2681, %v2750
    %v2763 = vmul.f32 %v2682, %v2754
    %v2764 = vmul.f32 %v2683, %v2758
    %v2765 = vld [vmem:[%s77] sm:$0x7]
    %v2767 = vlaneseq
    %v2768 = vshrl.u32 %v2767, 7
    %v2769 = vsub.s32 0, %v2768
    %v2770 = vrot.slane %v2765, %v2769
    %v2771 = vlaneseq
    %v2772 = vshrl.u32 %v2771, 7
    %v2773 = vsub.s32 1, %v2772
    %v2774 = vrot.slane %v2765, %v2773
    %v2775 = vlaneseq
    %v2776 = vshrl.u32 %v2775, 7
    %v2777 = vsub.s32 2, %v2776
    %v2778 = vrot.slane %v2765, %v2777
    %v2782 = vadd.f32 %v2762, %v2770
    %v2783 = vadd.f32 %v2763, %v2774
    %v2784 = vadd.f32 %v2764, %v2778
    %v2785 = vsub.f32 0.0, %v2782
    %v2786 = vsub.f32 0.0, %v2783
    %v2787 = vsub.f32 0.0, %v2784
    %v2788 = vmul.f32 %v2785, 1.442695
    %v2789 = vpow.pop %v2788
    %v2790 = vmul.f32 %v2786, 1.442695
    %v2791 = vpow.pop %v2790
    %v2792 = vmul.f32 %v2787, 1.442695
    %v2793 = vpow.pop %v2792
    %v2794 = vadd.f32 %v2789, 1.0
    %v2795 = vadd.f32 %v2791, 1.0
    %v2796 = vadd.f32 %v2793, 1.0
    %v2797 = vrcp.pop %v2794
    %v2798 = vmul.f32 1.0, %v2797
    %v2799 = vrcp.pop %v2795
    %v2800 = vmul.f32 1.0, %v2799
    %v2801 = vrcp.pop %v2796
    %v2802 = vmul.f32 1.0, %v2801
    %v2803 = vsel %vm887, %v2798, 0.0
    %v2804 = vsel %vm887, %v2800, 0.0
    %v2805 = vsel %vm887, %v2802, 0.0
    %2806 = vst.msk [vmem:[#allocation44] sm:$0xff] %vm1647, %v1612
    %2808 = vrot.lane.b32.xlu0 %v1612, 96
    %v2809 = vpop.permute.xlu0 %2808
    %2811 = vst.msk [vmem:[#allocation45] sm:$0xff] %vm1647, %v2809
    %2812 = vst.msk [vmem:[#allocation47] sm:$0xff] %vm1647, %v1622
    %2813 = vst [vmem:[%s85] sm:$0xff] %v2803
    %2814 = vst [vmem:[%s85 + $0x8] sm:$0xff] %v2804
    %2815 = vst [vmem:[%s85 + $0x10] sm:$0xff] %v2805
    // Predicated region
    $region266: #{fl_cvae_medical_forward.3} parent=1 // pred_check
      _
    $region267: #{fl_cvae_medical_forward.3} parent=1 // pred_check_branch
      %2817 = sbr.rel (0) target = $region269
    $region268: #{fl_cvae_medical_forward.3} parent=1 // pred_region
      %s2819 = ssub.s32 128, 128
      %2820 = vsyncadd [#allocation4], %s2819
      %s2822 = sshll.u32 [#allocation44], 4
      %s2823 = int_to_ptr.vmem [resolvable:$true] %s2822
      %2825 = dma.vmem_to_hbm [thread:$0]  %s2823, 128, %s79, [#allocation4]
    $region269: #{fl_cvae_medical_forward.3} parent=1 // pred_fallthru
      _
    // Predicated region
    $region270: #{fl_cvae_medical_forward.3} parent=1 // pred_check
      _
    $region271: #{fl_cvae_medical_forward.3} parent=1 // pred_check_branch
      %2827 = sbr.rel (0) target = $region273
    $region272: #{fl_cvae_medical_forward.3} parent=1 // pred_region
      %s2829 = ssub.s32 128, 128
      %2830 = vsyncadd [#allocation46], %s2829
      %s2832 = sshll.u32 [#allocation45], 4
      %s2833 = int_to_ptr.vmem [resolvable:$true] %s2832
      %2835 = dma.vmem_to_hbm [thread:$0]  %s2833, 128, %s81, [#allocation46]
    $region273: #{fl_cvae_medical_forward.3} parent=1 // pred_fallthru
      _
    // Predicated region
    $region274: #{fl_cvae_medical_forward.3} parent=1 // pred_check
      _
    $region275: #{fl_cvae_medical_forward.3} parent=1 // pred_check_branch
      %2837 = sbr.rel (0) target = $region277
    $region276: #{fl_cvae_medical_forward.3} parent=1 // pred_region
      %s2839 = ssub.s32 128, 128
      %2840 = vsyncadd [#allocation46], %s2839
      %s2842 = sshll.u32 [#allocation47], 4
      %s2843 = int_to_ptr.vmem [resolvable:$true] %s2842
      %2845 = dma.vmem_to_hbm [thread:$0]  %s2843, 128, %s83, [#allocation46]
    $region277: #{fl_cvae_medical_forward.3} parent=1 // pred_fallthru
      _
    // Predicated region
    $region278: #{fl_cvae_medical_forward.3} parent=1 // pred_check
      _
    $region279: #{fl_cvae_medical_forward.3} parent=1 // pred_check_branch
      %2847 = sbr.rel (0) target = $region281
    $region280: #{fl_cvae_medical_forward.3} parent=1 // pred_region
      _
    $region281: #{fl_cvae_medical_forward.3} parent=1 // pred_fallthru
      _
    // Predicated region
    $region282: #{fl_cvae_medical_forward.3} parent=1 // pred_check
      _
    $region283: #{fl_cvae_medical_forward.3} parent=1 // pred_check_branch
      %2849 = sbr.rel (0) target = $region285
    $region284: #{fl_cvae_medical_forward.3} parent=1 // pred_region
      %2850 = dma.done [#allocation4], 128
    $region285: #{fl_cvae_medical_forward.3} parent=1 // pred_fallthru
      _
    // Predicated region
    $region286: #{fl_cvae_medical_forward.3} parent=1 // pred_check
      _
    $region287: #{fl_cvae_medical_forward.3} parent=1 // pred_check_branch
      %2852 = sbr.rel (0) target = $region289
    $region288: #{fl_cvae_medical_forward.3} parent=1 // pred_region
      %2853 = dma.done [#allocation46], 128
    $region289: #{fl_cvae_medical_forward.3} parent=1 // pred_fallthru
      _
    // Predicated region
    $region290: #{fl_cvae_medical_forward.3} parent=1 // pred_check
      _
    $region291: #{fl_cvae_medical_forward.3} parent=1 // pred_check_branch
      %2855 = sbr.rel (0) target = $region293
    $region292: #{fl_cvae_medical_forward.3} parent=1 // pred_region
      %2856 = dma.done [#allocation46], 128
    $region293: #{fl_cvae_medical_forward.3} parent=1 // pred_fallthru
      _
    // Predicated region
    $region294: #{fl_cvae_medical_forward.3} parent=1 // pred_check
      _
    $region295: #{fl_cvae_medical_forward.3} parent=1 // pred_check_branch
      %2858 = sbr.rel (0) target = $region297
    $region296: #{fl_cvae_medical_forward.3} parent=1 // pred_region
      _
    $region297: #{fl_cvae_medical_forward.3} parent=1 // pred_fallthru
      _
    %2859 = vsyncpa [#allocation3], 1
    %2860 = vsyncpa [#allocation6], 1
    %2861 = vsyncpa [#allocation9], 1
    %2862 = vsyncpa [#allocation12], 1
    %2863 = vsyncpa [#allocation15], 1
    %2864 = vsyncpa [#allocation18], 1
    %2865 = vsyncpa [#allocation21], 1
    %2866 = vsyncpa [#allocation24], 1
    %2867 = vsyncpa [#allocation27], 1
    %2868 = vsyncpa [#allocation30], 1
    %2869 = vsyncpa [#allocation33], 1
    %2870 = vsyncpa [#allocation36], 1
    %2871 = vsyncpa [#allocation39], 1
    %2872 = vsyncpa [#allocation42], 1
    %2873 = vsyncpa [#allocation4], 1
    %2874 = vsyncpa [#allocation46], 1

</llo_original>
